<compile_context>
chip_gen: v7x
topology: tpu7x:2x2x1
jax: 0.10.0
libtpu: 0.0.40
codegen_flags: <defaults>
</compile_context>

<pallas_src>
import numpy as np
import jax
import jax.numpy as jnp
from jax.experimental import pallas as pl
from jax.experimental.pallas import tpu as pltpu

DENSE_DIM = 139               # 267 - 2*64 (dense part of obs_vec, minus month/hour)
EMB_DIM = 64
IN_DIM = DENSE_DIM + 2 * EMB_DIM   # 267
HID = 512
OUT_DIM = 500
OUT_PAD = 512                 # lane-dense padded output width


def _fused_kernel(month_ref, hour_ref,                       # scalar prefetch (SMEM)
                  dense_ref, mean_ref, std_ref,
                  w1d_ref, tabm_ref, tabh_ref, b1_ref,
                  w2_ref, b2_ref, w3_ref, b3_ref,
                  w4_ref, b4_ref, w5_ref, b5_ref,
                  w6_ref, b6_ref,
                  o_ref):
    f32 = jnp.float32
    bf16 = jnp.bfloat16

    # ---- fused feature glue: normalize dense features ------------------------
    dense = (dense_ref[...] - mean_ref[...]) / std_ref[...]            # [1,139] f32

    # ---- time features: exact one-hot gather from pre-folded fc1 tables ------
    m = month_ref[0]
    h = hour_ref[0]
    m_onehot = (jax.lax.broadcasted_iota(jnp.int32, (1, 12), 1) == m).astype(bf16)
    h_onehot = (jax.lax.broadcasted_iota(jnp.int32, (1, 24), 1) == h).astype(bf16)

    # ---- fc1: dense partial dot + folded month/hour contributions ------------
    y1 = (jnp.dot(dense.astype(bf16), w1d_ref[...], preferred_element_type=f32)
          + jnp.dot(m_onehot, tabm_ref[...], preferred_element_type=f32)
          + jnp.dot(h_onehot, tabh_ref[...], preferred_element_type=f32)
          + b1_ref[...])
    x = jnp.maximum(y1, 0.0)

    def layer(xv, w_ref, b_ref, relu):
        y = jnp.dot(xv.astype(bf16), w_ref[...],
                    preferred_element_type=f32) + b_ref[...]
        return jnp.maximum(y, 0.0) if relu else y

    x = layer(x, w2_ref, b2_ref, True)
    x = layer(x, w3_ref, b3_ref, True)
    x = layer(x, w4_ref, b4_ref, True)
    x = layer(x, w5_ref, b5_ref, True)
    out = layer(x, w6_ref, b6_ref, False)                              # [1,512] f32
    o_ref[...] = out.astype(o_ref.dtype)


def _full_spec(shape):
    zeros = (0,) * len(shape)
    return pl.BlockSpec(shape, lambda i, m, h: zeros)


def unitary_action_network_forward(obs_vec, prep):
    """Mirrors unitary_action_network.forward.

    obs_vec: [1, 141] f32 — 139 zero-std-filtered raw features followed by
             (month-1) and hour_of_day (floats, cast to int32 like the torch
             code).  prep: dict from prepare_params().
    """
    b = obs_vec.shape[0]
    dense_raw = obs_vec[:, :DENSE_DIM].astype(jnp.float32)             # [1,139]
    month = obs_vec[:, DENSE_DIM].astype(jnp.int32)                    # [1]
    hour = obs_vec[:, DENSE_DIM + 1].astype(jnp.int32)                 # [1]

    tensor_args = (
        dense_raw, prep["mean"], prep["std"],
        prep["w1_dense"], prep["tab_month"], prep["tab_hour"], prep["b1"],
        prep["w2"], prep["b2"], prep["w3"], prep["b3"],
        prep["w4"], prep["b4"], prep["w5"], prep["b5"],
        prep["w6"], prep["b6"],
    )
    in_specs = [_full_spec(a.shape) for a in tensor_args]
    out_spec = pl.BlockSpec((b, OUT_PAD), lambda i, m, h: (0, 0))

    out_padded = pl.pallas_call(
        _fused_kernel,
        out_shape=jax.ShapeDtypeStruct((b, OUT_PAD), jnp.float32),
        grid_spec=pltpu.PrefetchScalarGridSpec(
            num_scalar_prefetch=2,
            grid=(1,),
            in_specs=in_specs,
            out_specs=out_spec,
        ),
        compiler_params=pltpu.CompilerParams(
            dimension_semantics=("arbitrary",),
            vmem_limit_bytes=16 << 20,
        ),
    )(month, hour, *tensor_args)
    return out_padded[:, :OUT_DIM]


def init_raw_params(key):
    """Deterministic synthetic parameters (shapes from the module __init__)."""
    ks = jax.random.split(key, 16)
    p = {}
    p["emb_month"] = jax.random.normal(ks[0], (12, EMB_DIM), jnp.float32) * 0.1
    p["emb_hour"] = jax.random.normal(ks[1], (24, EMB_DIM), jnp.float32) * 0.1
    dims = [(IN_DIM, HID), (HID, HID), (HID, HID), (HID, HID), (HID, HID), (HID, OUT_DIM)]
    for i, (din, dout) in enumerate(dims, start=1):
        scale = 1.0 / np.sqrt(din)
        p[f"w{i}"] = jax.random.uniform(ks[2 * i], (din, dout), jnp.float32,
                                        minval=-scale, maxval=scale)
        p[f"b{i}"] = jax.random.uniform(ks[2 * i + 1], (1, dout), jnp.float32,
                                        minval=-scale, maxval=scale)
    return p


def prepare_params(raw, mean, std):
    """One-time param prep: bf16 weight cast, fc1 split, embedding->fc1 folding,
    fc6 lane padding."""
    bf16 = jnp.bfloat16
    f32 = jnp.float32
    prep = {}
    prep["mean"] = jnp.asarray(mean, f32).reshape(1, DENSE_DIM)
    prep["std"] = jnp.asarray(std, f32).reshape(1, DENSE_DIM)

    w1 = raw["w1"].astype(f32)                                          # [267,512]
    prep["w1_dense"] = w1[:DENSE_DIM].astype(bf16)                      # [139,512]
    # Fold: month_emb @ W1_month == one_hot(month) @ (EmbMonth @ W1_month)
    tab_m = jnp.dot(raw["emb_month"].astype(f32),
                    w1[DENSE_DIM:DENSE_DIM + EMB_DIM],
                    preferred_element_type=f32)                         # [12,512]
    tab_h = jnp.dot(raw["emb_hour"].astype(f32),
                    w1[DENSE_DIM + EMB_DIM:],
                    preferred_element_type=f32)                         # [24,512]
    prep["tab_month"] = tab_m.astype(bf16)
    prep["tab_hour"] = tab_h.astype(bf16)
    prep["b1"] = raw["b1"].astype(f32)                                  # [1,512]

    for i in range(2, 6):
        prep[f"w{i}"] = raw[f"w{i}"].astype(bf16)
        prep[f"b{i}"] = raw[f"b{i}"].astype(f32)

    w6 = jnp.zeros((HID, OUT_PAD), f32).at[:, :OUT_DIM].set(raw["w6"])
    b6 = jnp.zeros((1, OUT_PAD), f32).at[:, :OUT_DIM].set(raw["b6"])
    prep["w6"] = w6.astype(bf16)
    prep["b6"] = b6
    return prep


def reference_forward(obs_vec, raw, prep, mean, std):
    """Pure-JAX reference emulating the kernel math (bf16 weights, f32
    accumulate, pre-folded time-embedding tables) — otherwise it mirrors the
    torch module structure exactly."""
    f32 = jnp.float32
    bf16 = jnp.bfloat16

    dense = ((obs_vec[:, :DENSE_DIM] - mean) / std).astype(f32)
    month = obs_vec[:, DENSE_DIM].astype(jnp.int32)
    hour = obs_vec[:, DENSE_DIM + 1].astype(jnp.int32)
    m_contrib = jnp.take(prep["tab_month"], month, axis=0).astype(f32)  # exact gather
    h_contrib = jnp.take(prep["tab_hour"], hour, axis=0).astype(f32)

    x = jnp.maximum(
        jnp.dot(dense.astype(bf16), raw["w1"][:DENSE_DIM].astype(bf16),
                preferred_element_type=f32)
        + m_contrib + h_contrib + raw["b1"], 0.0)
    for i in range(2, 6):
        x = jnp.maximum(
            jnp.dot(x.astype(bf16), raw[f"w{i}"].astype(bf16),
                    preferred_element_type=f32) + raw[f"b{i}"], 0.0)
    return jnp.dot(x.astype(bf16), raw["w6"].astype(bf16),
                   preferred_element_type=f32) + raw["b6"]


if __name__ == "__main__":
    key = jax.random.PRNGKey(0)
    k_param, k_feat, k_mean, k_std = jax.random.split(key, 4)

    raw = init_raw_params(k_param)

    # Deterministic "scalar_dict"-style normalization stats (zero-std already removed).
    mean = jax.random.normal(k_mean, (DENSE_DIM,), jnp.float32)
    std = jax.random.uniform(k_std, (DENSE_DIM,), jnp.float32, minval=0.5, maxval=2.0)

    prep = prepare_params(raw, mean, std)

    # Build obs_vec [1, 141]: 139 raw features + (month-1) + hour_of_day.
    raw_features = jax.random.normal(k_feat, (1, DENSE_DIM), jnp.float32)
    month_minus_1 = jnp.array([[4.0]], jnp.float32)   # May -> 4
    hour_of_day = jnp.array([[13.0]], jnp.float32)
    obs_vec = jnp.concatenate([raw_features, month_minus_1, hour_of_day], axis=1)

    out = jax.block_until_ready(unitary_action_network_forward(obs_vec, prep))
    ref = jax.block_until_ready(reference_forward(obs_vec, raw, prep, mean, std))

    np.testing.assert_allclose(np.asarray(out), np.asarray(ref), rtol=5e-3, atol=5e-3)
    assert out.shape == (1, OUT_DIM) and out.dtype == jnp.float32
    print("KERNEL_OK")
</pallas_src>

<mosaic_0001>
module attributes {stable_mosaic.version = 11 : i64} {
  func.func @_fused_kernel(%arg0: i32, %arg1: memref<1xi32, #tpu.memory_space<smem>>, %arg2: memref<1xi32, #tpu.memory_space<smem>>, %arg3: memref<1x139xf32, #tpu.memory_space<vmem>>, %arg4: memref<1x139xf32, #tpu.memory_space<vmem>>, %arg5: memref<1x139xf32, #tpu.memory_space<vmem>>, %arg6: memref<139x512xbf16, #tpu.memory_space<vmem>>, %arg7: memref<12x512xbf16, #tpu.memory_space<vmem>>, %arg8: memref<24x512xbf16, #tpu.memory_space<vmem>>, %arg9: memref<1x512xf32, #tpu.memory_space<vmem>>, %arg10: memref<512x512xbf16, #tpu.memory_space<vmem>>, %arg11: memref<1x512xf32, #tpu.memory_space<vmem>>, %arg12: memref<512x512xbf16, #tpu.memory_space<vmem>>, %arg13: memref<1x512xf32, #tpu.memory_space<vmem>>, %arg14: memref<512x512xbf16, #tpu.memory_space<vmem>>, %arg15: memref<1x512xf32, #tpu.memory_space<vmem>>, %arg16: memref<512x512xbf16, #tpu.memory_space<vmem>>, %arg17: memref<1x512xf32, #tpu.memory_space<vmem>>, %arg18: memref<512x512xbf16, #tpu.memory_space<vmem>>, %arg19: memref<1x512xf32, #tpu.memory_space<vmem>>, %arg20: memref<1x512xf32, #tpu.memory_space<vmem>>) attributes {dimension_semantics = [#tpu.dimension_semantics<arbitrary>], iteration_bounds = array<i64: 1>, scalar_prefetch = 2 : i64, scratch_operands = 0 : i64, tpu.core_type = #tpu.core_type<tc>, window_params = [{pipeline_mode = #tpu.pipeline_mode<synchronous>, transform_indices = @transform_0, window_bounds = array<i64: 1, 139>}, {pipeline_mode = #tpu.pipeline_mode<synchronous>, transform_indices = @transform_1, window_bounds = array<i64: 1, 139>}, {pipeline_mode = #tpu.pipeline_mode<synchronous>, transform_indices = @transform_2, window_bounds = array<i64: 1, 139>}, {pipeline_mode = #tpu.pipeline_mode<synchronous>, transform_indices = @transform_3, window_bounds = array<i64: 139, 512>}, {pipeline_mode = #tpu.pipeline_mode<synchronous>, transform_indices = @transform_4, window_bounds = array<i64: 12, 512>}, {pipeline_mode = #tpu.pipeline_mode<synchronous>, transform_indices = @transform_5, window_bounds = array<i64: 24, 512>}, {pipeline_mode = #tpu.pipeline_mode<synchronous>, transform_indices = @transform_6, window_bounds = array<i64: 1, 512>}, {pipeline_mode = #tpu.pipeline_mode<synchronous>, transform_indices = @transform_7, window_bounds = array<i64: 512, 512>}, {pipeline_mode = #tpu.pipeline_mode<synchronous>, transform_indices = @transform_8, window_bounds = array<i64: 1, 512>}, {pipeline_mode = #tpu.pipeline_mode<synchronous>, transform_indices = @transform_9, window_bounds = array<i64: 512, 512>}, {pipeline_mode = #tpu.pipeline_mode<synchronous>, transform_indices = @transform_10, window_bounds = array<i64: 1, 512>}, {pipeline_mode = #tpu.pipeline_mode<synchronous>, transform_indices = @transform_11, window_bounds = array<i64: 512, 512>}, {pipeline_mode = #tpu.pipeline_mode<synchronous>, transform_indices = @transform_12, window_bounds = array<i64: 1, 512>}, {pipeline_mode = #tpu.pipeline_mode<synchronous>, transform_indices = @transform_13, window_bounds = array<i64: 512, 512>}, {pipeline_mode = #tpu.pipeline_mode<synchronous>, transform_indices = @transform_14, window_bounds = array<i64: 1, 512>}, {pipeline_mode = #tpu.pipeline_mode<synchronous>, transform_indices = @transform_15, window_bounds = array<i64: 512, 512>}, {pipeline_mode = #tpu.pipeline_mode<synchronous>, transform_indices = @transform_16, window_bounds = array<i64: 1, 512>}, {pipeline_mode = #tpu.pipeline_mode<synchronous>, transform_indices = @transform_17, window_bounds = array<i64: 1, 512>}]} {
    %c0 = arith.constant 0 : index
    %c0_0 = arith.constant 0 : index
    %0 = vector.load %arg3[%c0, %c0_0] : memref<1x139xf32, #tpu.memory_space<vmem>>, vector<1x139xf32>
    %c0_1 = arith.constant 0 : index
    %c0_2 = arith.constant 0 : index
    %1 = vector.load %arg4[%c0_1, %c0_2] : memref<1x139xf32, #tpu.memory_space<vmem>>, vector<1x139xf32>
    %2 = arith.subf %0, %1 : vector<1x139xf32>
    %c0_3 = arith.constant 0 : index
    %c0_4 = arith.constant 0 : index
    %3 = vector.load %arg5[%c0_3, %c0_4] : memref<1x139xf32, #tpu.memory_space<vmem>>, vector<1x139xf32>
    %4 = arith.divf %2, %3 : vector<1x139xf32>
    %c0_5 = arith.constant 0 : index
    %5 = memref.load %arg1[%c0_5] : memref<1xi32, #tpu.memory_space<smem>>
    %c0_6 = arith.constant 0 : index
    %6 = memref.load %arg2[%c0_6] : memref<1xi32, #tpu.memory_space<smem>>
    %7 = tpu.iota {dimensions = array<i32: 1>} : vector<1x12xi32>
    %8 = vector.broadcast %5 : i32 to vector<1x12xi32>
    %9 = arith.cmpi eq, %7, %8 : vector<1x12xi32>
    %10 = arith.extui %9 : vector<1x12xi1> to vector<1x12xi32>
    %11 = arith.sitofp %10 : vector<1x12xi32> to vector<1x12xf32>
    %12 = arith.truncf %11 : vector<1x12xf32> to vector<1x12xbf16>
    %13 = tpu.iota {dimensions = array<i32: 1>} : vector<1x24xi32>
    %14 = vector.broadcast %6 : i32 to vector<1x24xi32>
    %15 = arith.cmpi eq, %13, %14 : vector<1x24xi32>
    %16 = arith.extui %15 : vector<1x24xi1> to vector<1x24xi32>
    %17 = arith.sitofp %16 : vector<1x24xi32> to vector<1x24xf32>
    %18 = arith.truncf %17 : vector<1x24xf32> to vector<1x24xbf16>
    %19 = arith.truncf %4 : vector<1x139xf32> to vector<1x139xbf16>
    %c0_7 = arith.constant 0 : index
    %c0_8 = arith.constant 0 : index
    %20 = vector.load %arg6[%c0_7, %c0_8] : memref<139x512xbf16, #tpu.memory_space<vmem>>, vector<139x512xbf16>
    %cst = arith.constant dense<0.000000e+00> : vector<1x512xf32>
    %21 = tpu.matmul %19, %20, %cst {dimension_numbers = #tpu.dot_dimension_numbers<[1], [0], [0], [1], [0, 0, 1, 1], [], []>} : vector<1x139xbf16>, vector<139x512xbf16>, vector<1x512xf32> -> vector<1x512xf32>
    %c0_9 = arith.constant 0 : index
    %c0_10 = arith.constant 0 : index
    %22 = vector.load %arg7[%c0_9, %c0_10] : memref<12x512xbf16, #tpu.memory_space<vmem>>, vector<12x512xbf16>
    %cst_11 = arith.constant dense<0.000000e+00> : vector<1x512xf32>
    %23 = tpu.matmul %12, %22, %cst_11 {dimension_numbers = #tpu.dot_dimension_numbers<[1], [0], [0], [1], [0, 0, 1, 1], [], []>} : vector<1x12xbf16>, vector<12x512xbf16>, vector<1x512xf32> -> vector<1x512xf32>
    %24 = arith.addf %21, %23 : vector<1x512xf32>
    %c0_12 = arith.constant 0 : index
    %c0_13 = arith.constant 0 : index
    %25 = vector.load %arg8[%c0_12, %c0_13] : memref<24x512xbf16, #tpu.memory_space<vmem>>, vector<24x512xbf16>
    %cst_14 = arith.constant dense<0.000000e+00> : vector<1x512xf32>
    %26 = tpu.matmul %18, %25, %cst_14 {dimension_numbers = #tpu.dot_dimension_numbers<[1], [0], [0], [1], [0, 0, 1, 1], [], []>} : vector<1x24xbf16>, vector<24x512xbf16>, vector<1x512xf32> -> vector<1x512xf32>
    %27 = arith.addf %24, %26 : vector<1x512xf32>
    %c0_15 = arith.constant 0 : index
    %c0_16 = arith.constant 0 : index
    %28 = vector.load %arg9[%c0_15, %c0_16] : memref<1x512xf32, #tpu.memory_space<vmem>>, vector<1x512xf32>
    %29 = arith.addf %27, %28 : vector<1x512xf32>
    %cst_17 = arith.constant 0.000000e+00 : f32
    %30 = vector.broadcast %cst_17 : f32 to vector<1x512xf32>
    %31 = arith.maximumf %29, %30 : vector<1x512xf32>
    %32 = arith.truncf %31 : vector<1x512xf32> to vector<1x512xbf16>
    %c0_18 = arith.constant 0 : index
    %c0_19 = arith.constant 0 : index
    %33 = vector.load %arg10[%c0_18, %c0_19] : memref<512x512xbf16, #tpu.memory_space<vmem>>, vector<512x512xbf16>
    %cst_20 = arith.constant dense<0.000000e+00> : vector<1x512xf32>
    %34 = tpu.matmul %32, %33, %cst_20 {dimension_numbers = #tpu.dot_dimension_numbers<[1], [0], [0], [1], [0, 0, 1, 1], [], []>} : vector<1x512xbf16>, vector<512x512xbf16>, vector<1x512xf32> -> vector<1x512xf32>
    %c0_21 = arith.constant 0 : index
    %c0_22 = arith.constant 0 : index
    %35 = vector.load %arg11[%c0_21, %c0_22] : memref<1x512xf32, #tpu.memory_space<vmem>>, vector<1x512xf32>
    %36 = arith.addf %34, %35 : vector<1x512xf32>
    %cst_23 = arith.constant 0.000000e+00 : f32
    %37 = vector.broadcast %cst_23 : f32 to vector<1x512xf32>
    %38 = arith.maximumf %36, %37 : vector<1x512xf32>
    %39 = arith.truncf %38 : vector<1x512xf32> to vector<1x512xbf16>
    %c0_24 = arith.constant 0 : index
    %c0_25 = arith.constant 0 : index
    %40 = vector.load %arg12[%c0_24, %c0_25] : memref<512x512xbf16, #tpu.memory_space<vmem>>, vector<512x512xbf16>
    %cst_26 = arith.constant dense<0.000000e+00> : vector<1x512xf32>
    %41 = tpu.matmul %39, %40, %cst_26 {dimension_numbers = #tpu.dot_dimension_numbers<[1], [0], [0], [1], [0, 0, 1, 1], [], []>} : vector<1x512xbf16>, vector<512x512xbf16>, vector<1x512xf32> -> vector<1x512xf32>
    %c0_27 = arith.constant 0 : index
    %c0_28 = arith.constant 0 : index
    %42 = vector.load %arg13[%c0_27, %c0_28] : memref<1x512xf32, #tpu.memory_space<vmem>>, vector<1x512xf32>
    %43 = arith.addf %41, %42 : vector<1x512xf32>
    %cst_29 = arith.constant 0.000000e+00 : f32
    %44 = vector.broadcast %cst_29 : f32 to vector<1x512xf32>
    %45 = arith.maximumf %43, %44 : vector<1x512xf32>
    %46 = arith.truncf %45 : vector<1x512xf32> to vector<1x512xbf16>
    %c0_30 = arith.constant 0 : index
    %c0_31 = arith.constant 0 : index
    %47 = vector.load %arg14[%c0_30, %c0_31] : memref<512x512xbf16, #tpu.memory_space<vmem>>, vector<512x512xbf16>
    %cst_32 = arith.constant dense<0.000000e+00> : vector<1x512xf32>
    %48 = tpu.matmul %46, %47, %cst_32 {dimension_numbers = #tpu.dot_dimension_numbers<[1], [0], [0], [1], [0, 0, 1, 1], [], []>} : vector<1x512xbf16>, vector<512x512xbf16>, vector<1x512xf32> -> vector<1x512xf32>
    %c0_33 = arith.constant 0 : index
    %c0_34 = arith.constant 0 : index
    %49 = vector.load %arg15[%c0_33, %c0_34] : memref<1x512xf32, #tpu.memory_space<vmem>>, vector<1x512xf32>
    %50 = arith.addf %48, %49 : vector<1x512xf32>
    %cst_35 = arith.constant 0.000000e+00 : f32
    %51 = vector.broadcast %cst_35 : f32 to vector<1x512xf32>
    %52 = arith.maximumf %50, %51 : vector<1x512xf32>
    %53 = arith.truncf %52 : vector<1x512xf32> to vector<1x512xbf16>
    %c0_36 = arith.constant 0 : index
    %c0_37 = arith.constant 0 : index
    %54 = vector.load %arg16[%c0_36, %c0_37] : memref<512x512xbf16, #tpu.memory_space<vmem>>, vector<512x512xbf16>
    %cst_38 = arith.constant dense<0.000000e+00> : vector<1x512xf32>
    %55 = tpu.matmul %53, %54, %cst_38 {dimension_numbers = #tpu.dot_dimension_numbers<[1], [0], [0], [1], [0, 0, 1, 1], [], []>} : vector<1x512xbf16>, vector<512x512xbf16>, vector<1x512xf32> -> vector<1x512xf32>
    %c0_39 = arith.constant 0 : index
    %c0_40 = arith.constant 0 : index
    %56 = vector.load %arg17[%c0_39, %c0_40] : memref<1x512xf32, #tpu.memory_space<vmem>>, vector<1x512xf32>
    %57 = arith.addf %55, %56 : vector<1x512xf32>
    %cst_41 = arith.constant 0.000000e+00 : f32
    %58 = vector.broadcast %cst_41 : f32 to vector<1x512xf32>
    %59 = arith.maximumf %57, %58 : vector<1x512xf32>
    %60 = arith.truncf %59 : vector<1x512xf32> to vector<1x512xbf16>
    %c0_42 = arith.constant 0 : index
    %c0_43 = arith.constant 0 : index
    %61 = vector.load %arg18[%c0_42, %c0_43] : memref<512x512xbf16, #tpu.memory_space<vmem>>, vector<512x512xbf16>
    %cst_44 = arith.constant dense<0.000000e+00> : vector<1x512xf32>
    %62 = tpu.matmul %60, %61, %cst_44 {dimension_numbers = #tpu.dot_dimension_numbers<[1], [0], [0], [1], [0, 0, 1, 1], [], []>} : vector<1x512xbf16>, vector<512x512xbf16>, vector<1x512xf32> -> vector<1x512xf32>
    %c0_45 = arith.constant 0 : index
    %c0_46 = arith.constant 0 : index
    %63 = vector.load %arg19[%c0_45, %c0_46] : memref<1x512xf32, #tpu.memory_space<vmem>>, vector<1x512xf32>
    %64 = arith.addf %62, %63 : vector<1x512xf32>
    %c0_47 = arith.constant 0 : index
    %c0_48 = arith.constant 0 : index
    %65 = vector.load %arg20[%c0_47, %c0_48] : memref<1x512xf32, #tpu.memory_space<vmem>>, vector<1x512xf32>
    tpu.vector_store %arg20[%c0_47, %c0_48], %64 {strides = array<i32>} : memref<1x512xf32, #tpu.memory_space<vmem>>, vector<1x512xf32>,
    return
  }
  func.func @transform_0(%arg0: i32, %arg1: memref<1xi32, #tpu.memory_space<smem>>, %arg2: memref<1xi32, #tpu.memory_space<smem>>) -> (i32, i32) {
    %c0_i32 = arith.constant 0 : i32
    %c0_i32_0 = arith.constant 0 : i32
    %c0_i32_1 = arith.constant 0 : i32
    return %c0_i32, %c0_i32_0 : i32, i32
  }
  func.func @transform_1(%arg0: i32, %arg1: memref<1xi32, #tpu.memory_space<smem>>, %arg2: memref<1xi32, #tpu.memory_space<smem>>) -> (i32, i32) {
    %c0_i32 = arith.constant 0 : i32
    %c0_i32_0 = arith.constant 0 : i32
    %c0_i32_1 = arith.constant 0 : i32
    return %c0_i32, %c0_i32_0 : i32, i32
  }
  func.func @transform_2(%arg0: i32, %arg1: memref<1xi32, #tpu.memory_space<smem>>, %arg2: memref<1xi32, #tpu.memory_space<smem>>) -> (i32, i32) {
    %c0_i32 = arith.constant 0 : i32
    %c0_i32_0 = arith.constant 0 : i32
    %c0_i32_1 = arith.constant 0 : i32
    return %c0_i32, %c0_i32_0 : i32, i32
  }
  func.func @transform_3(%arg0: i32, %arg1: memref<1xi32, #tpu.memory_space<smem>>, %arg2: memref<1xi32, #tpu.memory_space<smem>>) -> (i32, i32) {
    %c0_i32 = arith.constant 0 : i32
    %c0_i32_0 = arith.constant 0 : i32
    %c0_i32_1 = arith.constant 0 : i32
    return %c0_i32, %c0_i32_0 : i32, i32
  }
  func.func @transform_4(%arg0: i32, %arg1: memref<1xi32, #tpu.memory_space<smem>>, %arg2: memref<1xi32, #tpu.memory_space<smem>>) -> (i32, i32) {
    %c0_i32 = arith.constant 0 : i32
    %c0_i32_0 = arith.constant 0 : i32
    %c0_i32_1 = arith.constant 0 : i32
    return %c0_i32, %c0_i32_0 : i32, i32
  }
  func.func @transform_5(%arg0: i32, %arg1: memref<1xi32, #tpu.memory_space<smem>>, %arg2: memref<1xi32, #tpu.memory_space<smem>>) -> (i32, i32) {
    %c0_i32 = arith.constant 0 : i32
    %c0_i32_0 = arith.constant 0 : i32
    %c0_i32_1 = arith.constant 0 : i32
    return %c0_i32, %c0_i32_0 : i32, i32
  }
  func.func @transform_6(%arg0: i32, %arg1: memref<1xi32, #tpu.memory_space<smem>>, %arg2: memref<1xi32, #tpu.memory_space<smem>>) -> (i32, i32) {
    %c0_i32 = arith.constant 0 : i32
    %c0_i32_0 = arith.constant 0 : i32
    %c0_i32_1 = arith.constant 0 : i32
    return %c0_i32, %c0_i32_0 : i32, i32
  }
  func.func @transform_7(%arg0: i32, %arg1: memref<1xi32, #tpu.memory_space<smem>>, %arg2: memref<1xi32, #tpu.memory_space<smem>>) -> (i32, i32) {
    %c0_i32 = arith.constant 0 : i32
    %c0_i32_0 = arith.constant 0 : i32
    %c0_i32_1 = arith.constant 0 : i32
    return %c0_i32, %c0_i32_0 : i32, i32
  }
  func.func @transform_8(%arg0: i32, %arg1: memref<1xi32, #tpu.memory_space<smem>>, %arg2: memref<1xi32, #tpu.memory_space<smem>>) -> (i32, i32) {
    %c0_i32 = arith.constant 0 : i32
    %c0_i32_0 = arith.constant 0 : i32
    %c0_i32_1 = arith.constant 0 : i32
    return %c0_i32, %c0_i32_0 : i32, i32
  }
  func.func @transform_9(%arg0: i32, %arg1: memref<1xi32, #tpu.memory_space<smem>>, %arg2: memref<1xi32, #tpu.memory_space<smem>>) -> (i32, i32) {
    %c0_i32 = arith.constant 0 : i32
    %c0_i32_0 = arith.constant 0 : i32
    %c0_i32_1 = arith.constant 0 : i32
    return %c0_i32, %c0_i32_0 : i32, i32
  }
  func.func @transform_10(%arg0: i32, %arg1: memref<1xi32, #tpu.memory_space<smem>>, %arg2: memref<1xi32, #tpu.memory_space<smem>>) -> (i32, i32) {
    %c0_i32 = arith.constant 0 : i32
    %c0_i32_0 = arith.constant 0 : i32
    %c0_i32_1 = arith.constant 0 : i32
    return %c0_i32, %c0_i32_0 : i32, i32
  }
  func.func @transform_11(%arg0: i32, %arg1: memref<1xi32, #tpu.memory_space<smem>>, %arg2: memref<1xi32, #tpu.memory_space<smem>>) -> (i32, i32) {
    %c0_i32 = arith.constant 0 : i32
    %c0_i32_0 = arith.constant 0 : i32
    %c0_i32_1 = arith.constant 0 : i32
    return %c0_i32, %c0_i32_0 : i32, i32
  }
  func.func @transform_12(%arg0: i32, %arg1: memref<1xi32, #tpu.memory_space<smem>>, %arg2: memref<1xi32, #tpu.memory_space<smem>>) -> (i32, i32) {
    %c0_i32 = arith.constant 0 : i32
    %c0_i32_0 = arith.constant 0 : i32
    %c0_i32_1 = arith.constant 0 : i32
    return %c0_i32, %c0_i32_0 : i32, i32
  }
  func.func @transform_13(%arg0: i32, %arg1: memref<1xi32, #tpu.memory_space<smem>>, %arg2: memref<1xi32, #tpu.memory_space<smem>>) -> (i32, i32) {
    %c0_i32 = arith.constant 0 : i32
    %c0_i32_0 = arith.constant 0 : i32
    %c0_i32_1 = arith.constant 0 : i32
    return %c0_i32, %c0_i32_0 : i32, i32
  }
  func.func @transform_14(%arg0: i32, %arg1: memref<1xi32, #tpu.memory_space<smem>>, %arg2: memref<1xi32, #tpu.memory_space<smem>>) -> (i32, i32) {
    %c0_i32 = arith.constant 0 : i32
    %c0_i32_0 = arith.constant 0 : i32
    %c0_i32_1 = arith.constant 0 : i32
    return %c0_i32, %c0_i32_0 : i32, i32
  }
  func.func @transform_15(%arg0: i32, %arg1: memref<1xi32, #tpu.memory_space<smem>>, %arg2: memref<1xi32, #tpu.memory_space<smem>>) -> (i32, i32) {
    %c0_i32 = arith.constant 0 : i32
    %c0_i32_0 = arith.constant 0 : i32
    %c0_i32_1 = arith.constant 0 : i32
    return %c0_i32, %c0_i32_0 : i32, i32
  }
  func.func @transform_16(%arg0: i32, %arg1: memref<1xi32, #tpu.memory_space<smem>>, %arg2: memref<1xi32, #tpu.memory_space<smem>>) -> (i32, i32) {
    %c0_i32 = arith.constant 0 : i32
    %c0_i32_0 = arith.constant 0 : i32
    %c0_i32_1 = arith.constant 0 : i32
    return %c0_i32, %c0_i32_0 : i32, i32
  }
  func.func @transform_17(%arg0: i32, %arg1: memref<1xi32, #tpu.memory_space<smem>>, %arg2: memref<1xi32, #tpu.memory_space<smem>>) -> (i32, i32) {
    %c0_i32 = arith.constant 0 : i32
    %c0_i32_0 = arith.constant 0 : i32
    %c0_i32_1 = arith.constant 0 : i32
    return %c0_i32, %c0_i32_0 : i32, i32
  }
}

</mosaic_0001>

<llo_original>
// kernel: tpu_custom_call.1
$region0: #{tpu_custom_call.1}
  #allocation0 [shape = 'u32[]', space=smem, size = 0x4, offset = 0x4, fixed_abs, tag = 'smem constant byte address 0x4 - core index']
  #allocation1 [shape = 'u32[144,128]{1,0:T(1,128)}', space=vmem, size = 0x12000, scoped, tag = 'internal scratch']
  #allocation2 [shape = 's32[1]{0}', space=sflag, size = 0x4, scoped, tag = 'scoped memory for tpu_custom_call.1']
  #allocation3 [shape = 's32[1]{0:T(128)S(6)}', space=smem, size = 0x200, scoped, tag = 'prefetched SMEM operand 0']
  #allocation4 [shape = 's32[1]{0:T(128)S(6)}', space=smem, size = 0x200, scoped, tag = 'prefetched SMEM operand 1']
  %s0 = inlined_call_operand.<no memory space> [shape: s32[1], index: 0, kind: input, shape index: {}]
  %s1 = inlined_call_operand.<no memory space> [shape: s32[1], index: 1, kind: input, shape index: {}]
  %s2 = inlined_call_operand.vmem [shape: f32[1,139], index: 2, kind: input, shape index: {}]
  %s3 = inlined_call_operand.hbm [shape: f32[1,139], index: 3, kind: input, shape index: {}]
  %s4 = inlined_call_operand.hbm [shape: f32[1,139], index: 4, kind: input, shape index: {}]
  %s5 = inlined_call_operand.hbm [shape: bf16[139,512], index: 5, kind: input, shape index: {}]
  %s6 = inlined_call_operand.hbm [shape: bf16[12,512], index: 6, kind: input, shape index: {}]
  %s7 = inlined_call_operand.hbm [shape: bf16[24,512], index: 7, kind: input, shape index: {}]
  %s8 = inlined_call_operand.vmem [shape: f32[1,512], index: 8, kind: input, shape index: {}]
  %s9 = inlined_call_operand.hbm [shape: bf16[512,512], index: 9, kind: input, shape index: {}]
  %s10 = inlined_call_operand.vmem [shape: f32[1,512], index: 10, kind: input, shape index: {}]
  %s11 = inlined_call_operand.hbm [shape: bf16[512,512], index: 11, kind: input, shape index: {}]
  %s12 = inlined_call_operand.vmem [shape: f32[1,512], index: 12, kind: input, shape index: {}]
  %s13 = inlined_call_operand.hbm [shape: bf16[512,512], index: 13, kind: input, shape index: {}]
  %s14 = inlined_call_operand.vmem [shape: f32[1,512], index: 14, kind: input, shape index: {}]
  %s15 = inlined_call_operand.hbm [shape: bf16[512,512], index: 15, kind: input, shape index: {}]
  %s16 = inlined_call_operand.vmem [shape: f32[1,512], index: 16, kind: input, shape index: {}]
  %s17 = inlined_call_operand.hbm [shape: bf16[512,512], index: 17, kind: input, shape index: {}]
  %s18 = inlined_call_operand.vmem [shape: f32[1,512], index: 18, kind: input, shape index: {}]
  %s19 = inlined_call_operand.hbm [shape: f32[1,512], index: 19, kind: output, shape index: {}]
  %s20 = sld [smem:[#allocation0]]
  $region118: #{tpu_custom_call.1} parent=0
    _
  %s22 = ssub.s32 1, %s20
  %s23 = scalar_select 0, %s22, %s20
  %24 = sst [smem:[#allocation3]] %s0
  %25 = sst [smem:[#allocation4]] %s1
  $region1: #{tpu_custom_call.1} parent=0
    #allocation5 [shape = 'u8[1024]{0}', space=vmem, size = 0x400, scoped, tag = 'input window, operand 3, single buffered']
    #allocation6 [shape = 's32[1]{0}', space=sflag, size = 0x4, scoped, tag = 'scoped memory for tpu_custom_call.1']
    #allocation7 [shape = 's32[1]{0}', space=sflag, size = 0x4, scoped, tag = 'scoped memory for tpu_custom_call.1']
    #allocation8 [shape = 'u8[1024]{0}', space=vmem, size = 0x400, scoped, tag = 'input window, operand 4, single buffered']
    #allocation9 [shape = 's32[1]{0}', space=sflag, size = 0x4, scoped, tag = 'scoped memory for tpu_custom_call.1']
    #allocation10 [shape = 'u8[147456]{0}', space=vmem, size = 0x24000, scoped, tag = 'input window, operand 5, single buffered']
    #allocation11 [shape = 'u8[16384]{0}', space=vmem, size = 0x4000, scoped, tag = 'input window, operand 6, single buffered']
    #allocation12 [shape = 's32[1]{0}', space=sflag, size = 0x4, scoped, tag = 'scoped memory for tpu_custom_call.1']
    #allocation13 [shape = 'u8[24576]{0}', space=vmem, size = 0x6000, scoped, tag = 'input window, operand 7, single buffered']
    #allocation14 [shape = 'u8[524288]{0}', space=vmem, size = 0x80000, scoped, tag = 'input window, operand 9, single buffered']
    #allocation15 [shape = 's32[1]{0}', space=sflag, size = 0x4, scoped, tag = 'scoped memory for tpu_custom_call.1']
    #allocation16 [shape = 'u8[524288]{0}', space=vmem, size = 0x80000, scoped, tag = 'input window, operand 11, single buffered']
    #allocation17 [shape = 'u8[524288]{0}', space=vmem, size = 0x80000, scoped, tag = 'input window, operand 13, single buffered']
    #allocation18 [shape = 's32[1]{0}', space=sflag, size = 0x4, scoped, tag = 'scoped memory for tpu_custom_call.1']
    #allocation19 [shape = 'u8[524288]{0}', space=vmem, size = 0x80000, scoped, tag = 'input window, operand 15, single buffered']
    #allocation20 [shape = 'u8[524288]{0}', space=vmem, size = 0x80000, scoped, tag = 'input window, operand 17, single buffered']
    #allocation21 [shape = 's32[1]{0}', space=sflag, size = 0x4, scoped, tag = 'scoped memory for tpu_custom_call.1']
    #allocation22 [shape = 'u8[2048]{0}', space=vmem, size = 0x800, scoped, tag = 'output window, operand 0, single buffered']
    %26 = vsyncpa [#allocation6], 0
    %27 = vsyncpa [#allocation9], 0
    %28 = vsyncpa [#allocation12], 0
    %29 = vsyncpa [#allocation15], 0
    %30 = vsyncpa [#allocation18], 0
    %31 = vsyncpa [#allocation21], 0
    %32 = vsyncpa [#allocation7], 0
    // Predicated region
    $region2: #{tpu_custom_call.1} parent=1 // pred_check
      _
    $region3: #{tpu_custom_call.1} parent=1 // pred_check_branch
      %34 = sbr.rel (0) target = $region5
    $region4: #{tpu_custom_call.1} parent=1 // pred_region
      _
    $region5: #{tpu_custom_call.1} parent=1 // pred_fallthru
      _
    // Predicated region
    $region6: #{tpu_custom_call.1} parent=1 // pred_check
      _
    $region7: #{tpu_custom_call.1} parent=1 // pred_check_branch
      %36 = sbr.rel (0) target = $region9
    $region8: #{tpu_custom_call.1} parent=1 // pred_region
      %s38 = ssub.s32 32, 32
      %39 = vsyncadd [#allocation6], %s38
      %s41 = sshll.u32 [#allocation5], 4
      %s42 = int_to_ptr.vmem [resolvable:$true] %s41
      %44 = dma.hbm_to_vmem [thread:$0]  %s3, 32, %s42, [#allocation6]
    $region9: #{tpu_custom_call.1} parent=1 // pred_fallthru
      _
    // Predicated region
    $region10: #{tpu_custom_call.1} parent=1 // pred_check
      _
    $region11: #{tpu_custom_call.1} parent=1 // pred_check_branch
      %46 = sbr.rel (0) target = $region13
    $region12: #{tpu_custom_call.1} parent=1 // pred_region
      %s48 = ssub.s32 32, 32
      %49 = vsyncadd [#allocation9], %s48
      %s51 = sshll.u32 [#allocation8], 4
      %s52 = int_to_ptr.vmem [resolvable:$true] %s51
      %54 = dma.hbm_to_vmem [thread:$0]  %s4, 32, %s52, [#allocation9]
    $region13: #{tpu_custom_call.1} parent=1 // pred_fallthru
      _
    // Predicated region
    $region14: #{tpu_custom_call.1} parent=1 // pred_check
      _
    $region15: #{tpu_custom_call.1} parent=1 // pred_check_branch
      %56 = sbr.rel (0) target = $region17
    $region16: #{tpu_custom_call.1} parent=1 // pred_region
      %s58 = ssub.s32 4608, 4608
      %59 = vsyncadd [#allocation9], %s58
      %s60 = sshll.u32 [#allocation10], 4
      %s61 = int_to_ptr.vmem [resolvable:$true] %s60
      %66 = dma.hbm_to_vmem [thread:$0]  %s5, 4608, %s61, [#allocation9], 256, 256, 16
    $region17: #{tpu_custom_call.1} parent=1 // pred_fallthru
      _
    // Predicated region
    $region18: #{tpu_custom_call.1} parent=1 // pred_check
      _
    $region19: #{tpu_custom_call.1} parent=1 // pred_check_branch
      %68 = sbr.rel (0) target = $region21
    $region20: #{tpu_custom_call.1} parent=1 // pred_region
      %s70 = ssub.s32 512, 512
      %71 = vsyncadd [#allocation12], %s70
      %s72 = sshll.u32 [#allocation11], 4
      %s73 = int_to_ptr.vmem [resolvable:$true] %s72
      %78 = dma.hbm_to_vmem [thread:$0]  %s6, 512, %s73, [#allocation12], 256, 256, 16
    $region21: #{tpu_custom_call.1} parent=1 // pred_fallthru
      _
    // Predicated region
    $region22: #{tpu_custom_call.1} parent=1 // pred_check
      _
    $region23: #{tpu_custom_call.1} parent=1 // pred_check_branch
      %80 = sbr.rel (0) target = $region25
    $region24: #{tpu_custom_call.1} parent=1 // pred_region
      %s82 = ssub.s32 768, 768
      %83 = vsyncadd [#allocation12], %s82
      %s84 = sshll.u32 [#allocation13], 4
      %s85 = int_to_ptr.vmem [resolvable:$true] %s84
      %90 = dma.hbm_to_vmem [thread:$0]  %s7, 768, %s85, [#allocation12], 256, 256, 16
    $region25: #{tpu_custom_call.1} parent=1 // pred_fallthru
      _
    // Predicated region
    $region26: #{tpu_custom_call.1} parent=1 // pred_check
      _
    $region27: #{tpu_custom_call.1} parent=1 // pred_check_branch
      %92 = sbr.rel (0) target = $region29
    $region28: #{tpu_custom_call.1} parent=1 // pred_region
      _
    $region29: #{tpu_custom_call.1} parent=1 // pred_fallthru
      _
    // Predicated region
    $region30: #{tpu_custom_call.1} parent=1 // pred_check
      _
    $region31: #{tpu_custom_call.1} parent=1 // pred_check_branch
      %94 = sbr.rel (0) target = $region33
    $region32: #{tpu_custom_call.1} parent=1 // pred_region
      %s96 = ssub.s32 16384, 16384
      %97 = vsyncadd [#allocation15], %s96
      %s98 = sshll.u32 [#allocation14], 4
      %s99 = int_to_ptr.vmem [resolvable:$true] %s98
      %104 = dma.hbm_to_vmem [thread:$0]  %s9, 16384, %s99, [#allocation15], 256, 256, 16
    $region33: #{tpu_custom_call.1} parent=1 // pred_fallthru
      _
    // Predicated region
    $region34: #{tpu_custom_call.1} parent=1 // pred_check
      _
    $region35: #{tpu_custom_call.1} parent=1 // pred_check_branch
      %106 = sbr.rel (0) target = $region37
    $region36: #{tpu_custom_call.1} parent=1 // pred_region
      _
    $region37: #{tpu_custom_call.1} parent=1 // pred_fallthru
      _
    // Predicated region
    $region38: #{tpu_custom_call.1} parent=1 // pred_check
      _
    $region39: #{tpu_custom_call.1} parent=1 // pred_check_branch
      %108 = sbr.rel (0) target = $region41
    $region40: #{tpu_custom_call.1} parent=1 // pred_region
      %s110 = ssub.s32 16384, 16384
      %111 = vsyncadd [#allocation15], %s110
      %s112 = sshll.u32 [#allocation16], 4
      %s113 = int_to_ptr.vmem [resolvable:$true] %s112
      %118 = dma.hbm_to_vmem [thread:$0]  %s11, 16384, %s113, [#allocation15], 256, 256, 16
    $region41: #{tpu_custom_call.1} parent=1 // pred_fallthru
      _
    // Predicated region
    $region42: #{tpu_custom_call.1} parent=1 // pred_check
      _
    $region43: #{tpu_custom_call.1} parent=1 // pred_check_branch
      %120 = sbr.rel (0) target = $region45
    $region44: #{tpu_custom_call.1} parent=1 // pred_region
      _
    $region45: #{tpu_custom_call.1} parent=1 // pred_fallthru
      _
    // Predicated region
    $region46: #{tpu_custom_call.1} parent=1 // pred_check
      _
    $region47: #{tpu_custom_call.1} parent=1 // pred_check_branch
      %122 = sbr.rel (0) target = $region49
    $region48: #{tpu_custom_call.1} parent=1 // pred_region
      %s124 = ssub.s32 16384, 16384
      %125 = vsyncadd [#allocation18], %s124
      %s126 = sshll.u32 [#allocation17], 4
      %s127 = int_to_ptr.vmem [resolvable:$true] %s126
      %132 = dma.hbm_to_vmem [thread:$0]  %s13, 16384, %s127, [#allocation18], 256, 256, 16
    $region49: #{tpu_custom_call.1} parent=1 // pred_fallthru
      _
    // Predicated region
    $region50: #{tpu_custom_call.1} parent=1 // pred_check
      _
    $region51: #{tpu_custom_call.1} parent=1 // pred_check_branch
      %134 = sbr.rel (0) target = $region53
    $region52: #{tpu_custom_call.1} parent=1 // pred_region
      _
    $region53: #{tpu_custom_call.1} parent=1 // pred_fallthru
      _
    // Predicated region
    $region54: #{tpu_custom_call.1} parent=1 // pred_check
      _
    $region55: #{tpu_custom_call.1} parent=1 // pred_check_branch
      %136 = sbr.rel (0) target = $region57
    $region56: #{tpu_custom_call.1} parent=1 // pred_region
      %s138 = ssub.s32 16384, 16384
      %139 = vsyncadd [#allocation18], %s138
      %s140 = sshll.u32 [#allocation19], 4
      %s141 = int_to_ptr.vmem [resolvable:$true] %s140
      %146 = dma.hbm_to_vmem [thread:$0]  %s15, 16384, %s141, [#allocation18], 256, 256, 16
    $region57: #{tpu_custom_call.1} parent=1 // pred_fallthru
      _
    // Predicated region
    $region58: #{tpu_custom_call.1} parent=1 // pred_check
      _
    $region59: #{tpu_custom_call.1} parent=1 // pred_check_branch
      %148 = sbr.rel (0) target = $region61
    $region60: #{tpu_custom_call.1} parent=1 // pred_region
      _
    $region61: #{tpu_custom_call.1} parent=1 // pred_fallthru
      _
    // Predicated region
    $region62: #{tpu_custom_call.1} parent=1 // pred_check
      _
    $region63: #{tpu_custom_call.1} parent=1 // pred_check_branch
      %150 = sbr.rel (0) target = $region65
    $region64: #{tpu_custom_call.1} parent=1 // pred_region
      %s152 = ssub.s32 16384, 16384
      %153 = vsyncadd [#allocation21], %s152
      %s154 = sshll.u32 [#allocation20], 4
      %s155 = int_to_ptr.vmem [resolvable:$true] %s154
      %160 = dma.hbm_to_vmem [thread:$0]  %s17, 16384, %s155, [#allocation21], 256, 256, 16
    $region65: #{tpu_custom_call.1} parent=1 // pred_fallthru
      _
    // Predicated region
    $region66: #{tpu_custom_call.1} parent=1 // pred_check
      _
    $region67: #{tpu_custom_call.1} parent=1 // pred_check_branch
      %162 = sbr.rel (0) target = $region69
    $region68: #{tpu_custom_call.1} parent=1 // pred_region
      _
    $region69: #{tpu_custom_call.1} parent=1 // pred_fallthru
      _
    // Predicated region
    $region70: #{tpu_custom_call.1} parent=1 // pred_check
      _
    $region71: #{tpu_custom_call.1} parent=1 // pred_check_branch
      %164 = sbr.rel (0) target = $region73
    $region72: #{tpu_custom_call.1} parent=1 // pred_region
      %165 = dma.done [#allocation6], 32
    $region73: #{tpu_custom_call.1} parent=1 // pred_fallthru
      _
    // Predicated region
    $region74: #{tpu_custom_call.1} parent=1 // pred_check
      _
    $region75: #{tpu_custom_call.1} parent=1 // pred_check_branch
      %167 = sbr.rel (0) target = $region77
    $region76: #{tpu_custom_call.1} parent=1 // pred_region
      %168 = dma.done [#allocation9], 32
    $region77: #{tpu_custom_call.1} parent=1 // pred_fallthru
      _
    // Predicated region
    $region78: #{tpu_custom_call.1} parent=1 // pred_check
      _
    $region79: #{tpu_custom_call.1} parent=1 // pred_check_branch
      %170 = sbr.rel (0) target = $region81
    $region80: #{tpu_custom_call.1} parent=1 // pred_region
      %171 = dma.done [#allocation9], 4608
    $region81: #{tpu_custom_call.1} parent=1 // pred_fallthru
      _
    // Predicated region
    $region82: #{tpu_custom_call.1} parent=1 // pred_check
      _
    $region83: #{tpu_custom_call.1} parent=1 // pred_check_branch
      %173 = sbr.rel (0) target = $region85
    $region84: #{tpu_custom_call.1} parent=1 // pred_region
      %174 = dma.done [#allocation12], 512
    $region85: #{tpu_custom_call.1} parent=1 // pred_fallthru
      _
    // Predicated region
    $region86: #{tpu_custom_call.1} parent=1 // pred_check
      _
    $region87: #{tpu_custom_call.1} parent=1 // pred_check_branch
      %176 = sbr.rel (0) target = $region89
    $region88: #{tpu_custom_call.1} parent=1 // pred_region
      %177 = dma.done [#allocation12], 768
    $region89: #{tpu_custom_call.1} parent=1 // pred_fallthru
      _
    // Predicated region
    $region90: #{tpu_custom_call.1} parent=1 // pred_check
      _
    $region91: #{tpu_custom_call.1} parent=1 // pred_check_branch
      %179 = sbr.rel (0) target = $region93
    $region92: #{tpu_custom_call.1} parent=1 // pred_region
      %180 = dma.done [#allocation15], 16384
    $region93: #{tpu_custom_call.1} parent=1 // pred_fallthru
      _
    // Predicated region
    $region94: #{tpu_custom_call.1} parent=1 // pred_check
      _
    $region95: #{tpu_custom_call.1} parent=1 // pred_check_branch
      %182 = sbr.rel (0) target = $region97
    $region96: #{tpu_custom_call.1} parent=1 // pred_region
      %183 = dma.done [#allocation15], 16384
    $region97: #{tpu_custom_call.1} parent=1 // pred_fallthru
      _
    // Predicated region
    $region98: #{tpu_custom_call.1} parent=1 // pred_check
      _
    $region99: #{tpu_custom_call.1} parent=1 // pred_check_branch
      %185 = sbr.rel (0) target = $region101
    $region100: #{tpu_custom_call.1} parent=1 // pred_region
      %186 = dma.done [#allocation18], 16384
    $region101: #{tpu_custom_call.1} parent=1 // pred_fallthru
      _
    // Predicated region
    $region102: #{tpu_custom_call.1} parent=1 // pred_check
      _
    $region103: #{tpu_custom_call.1} parent=1 // pred_check_branch
      %188 = sbr.rel (0) target = $region105
    $region104: #{tpu_custom_call.1} parent=1 // pred_region
      %189 = dma.done [#allocation18], 16384
    $region105: #{tpu_custom_call.1} parent=1 // pred_fallthru
      _
    // Predicated region
    $region106: #{tpu_custom_call.1} parent=1 // pred_check
      _
    $region107: #{tpu_custom_call.1} parent=1 // pred_check_branch
      %191 = sbr.rel (0) target = $region109
    $region108: #{tpu_custom_call.1} parent=1 // pred_region
      %192 = dma.done [#allocation21], 16384
    $region109: #{tpu_custom_call.1} parent=1 // pred_fallthru
      _
    %v194 = vld [vmem:[%s2] sm:$0x3]
    %v195 = vld [vmem:[#allocation5] sm:$0x3]
    %v196 = vsub.f32 %v194, %v195
    %v197 = vld [vmem:[#allocation8] sm:$0x3]
    %v198 = vrcp.pop %v197
    %v199 = vmul.f32 %v196, %v198
    %s200 = sld [smem:[#allocation3]]
    %s201 = sld [smem:[#allocation4]]
    %v202 = vlaneseq
    %v203 = vand.u32 %v202, 127
    %v204 = vstv %s200
    %vm205 = vcmp.eq.s32.totalorder %v203, %v204
    %v206 = vsel %vm205, 1, 0
    %v207 = vcvt.s32.f32 %v206
    %v208 = vpack.c.bf16 %v207, %v207
    %v209 = vstv %s201
    %vm210 = vcmp.eq.s32.totalorder %v203, %v209
    %v211 = vsel %vm210, 1, 0
    %v212 = vcvt.s32.f32 %v211
    %v213 = vpack.c.bf16 %v212, %v212
    %v215 = vlaneseq
    %v216 = vshrl.u32 %v215, 7
    %v217 = vsub.s32 0, %v216
    %v218 = vrot.slane %v199, %v217
    %v219 = vlaneseq
    %v220 = vshrl.u32 %v219, 7
    %v221 = vsub.s32 1, %v220
    %v222 = vrot.slane %v199, %v221
    %v225 = vpack.c.bf16 %v218, %v218
    %v226 = vpack.c.bf16 %v222, %v222
    %v227 = vld [vmem:[#allocation10] sm:$0xff]
    %v228 = vld [vmem:[#allocation10 + $0x8] sm:$0xff]
    %v229 = vld [vmem:[#allocation10 + $0x10] sm:$0xff]
    %v230 = vld [vmem:[#allocation10 + $0x18] sm:$0xff]
    %v231 = vld [vmem:[#allocation10 + $0x20] sm:$0xff]
    %v232 = vld [vmem:[#allocation10 + $0x28] sm:$0xff]
    %v233 = vld [vmem:[#allocation10 + $0x30] sm:$0xff]
    %v234 = vld [vmem:[#allocation10 + $0x38] sm:$0xff]
    %v235 = vld [vmem:[#allocation10 + $0x40] sm:$0xff]
    %v236 = vld [vmem:[#allocation10 + $0x48] sm:$0xff]
    %v237 = vld [vmem:[#allocation10 + $0x50] sm:$0xff]
    %v238 = vld [vmem:[#allocation10 + $0x58] sm:$0xff]
    %v239 = vld [vmem:[#allocation10 + $0x60] sm:$0xff]
    %v240 = vld [vmem:[#allocation10 + $0x68] sm:$0xff]
    %v241 = vld [vmem:[#allocation10 + $0x70] sm:$0xff]
    %v242 = vld [vmem:[#allocation10 + $0x78] sm:$0xff]
    %v243 = vld [vmem:[#allocation10 + $0x80] sm:$0xff]
    %v244 = vld [vmem:[#allocation10 + $0x88] sm:$0xff]
    %v245 = vld [vmem:[#allocation10 + $0x90] sm:$0xff]
    %v246 = vld [vmem:[#allocation10 + $0x98] sm:$0xff]
    %v247 = vld [vmem:[#allocation10 + $0xa0] sm:$0xff]
    %v248 = vld [vmem:[#allocation10 + $0xa8] sm:$0xff]
    %v249 = vld [vmem:[#allocation10 + $0xb0] sm:$0xff]
    %v250 = vld [vmem:[#allocation10 + $0xb8] sm:$0xff]
    %v251 = vld [vmem:[#allocation10 + $0xc0] sm:$0xff]
    %v252 = vld [vmem:[#allocation10 + $0xc8] sm:$0xff]
    %v253 = vld [vmem:[#allocation10 + $0xd0] sm:$0xff]
    %v254 = vld [vmem:[#allocation10 + $0xd8] sm:$0xff]
    %v255 = vld [vmem:[#allocation10 + $0xe0] sm:$0xff]
    %v256 = vld [vmem:[#allocation10 + $0xe8] sm:$0xff]
    %v257 = vld [vmem:[#allocation10 + $0xf0] sm:$0xff]
    %v258 = vld [vmem:[#allocation10 + $0xf8] sm:$0xff]
    %v259 = vld [vmem:[#allocation10 + $0x100] sm:$0xff]
    %v260 = vld [vmem:[#allocation10 + $0x108] sm:$0xff]
    %v261 = vld [vmem:[#allocation10 + $0x110] sm:$0x33]
    %v262 = vld [vmem:[#allocation10 + $0x118] sm:$0x33]
    %v263 = vld [vmem:[#allocation11] sm:$0xff]
    %v264 = vld [vmem:[#allocation11 + $0x8] sm:$0xff]
    %v265 = vld [vmem:[#allocation11 + $0x10] sm:$0x33]
    %v266 = vld [vmem:[#allocation11 + $0x18] sm:$0x33]
    %v271 = vunpack.c.l.b16 %v263
    %v272 = vunpack.c.h.b16 %v263
    %v273 = vunpack.c.l.b16 %v264
    %v274 = vunpack.c.h.b16 %v264
    %v275 = vunpack.c.l.b16 %v265
    %v276 = vunpack.c.h.b16 %v265
    %v277 = vunpack.c.l.b16 %v266
    %v278 = vunpack.c.h.b16 %v266
    %v279 = vpack.c.b16 %v275, %v271
    %v280 = vpack.c.b16 %v276, %v272
    %v281 = vpack.c.b16 %v277, %v273
    %v282 = vpack.c.b16 %v278, %v274
    %vm283 = vcmask 97280
    %v285 = vsel %vm283, %v208, 0
    %vm287 = vcmask 1045504
    %v289 = vsel %vm287, %v279, 0
    %v292 = vsel %vm287, %v280, 0
    %v295 = vsel %vm287, %v281, 0
    %v298 = vsel %vm287, %v282, 0
    %300 = vmatprep.subr.bf16.mxu0 %v292
    %301 = vmatpush1.bf16.msra.mxu0 %v289
    %302 = vmatprep.subr.bf16.mxu0 0
    %303 = vmatpush1.bf16.msra.mxu0 0
    %304 = vmatprep.subr.bf16.mxu0 0
    %305 = vmatpush1.bf16.msra.mxu0 0
    %306 = vmatprep.subr.bf16.mxu0 0
    %307 = vmatpush1.bf16.msra.mxu0 0
    %308 = vmatprep.subr.bf16.mxu0 0
    %309 = vmatpush1.bf16.msra.mxu0 0
    %310 = vmatprep.subr.bf16.mxu0 0
    %311 = vmatpush1.bf16.msra.mxu0 0
    %312 = vmatprep.subr.bf16.mxu0 0
    %313 = vmatpush1.bf16.msra.mxu0 0
    %314 = vmatprep.subr.bf16.mxu0 0
    %315 = vmatpush1.bf16.msra.mxu0 0
    %316 = vmatprep.subr.bf16.mxu0 0
    %317 = vmatpush1.bf16.msra.mxu0 0
    %318 = vmatprep.subr.bf16.mxu0 0
    %319 = vmatpush1.bf16.msra.mxu0 0
    %320 = vmatprep.subr.bf16.mxu0 0
    %321 = vmatpush1.bf16.msra.mxu0 0
    %322 = vmatprep.subr.bf16.mxu0 0
    %323 = vmatpush1.bf16.msra.mxu0 0
    %324 = vmatprep.subr.bf16.mxu0 0
    %325 = vmatpush1.bf16.msra.mxu0 0
    %326 = vmatprep.subr.bf16.mxu0 0
    %327 = vmatpush1.bf16.msra.mxu0 0
    %328 = vmatprep.subr.bf16.mxu0 0
    %329 = vmatpush1.bf16.msra.mxu0 0
    %330 = vmatprep.subr.bf16.mxu0 0
    %331 = vmatpush1.bf16.msra.mxu0 0
    %332 = vmatprep.mubr.bf16.mxu0 0
    %333 = vmatmul.mubr.bf16.gmra.mrb[0].mxu0 %v285
    %v334 = vpop.f32.mrb[0].mxu0
    %v335 = vadd.f32 0.0, %v334
    %v336 = vpop.f32.mrb[0].mxu0
    %v337 = vadd.f32 0.0, %v336
    %v338 = vpop.f32.mrb[0].mxu0
    %v339 = vpop.f32.mrb[0].mxu0
    %340 = vdwg.mxu0
    %341 = vmatprep.subr.bf16.mxu0 %v298
    %342 = vmatpush1.bf16.msra.mxu0 %v295
    %343 = vmatprep.subr.bf16.mxu0 0
    %344 = vmatpush1.bf16.msra.mxu0 0
    %345 = vmatprep.subr.bf16.mxu0 0
    %346 = vmatpush1.bf16.msra.mxu0 0
    %347 = vmatprep.subr.bf16.mxu0 0
    %348 = vmatpush1.bf16.msra.mxu0 0
    %349 = vmatprep.subr.bf16.mxu0 0
    %350 = vmatpush1.bf16.msra.mxu0 0
    %351 = vmatprep.subr.bf16.mxu0 0
    %352 = vmatpush1.bf16.msra.mxu0 0
    %353 = vmatprep.subr.bf16.mxu0 0
    %354 = vmatpush1.bf16.msra.mxu0 0
    %355 = vmatprep.subr.bf16.mxu0 0
    %356 = vmatpush1.bf16.msra.mxu0 0
    %357 = vmatprep.subr.bf16.mxu0 0
    %358 = vmatpush1.bf16.msra.mxu0 0
    %359 = vmatprep.subr.bf16.mxu0 0
    %360 = vmatpush1.bf16.msra.mxu0 0
    %361 = vmatprep.subr.bf16.mxu0 0
    %362 = vmatpush1.bf16.msra.mxu0 0
    %363 = vmatprep.subr.bf16.mxu0 0
    %364 = vmatpush1.bf16.msra.mxu0 0
    %365 = vmatprep.subr.bf16.mxu0 0
    %366 = vmatpush1.bf16.msra.mxu0 0
    %367 = vmatprep.subr.bf16.mxu0 0
    %368 = vmatpush1.bf16.msra.mxu0 0
    %369 = vmatprep.subr.bf16.mxu0 0
    %370 = vmatpush1.bf16.msra.mxu0 0
    %371 = vmatprep.subr.bf16.mxu0 0
    %372 = vmatpush1.bf16.msra.mxu0 0
    %373 = vmatprep.mubr.bf16.mxu0 0
    %374 = vmatmul.mubr.bf16.gmra.mrb[0].mxu0 %v285
    %v375 = vpop.f32.mrb[0].mxu0
    %v376 = vadd.f32 0.0, %v375
    %v377 = vpop.f32.mrb[0].mxu0
    %v378 = vadd.f32 0.0, %v377
    %v379 = vpop.f32.mrb[0].mxu0
    %v380 = vpop.f32.mrb[0].mxu0
    %381 = vdwg.mxu0
    %v418 = vunpack.c.l.b16 %v227
    %v419 = vunpack.c.h.b16 %v227
    %v420 = vunpack.c.l.b16 %v228
    %v421 = vunpack.c.h.b16 %v228
    %v422 = vunpack.c.l.b16 %v229
    %v423 = vunpack.c.h.b16 %v229
    %v424 = vunpack.c.l.b16 %v230
    %v425 = vunpack.c.h.b16 %v230
    %v426 = vunpack.c.l.b16 %v231
    %v427 = vunpack.c.h.b16 %v231
    %v428 = vunpack.c.l.b16 %v232
    %v429 = vunpack.c.h.b16 %v232
    %v430 = vunpack.c.l.b16 %v233
    %v431 = vunpack.c.h.b16 %v233
    %v432 = vunpack.c.l.b16 %v234
    %v433 = vunpack.c.h.b16 %v234
    %v434 = vunpack.c.l.b16 %v235
    %v435 = vunpack.c.h.b16 %v235
    %v436 = vunpack.c.l.b16 %v236
    %v437 = vunpack.c.h.b16 %v236
    %v438 = vunpack.c.l.b16 %v237
    %v439 = vunpack.c.h.b16 %v237
    %v440 = vunpack.c.l.b16 %v238
    %v441 = vunpack.c.h.b16 %v238
    %v442 = vunpack.c.l.b16 %v239
    %v443 = vunpack.c.h.b16 %v239
    %v444 = vunpack.c.l.b16 %v240
    %v445 = vunpack.c.h.b16 %v240
    %v446 = vunpack.c.l.b16 %v241
    %v447 = vunpack.c.h.b16 %v241
    %v448 = vunpack.c.l.b16 %v242
    %v449 = vunpack.c.h.b16 %v242
    %v450 = vunpack.c.l.b16 %v243
    %v451 = vunpack.c.h.b16 %v243
    %v452 = vunpack.c.l.b16 %v244
    %v453 = vunpack.c.h.b16 %v244
    %v454 = vunpack.c.l.b16 %v245
    %v455 = vunpack.c.h.b16 %v245
    %v456 = vunpack.c.l.b16 %v246
    %v457 = vunpack.c.h.b16 %v246
    %v458 = vunpack.c.l.b16 %v247
    %v459 = vunpack.c.h.b16 %v247
    %v460 = vunpack.c.l.b16 %v248
    %v461 = vunpack.c.h.b16 %v248
    %v462 = vunpack.c.l.b16 %v249
    %v463 = vunpack.c.h.b16 %v249
    %v464 = vunpack.c.l.b16 %v250
    %v465 = vunpack.c.h.b16 %v250
    %v466 = vunpack.c.l.b16 %v251
    %v467 = vunpack.c.h.b16 %v251
    %v468 = vunpack.c.l.b16 %v252
    %v469 = vunpack.c.h.b16 %v252
    %v470 = vunpack.c.l.b16 %v253
    %v471 = vunpack.c.h.b16 %v253
    %v472 = vunpack.c.l.b16 %v254
    %v473 = vunpack.c.h.b16 %v254
    %v474 = vunpack.c.l.b16 %v255
    %v475 = vunpack.c.h.b16 %v255
    %v476 = vunpack.c.l.b16 %v256
    %v477 = vunpack.c.h.b16 %v256
    %v478 = vunpack.c.l.b16 %v257
    %v479 = vunpack.c.h.b16 %v257
    %v480 = vunpack.c.l.b16 %v258
    %v481 = vunpack.c.h.b16 %v258
    %v482 = vunpack.c.l.b16 %v259
    %v483 = vunpack.c.h.b16 %v259
    %v484 = vunpack.c.l.b16 %v260
    %v485 = vunpack.c.h.b16 %v260
    %v486 = vunpack.c.l.b16 %v261
    %v487 = vunpack.c.h.b16 %v261
    %v488 = vunpack.c.l.b16 %v262
    %v489 = vunpack.c.h.b16 %v262
    %v490 = vpack.c.b16 %v422, %v418
    %v491 = vpack.c.b16 %v423, %v419
    %v492 = vpack.c.b16 %v424, %v420
    %v493 = vpack.c.b16 %v425, %v421
    %v494 = vpack.c.b16 %v430, %v426
    %v495 = vpack.c.b16 %v431, %v427
    %v496 = vpack.c.b16 %v432, %v428
    %v497 = vpack.c.b16 %v433, %v429
    %v498 = vpack.c.b16 %v438, %v434
    %v499 = vpack.c.b16 %v439, %v435
    %v500 = vpack.c.b16 %v440, %v436
    %v501 = vpack.c.b16 %v441, %v437
    %v502 = vpack.c.b16 %v446, %v442
    %v503 = vpack.c.b16 %v447, %v443
    %v504 = vpack.c.b16 %v448, %v444
    %v505 = vpack.c.b16 %v449, %v445
    %v506 = vpack.c.b16 %v454, %v450
    %v507 = vpack.c.b16 %v455, %v451
    %v508 = vpack.c.b16 %v456, %v452
    %v509 = vpack.c.b16 %v457, %v453
    %v510 = vpack.c.b16 %v462, %v458
    %v511 = vpack.c.b16 %v463, %v459
    %v512 = vpack.c.b16 %v464, %v460
    %v513 = vpack.c.b16 %v465, %v461
    %v514 = vpack.c.b16 %v470, %v466
    %v515 = vpack.c.b16 %v471, %v467
    %v516 = vpack.c.b16 %v472, %v468
    %v517 = vpack.c.b16 %v473, %v469
    %v518 = vpack.c.b16 %v478, %v474
    %v519 = vpack.c.b16 %v479, %v475
    %v520 = vpack.c.b16 %v480, %v476
    %v521 = vpack.c.b16 %v481, %v477
    %v522 = vpack.c.b16 %v486, %v482
    %v523 = vpack.c.b16 %v487, %v483
    %v524 = vpack.c.b16 %v488, %v484
    %v525 = vpack.c.b16 %v489, %v485
    %vm558 = vcmask 89088
    %v560 = vsel %vm558, %v226, 0
    %vm562 = vcmask 1044480
    %v563 = vsel %vm562, 4294967295, 65535
    %v564 = vsel %vm287, %v563, 0
    %v566 = vand.u32 %v522, %v564
    %v569 = vand.u32 %v523, %v564
    %v572 = vand.u32 %v524, %v564
    %v575 = vand.u32 %v525, %v564
    %577 = vmatprep.subr.bf16.mxu0 %v491
    %578 = vmatpush1.bf16.msra.mxu0 %v490
    %579 = vmatprep.subr.bf16.mxu0 %v495
    %580 = vmatpush1.bf16.msra.mxu0 %v494
    %581 = vmatprep.subr.bf16.mxu0 %v499
    %582 = vmatpush1.bf16.msra.mxu0 %v498
    %583 = vmatprep.subr.bf16.mxu0 %v503
    %584 = vmatpush1.bf16.msra.mxu0 %v502
    %585 = vmatprep.subr.bf16.mxu0 %v507
    %586 = vmatpush1.bf16.msra.mxu0 %v506
    %587 = vmatprep.subr.bf16.mxu0 %v511
    %588 = vmatpush1.bf16.msra.mxu0 %v510
    %589 = vmatprep.subr.bf16.mxu0 %v515
    %590 = vmatpush1.bf16.msra.mxu0 %v514
    %591 = vmatprep.subr.bf16.mxu0 %v519
    %592 = vmatpush1.bf16.msra.mxu0 %v518
    %593 = vmatprep.subr.bf16.mxu0 %v569
    %594 = vmatpush1.bf16.msra.mxu0 %v566
    %595 = vmatprep.subr.bf16.mxu0 0
    %596 = vmatpush1.bf16.msra.mxu0 0
    %597 = vmatprep.subr.bf16.mxu0 0
    %598 = vmatpush1.bf16.msra.mxu0 0
    %599 = vmatprep.subr.bf16.mxu0 0
    %600 = vmatpush1.bf16.msra.mxu0 0
    %601 = vmatprep.subr.bf16.mxu0 0
    %602 = vmatpush1.bf16.msra.mxu0 0
    %603 = vmatprep.subr.bf16.mxu0 0
    %604 = vmatpush1.bf16.msra.mxu0 0
    %605 = vmatprep.subr.bf16.mxu0 0
    %606 = vmatpush1.bf16.msra.mxu0 0
    %607 = vmatprep.subr.bf16.mxu0 0
    %608 = vmatpush1.bf16.msra.mxu0 0
    %609 = vmatprep.mubr.bf16.mxu0 %v560
    %610 = vmatmul.mubr.bf16.gmra.mrb[0].mxu0 %v225
    %v611 = vpop.f32.mrb[0].mxu0
    %v612 = vadd.f32 %v335, %v611
    %v613 = vpop.f32.mrb[0].mxu0
    %v614 = vadd.f32 %v337, %v613
    %v615 = vpop.f32.mrb[0].mxu0
    %v616 = vpop.f32.mrb[0].mxu0
    %617 = vdwg.mxu0
    %618 = vmatprep.subr.bf16.mxu0 %v493
    %619 = vmatpush1.bf16.msra.mxu0 %v492
    %620 = vmatprep.subr.bf16.mxu0 %v497
    %621 = vmatpush1.bf16.msra.mxu0 %v496
    %622 = vmatprep.subr.bf16.mxu0 %v501
    %623 = vmatpush1.bf16.msra.mxu0 %v500
    %624 = vmatprep.subr.bf16.mxu0 %v505
    %625 = vmatpush1.bf16.msra.mxu0 %v504
    %626 = vmatprep.subr.bf16.mxu0 %v509
    %627 = vmatpush1.bf16.msra.mxu0 %v508
    %628 = vmatprep.subr.bf16.mxu0 %v513
    %629 = vmatpush1.bf16.msra.mxu0 %v512
    %630 = vmatprep.subr.bf16.mxu0 %v517
    %631 = vmatpush1.bf16.msra.mxu0 %v516
    %632 = vmatprep.subr.bf16.mxu0 %v521
    %633 = vmatpush1.bf16.msra.mxu0 %v520
    %634 = vmatprep.subr.bf16.mxu0 %v575
    %635 = vmatpush1.bf16.msra.mxu0 %v572
    %636 = vmatprep.subr.bf16.mxu0 0
    %637 = vmatpush1.bf16.msra.mxu0 0
    %638 = vmatprep.subr.bf16.mxu0 0
    %639 = vmatpush1.bf16.msra.mxu0 0
    %640 = vmatprep.subr.bf16.mxu0 0
    %641 = vmatpush1.bf16.msra.mxu0 0
    %642 = vmatprep.subr.bf16.mxu0 0
    %643 = vmatpush1.bf16.msra.mxu0 0
    %644 = vmatprep.subr.bf16.mxu0 0
    %645 = vmatpush1.bf16.msra.mxu0 0
    %646 = vmatprep.subr.bf16.mxu0 0
    %647 = vmatpush1.bf16.msra.mxu0 0
    %648 = vmatprep.subr.bf16.mxu0 0
    %649 = vmatpush1.bf16.msra.mxu0 0
    %650 = vmatprep.mubr.bf16.mxu0 %v560
    %651 = vmatmul.mubr.bf16.gmra.mrb[0].mxu0 %v225
    %v652 = vpop.f32.mrb[0].mxu0
    %v653 = vadd.f32 %v376, %v652
    %v654 = vpop.f32.mrb[0].mxu0
    %v655 = vadd.f32 %v378, %v654
    %v656 = vpop.f32.mrb[0].mxu0
    %v657 = vpop.f32.mrb[0].mxu0
    %658 = vdwg.mxu0
    %v659 = vld [vmem:[#allocation13] sm:$0xff]
    %v660 = vld [vmem:[#allocation13 + $0x8] sm:$0xff]
    %v661 = vld [vmem:[#allocation13 + $0x10] sm:$0xff]
    %v662 = vld [vmem:[#allocation13 + $0x18] sm:$0xff]
    %v663 = vld [vmem:[#allocation13 + $0x20] sm:$0xff]
    %v664 = vld [vmem:[#allocation13 + $0x28] sm:$0xff]
    %v671 = vunpack.c.l.b16 %v659
    %v672 = vunpack.c.h.b16 %v659
    %v673 = vunpack.c.l.b16 %v660
    %v674 = vunpack.c.h.b16 %v660
    %v675 = vunpack.c.l.b16 %v661
    %v676 = vunpack.c.h.b16 %v661
    %v677 = vunpack.c.l.b16 %v662
    %v678 = vunpack.c.h.b16 %v662
    %v679 = vunpack.c.l.b16 %v663
    %v680 = vunpack.c.h.b16 %v663
    %v681 = vunpack.c.l.b16 %v664
    %v682 = vunpack.c.h.b16 %v664
    %v683 = vpack.c.b16 %v675, %v671
    %v684 = vpack.c.b16 %v676, %v672
    %v685 = vpack.c.b16 %v677, %v673
    %v686 = vpack.c.b16 %v678, %v674
    %v687 = vpack.c.b16 %v679, %v679
    %v688 = vpack.c.b16 %v680, %v680
    %v689 = vpack.c.b16 %v681, %v681
    %v690 = vpack.c.b16 %v682, %v682
    %vm695 = vcmask 195584
    %v697 = vsel %vm695, %v213, 0
    %vm699 = vcmask 1043456
    %v701 = vsel %vm699, %v687, 0
    %v704 = vsel %vm699, %v688, 0
    %v707 = vsel %vm699, %v689, 0
    %v710 = vsel %vm699, %v690, 0
    %712 = vmatprep.subr.bf16.mxu0 %v684
    %713 = vmatpush1.bf16.msra.mxu0 %v683
    %714 = vmatprep.subr.bf16.mxu0 %v704
    %715 = vmatpush1.bf16.msra.mxu0 %v701
    %716 = vmatprep.subr.bf16.mxu0 0
    %717 = vmatpush1.bf16.msra.mxu0 0
    %718 = vmatprep.subr.bf16.mxu0 0
    %719 = vmatpush1.bf16.msra.mxu0 0
    %720 = vmatprep.subr.bf16.mxu0 0
    %721 = vmatpush1.bf16.msra.mxu0 0
    %722 = vmatprep.subr.bf16.mxu0 0
    %723 = vmatpush1.bf16.msra.mxu0 0
    %724 = vmatprep.subr.bf16.mxu0 0
    %725 = vmatpush1.bf16.msra.mxu0 0
    %726 = vmatprep.subr.bf16.mxu0 0
    %727 = vmatpush1.bf16.msra.mxu0 0
    %728 = vmatprep.subr.bf16.mxu0 0
    %729 = vmatpush1.bf16.msra.mxu0 0
    %730 = vmatprep.subr.bf16.mxu0 0
    %731 = vmatpush1.bf16.msra.mxu0 0
    %732 = vmatprep.subr.bf16.mxu0 0
    %733 = vmatpush1.bf16.msra.mxu0 0
    %734 = vmatprep.subr.bf16.mxu0 0
    %735 = vmatpush1.bf16.msra.mxu0 0
    %736 = vmatprep.subr.bf16.mxu0 0
    %737 = vmatpush1.bf16.msra.mxu0 0
    %738 = vmatprep.subr.bf16.mxu0 0
    %739 = vmatpush1.bf16.msra.mxu0 0
    %740 = vmatprep.subr.bf16.mxu0 0
    %741 = vmatpush1.bf16.msra.mxu0 0
    %742 = vmatprep.subr.bf16.mxu0 0
    %743 = vmatpush1.bf16.msra.mxu0 0
    %744 = vmatprep.mubr.bf16.mxu0 0
    %745 = vmatmul.mubr.bf16.gmra.mrb[0].mxu0 %v697
    %v746 = vpop.f32.mrb[0].mxu0
    %v747 = vadd.f32 0.0, %v746
    %v748 = vpop.f32.mrb[0].mxu0
    %v749 = vadd.f32 0.0, %v748
    %v750 = vpop.f32.mrb[0].mxu0
    %v751 = vpop.f32.mrb[0].mxu0
    %752 = vdwg.mxu0
    %753 = vmatprep.subr.bf16.mxu0 %v686
    %754 = vmatpush1.bf16.msra.mxu0 %v685
    %755 = vmatprep.subr.bf16.mxu0 %v710
    %756 = vmatpush1.bf16.msra.mxu0 %v707
    %757 = vmatprep.subr.bf16.mxu0 0
    %758 = vmatpush1.bf16.msra.mxu0 0
    %759 = vmatprep.subr.bf16.mxu0 0
    %760 = vmatpush1.bf16.msra.mxu0 0
    %761 = vmatprep.subr.bf16.mxu0 0
    %762 = vmatpush1.bf16.msra.mxu0 0
    %763 = vmatprep.subr.bf16.mxu0 0
    %764 = vmatpush1.bf16.msra.mxu0 0
    %765 = vmatprep.subr.bf16.mxu0 0
    %766 = vmatpush1.bf16.msra.mxu0 0
    %767 = vmatprep.subr.bf16.mxu0 0
    %768 = vmatpush1.bf16.msra.mxu0 0
    %769 = vmatprep.subr.bf16.mxu0 0
    %770 = vmatpush1.bf16.msra.mxu0 0
    %771 = vmatprep.subr.bf16.mxu0 0
    %772 = vmatpush1.bf16.msra.mxu0 0
    %773 = vmatprep.subr.bf16.mxu0 0
    %774 = vmatpush1.bf16.msra.mxu0 0
    %775 = vmatprep.subr.bf16.mxu0 0
    %776 = vmatpush1.bf16.msra.mxu0 0
    %777 = vmatprep.subr.bf16.mxu0 0
    %778 = vmatpush1.bf16.msra.mxu0 0
    %779 = vmatprep.subr.bf16.mxu0 0
    %780 = vmatpush1.bf16.msra.mxu0 0
    %781 = vmatprep.subr.bf16.mxu0 0
    %782 = vmatpush1.bf16.msra.mxu0 0
    %783 = vmatprep.subr.bf16.mxu0 0
    %784 = vmatpush1.bf16.msra.mxu0 0
    %785 = vmatprep.mubr.bf16.mxu0 0
    %786 = vmatmul.mubr.bf16.gmra.mrb[0].mxu0 %v697
    %v787 = vpop.f32.mrb[0].mxu0
    %v788 = vadd.f32 0.0, %v787
    %v789 = vpop.f32.mrb[0].mxu0
    %v790 = vadd.f32 0.0, %v789
    %v791 = vpop.f32.mrb[0].mxu0
    %v792 = vpop.f32.mrb[0].mxu0
    %793 = vdwg.mxu0
    %v794 = vadd.f32 %v612, %v747
    %v795 = vadd.f32 %v614, %v749
    %v796 = vadd.f32 %v653, %v788
    %v797 = vadd.f32 %v655, %v790
    %v798 = vld [vmem:[%s8] sm:$0xf]
    %v800 = vlaneseq
    %v801 = vshrl.u32 %v800, 7
    %v802 = vsub.s32 0, %v801
    %v803 = vrot.slane %v798, %v802
    %v804 = vlaneseq
    %v805 = vshrl.u32 %v804, 7
    %v806 = vsub.s32 1, %v805
    %v807 = vrot.slane %v798, %v806
    %v808 = vlaneseq
    %v809 = vshrl.u32 %v808, 7
    %v810 = vsub.s32 2, %v809
    %v811 = vrot.slane %v798, %v810
    %v812 = vlaneseq
    %v813 = vshrl.u32 %v812, 7
    %v814 = vsub.s32 3, %v813
    %v815 = vrot.slane %v798, %v814
    %v820 = vadd.f32 %v794, %v803
    %v821 = vadd.f32 %v795, %v807
    %v822 = vadd.f32 %v796, %v811
    %v823 = vadd.f32 %v797, %v815
    %v824 = vmax.f32 %v820, 0.0
    %v825 = vmax.f32 %v821, 0.0
    %v826 = vmax.f32 %v822, 0.0
    %v827 = vmax.f32 %v823, 0.0
    %v828 = vpack.c.bf16 %v824, %v824
    %v829 = vpack.c.bf16 %v825, %v825
    %v830 = vpack.c.bf16 %v826, %v826
    %v831 = vpack.c.bf16 %v827, %v827
    %v832 = vld [vmem:[#allocation14] sm:$0xff]
    %v833 = vld [vmem:[#allocation14 + $0x8] sm:$0xff]
    %v834 = vld [vmem:[#allocation14 + $0x10] sm:$0xff]
    %v835 = vld [vmem:[#allocation14 + $0x18] sm:$0xff]
    %v836 = vld [vmem:[#allocation14 + $0x20] sm:$0xff]
    %v837 = vld [vmem:[#allocation14 + $0x28] sm:$0xff]
    %v838 = vld [vmem:[#allocation14 + $0x30] sm:$0xff]
    %v839 = vld [vmem:[#allocation14 + $0x38] sm:$0xff]
    %v840 = vld [vmem:[#allocation14 + $0x40] sm:$0xff]
    %v841 = vld [vmem:[#allocation14 + $0x48] sm:$0xff]
    %v842 = vld [vmem:[#allocation14 + $0x50] sm:$0xff]
    %v843 = vld [vmem:[#allocation14 + $0x58] sm:$0xff]
    %v844 = vld [vmem:[#allocation14 + $0x60] sm:$0xff]
    %v845 = vld [vmem:[#allocation14 + $0x68] sm:$0xff]
    %v846 = vld [vmem:[#allocation14 + $0x70] sm:$0xff]
    %v847 = vld [vmem:[#allocation14 + $0x78] sm:$0xff]
    %v848 = vld [vmem:[#allocation14 + $0x80] sm:$0xff]
    %v849 = vld [vmem:[#allocation14 + $0x88] sm:$0xff]
    %v850 = vld [vmem:[#allocation14 + $0x90] sm:$0xff]
    %v851 = vld [vmem:[#allocation14 + $0x98] sm:$0xff]
    %v852 = vld [vmem:[#allocation14 + $0xa0] sm:$0xff]
    %v853 = vld [vmem:[#allocation14 + $0xa8] sm:$0xff]
    %v854 = vld [vmem:[#allocation14 + $0xb0] sm:$0xff]
    %v855 = vld [vmem:[#allocation14 + $0xb8] sm:$0xff]
    %v856 = vld [vmem:[#allocation14 + $0xc0] sm:$0xff]
    %v857 = vld [vmem:[#allocation14 + $0xc8] sm:$0xff]
    %v858 = vld [vmem:[#allocation14 + $0xd0] sm:$0xff]
    %v859 = vld [vmem:[#allocation14 + $0xd8] sm:$0xff]
    %v860 = vld [vmem:[#allocation14 + $0xe0] sm:$0xff]
    %v861 = vld [vmem:[#allocation14 + $0xe8] sm:$0xff]
    %v862 = vld [vmem:[#allocation14 + $0xf0] sm:$0xff]
    %v863 = vld [vmem:[#allocation14 + $0xf8] sm:$0xff]
    %v864 = vld [vmem:[#allocation14 + $0x100] sm:$0xff]
    %v865 = vld [vmem:[#allocation14 + $0x108] sm:$0xff]
    %v866 = vld [vmem:[#allocation14 + $0x110] sm:$0xff]
    %v867 = vld [vmem:[#allocation14 + $0x118] sm:$0xff]
    %v868 = vld [vmem:[#allocation14 + $0x120] sm:$0xff]
    %v869 = vld [vmem:[#allocation14 + $0x128] sm:$0xff]
    %v870 = vld [vmem:[#allocation14 + $0x130] sm:$0xff]
    %v871 = vld [vmem:[#allocation14 + $0x138] sm:$0xff]
    %v872 = vld [vmem:[#allocation14 + $0x140] sm:$0xff]
    %v873 = vld [vmem:[#allocation14 + $0x148] sm:$0xff]
    %v874 = vld [vmem:[#allocation14 + $0x150] sm:$0xff]
    %v875 = vld [vmem:[#allocation14 + $0x158] sm:$0xff]
    %v876 = vld [vmem:[#allocation14 + $0x160] sm:$0xff]
    %v877 = vld [vmem:[#allocation14 + $0x168] sm:$0xff]
    %v878 = vld [vmem:[#allocation14 + $0x170] sm:$0xff]
    %v879 = vld [vmem:[#allocation14 + $0x178] sm:$0xff]
    %v880 = vld [vmem:[#allocation14 + $0x180] sm:$0xff]
    %v881 = vld [vmem:[#allocation14 + $0x188] sm:$0xff]
    %v882 = vld [vmem:[#allocation14 + $0x190] sm:$0xff]
    %v883 = vld [vmem:[#allocation14 + $0x198] sm:$0xff]
    %v884 = vld [vmem:[#allocation14 + $0x1a0] sm:$0xff]
    %v885 = vld [vmem:[#allocation14 + $0x1a8] sm:$0xff]
    %v886 = vld [vmem:[#allocation14 + $0x1b0] sm:$0xff]
    %v887 = vld [vmem:[#allocation14 + $0x1b8] sm:$0xff]
    %v888 = vld [vmem:[#allocation14 + $0x1c0] sm:$0xff]
    %v889 = vld [vmem:[#allocation14 + $0x1c8] sm:$0xff]
    %v890 = vld [vmem:[#allocation14 + $0x1d0] sm:$0xff]
    %v891 = vld [vmem:[#allocation14 + $0x1d8] sm:$0xff]
    %v892 = vld [vmem:[#allocation14 + $0x1e0] sm:$0xff]
    %v893 = vld [vmem:[#allocation14 + $0x1e8] sm:$0xff]
    %v894 = vld [vmem:[#allocation14 + $0x1f0] sm:$0xff]
    %v895 = vld [vmem:[#allocation14 + $0x1f8] sm:$0xff]
    %v896 = vld [vmem:[#allocation14 + $0x200] sm:$0xff]
    %v897 = vld [vmem:[#allocation14 + $0x208] sm:$0xff]
    %v898 = vld [vmem:[#allocation14 + $0x210] sm:$0xff]
    %v899 = vld [vmem:[#allocation14 + $0x218] sm:$0xff]
    %v900 = vld [vmem:[#allocation14 + $0x220] sm:$0xff]
    %v901 = vld [vmem:[#allocation14 + $0x228] sm:$0xff]
    %v902 = vld [vmem:[#allocation14 + $0x230] sm:$0xff]
    %v903 = vld [vmem:[#allocation14 + $0x238] sm:$0xff]
    %v904 = vld [vmem:[#allocation14 + $0x240] sm:$0xff]
    %v905 = vld [vmem:[#allocation14 + $0x248] sm:$0xff]
    %v906 = vld [vmem:[#allocation14 + $0x250] sm:$0xff]
    %v907 = vld [vmem:[#allocation14 + $0x258] sm:$0xff]
    %v908 = vld [vmem:[#allocation14 + $0x260] sm:$0xff]
    %v909 = vld [vmem:[#allocation14 + $0x268] sm:$0xff]
    %v910 = vld [vmem:[#allocation14 + $0x270] sm:$0xff]
    %v911 = vld [vmem:[#allocation14 + $0x278] sm:$0xff]
    %v912 = vld [vmem:[#allocation14 + $0x280] sm:$0xff]
    %v913 = vld [vmem:[#allocation14 + $0x288] sm:$0xff]
    %v914 = vld [vmem:[#allocation14 + $0x290] sm:$0xff]
    %v915 = vld [vmem:[#allocation14 + $0x298] sm:$0xff]
    %v916 = vld [vmem:[#allocation14 + $0x2a0] sm:$0xff]
    %v917 = vld [vmem:[#allocation14 + $0x2a8] sm:$0xff]
    %v918 = vld [vmem:[#allocation14 + $0x2b0] sm:$0xff]
    %v919 = vld [vmem:[#allocation14 + $0x2b8] sm:$0xff]
    %v920 = vld [vmem:[#allocation14 + $0x2c0] sm:$0xff]
    %v921 = vld [vmem:[#allocation14 + $0x2c8] sm:$0xff]
    %v922 = vld [vmem:[#allocation14 + $0x2d0] sm:$0xff]
    %v923 = vld [vmem:[#allocation14 + $0x2d8] sm:$0xff]
    %v924 = vld [vmem:[#allocation14 + $0x2e0] sm:$0xff]
    %v925 = vld [vmem:[#allocation14 + $0x2e8] sm:$0xff]
    %v926 = vld [vmem:[#allocation14 + $0x2f0] sm:$0xff]
    %v927 = vld [vmem:[#allocation14 + $0x2f8] sm:$0xff]
    %v928 = vld [vmem:[#allocation14 + $0x300] sm:$0xff]
    %v929 = vld [vmem:[#allocation14 + $0x308] sm:$0xff]
    %v930 = vld [vmem:[#allocation14 + $0x310] sm:$0xff]
    %v931 = vld [vmem:[#allocation14 + $0x318] sm:$0xff]
    %v932 = vld [vmem:[#allocation14 + $0x320] sm:$0xff]
    %v933 = vld [vmem:[#allocation14 + $0x328] sm:$0xff]
    %v934 = vld [vmem:[#allocation14 + $0x330] sm:$0xff]
    %v935 = vld [vmem:[#allocation14 + $0x338] sm:$0xff]
    %v936 = vld [vmem:[#allocation14 + $0x340] sm:$0xff]
    %v937 = vld [vmem:[#allocation14 + $0x348] sm:$0xff]
    %v938 = vld [vmem:[#allocation14 + $0x350] sm:$0xff]
    %v939 = vld [vmem:[#allocation14 + $0x358] sm:$0xff]
    %v940 = vld [vmem:[#allocation14 + $0x360] sm:$0xff]
    %v941 = vld [vmem:[#allocation14 + $0x368] sm:$0xff]
    %v942 = vld [vmem:[#allocation14 + $0x370] sm:$0xff]
    %v943 = vld [vmem:[#allocation14 + $0x378] sm:$0xff]
    %v944 = vld [vmem:[#allocation14 + $0x380] sm:$0xff]
    %v945 = vld [vmem:[#allocation14 + $0x388] sm:$0xff]
    %v946 = vld [vmem:[#allocation14 + $0x390] sm:$0xff]
    %v947 = vld [vmem:[#allocation14 + $0x398] sm:$0xff]
    %v948 = vld [vmem:[#allocation14 + $0x3a0] sm:$0xff]
    %v949 = vld [vmem:[#allocation14 + $0x3a8] sm:$0xff]
    %v950 = vld [vmem:[#allocation14 + $0x3b0] sm:$0xff]
    %v951 = vld [vmem:[#allocation14 + $0x3b8] sm:$0xff]
    %v952 = vld [vmem:[#allocation14 + $0x3c0] sm:$0xff]
    %v953 = vld [vmem:[#allocation14 + $0x3c8] sm:$0xff]
    %v954 = vld [vmem:[#allocation14 + $0x3d0] sm:$0xff]
    %v955 = vld [vmem:[#allocation14 + $0x3d8] sm:$0xff]
    %v956 = vld [vmem:[#allocation14 + $0x3e0] sm:$0xff]
    %v957 = vld [vmem:[#allocation14 + $0x3e8] sm:$0xff]
    %v958 = vld [vmem:[#allocation14 + $0x3f0] sm:$0xff]
    %v959 = vld [vmem:[#allocation14 + $0x3f8] sm:$0xff]
    %v960 = vld [vmem:[%s10] sm:$0xf]
    %v1089 = vunpack.c.l.b16 %v832
    %v1090 = vunpack.c.h.b16 %v832
    %v1091 = vunpack.c.l.b16 %v833
    %v1092 = vunpack.c.h.b16 %v833
    %v1093 = vunpack.c.l.b16 %v834
    %v1094 = vunpack.c.h.b16 %v834
    %v1095 = vunpack.c.l.b16 %v835
    %v1096 = vunpack.c.h.b16 %v835
    %v1097 = vunpack.c.l.b16 %v836
    %v1098 = vunpack.c.h.b16 %v836
    %v1099 = vunpack.c.l.b16 %v837
    %v1100 = vunpack.c.h.b16 %v837
    %v1101 = vunpack.c.l.b16 %v838
    %v1102 = vunpack.c.h.b16 %v838
    %v1103 = vunpack.c.l.b16 %v839
    %v1104 = vunpack.c.h.b16 %v839
    %v1105 = vunpack.c.l.b16 %v840
    %v1106 = vunpack.c.h.b16 %v840
    %v1107 = vunpack.c.l.b16 %v841
    %v1108 = vunpack.c.h.b16 %v841
    %v1109 = vunpack.c.l.b16 %v842
    %v1110 = vunpack.c.h.b16 %v842
    %v1111 = vunpack.c.l.b16 %v843
    %v1112 = vunpack.c.h.b16 %v843
    %v1113 = vunpack.c.l.b16 %v844
    %v1114 = vunpack.c.h.b16 %v844
    %v1115 = vunpack.c.l.b16 %v845
    %v1116 = vunpack.c.h.b16 %v845
    %v1117 = vunpack.c.l.b16 %v846
    %v1118 = vunpack.c.h.b16 %v846
    %v1119 = vunpack.c.l.b16 %v847
    %v1120 = vunpack.c.h.b16 %v847
    %v1121 = vunpack.c.l.b16 %v848
    %v1122 = vunpack.c.h.b16 %v848
    %v1123 = vunpack.c.l.b16 %v849
    %v1124 = vunpack.c.h.b16 %v849
    %v1125 = vunpack.c.l.b16 %v850
    %v1126 = vunpack.c.h.b16 %v850
    %v1127 = vunpack.c.l.b16 %v851
    %v1128 = vunpack.c.h.b16 %v851
    %v1129 = vunpack.c.l.b16 %v852
    %v1130 = vunpack.c.h.b16 %v852
    %v1131 = vunpack.c.l.b16 %v853
    %v1132 = vunpack.c.h.b16 %v853
    %v1133 = vunpack.c.l.b16 %v854
    %v1134 = vunpack.c.h.b16 %v854
    %v1135 = vunpack.c.l.b16 %v855
    %v1136 = vunpack.c.h.b16 %v855
    %v1137 = vunpack.c.l.b16 %v856
    %v1138 = vunpack.c.h.b16 %v856
    %v1139 = vunpack.c.l.b16 %v857
    %v1140 = vunpack.c.h.b16 %v857
    %v1141 = vunpack.c.l.b16 %v858
    %v1142 = vunpack.c.h.b16 %v858
    %v1143 = vunpack.c.l.b16 %v859
    %v1144 = vunpack.c.h.b16 %v859
    %v1145 = vunpack.c.l.b16 %v860
    %v1146 = vunpack.c.h.b16 %v860
    %v1147 = vunpack.c.l.b16 %v861
    %v1148 = vunpack.c.h.b16 %v861
    %v1149 = vunpack.c.l.b16 %v862
    %v1150 = vunpack.c.h.b16 %v862
    %v1151 = vunpack.c.l.b16 %v863
    %v1152 = vunpack.c.h.b16 %v863
    %v1153 = vunpack.c.l.b16 %v864
    %v1154 = vunpack.c.h.b16 %v864
    %v1155 = vunpack.c.l.b16 %v865
    %v1156 = vunpack.c.h.b16 %v865
    %v1157 = vunpack.c.l.b16 %v866
    %v1158 = vunpack.c.h.b16 %v866
    %v1159 = vunpack.c.l.b16 %v867
    %v1160 = vunpack.c.h.b16 %v867
    %v1161 = vunpack.c.l.b16 %v868
    %v1162 = vunpack.c.h.b16 %v868
    %v1163 = vunpack.c.l.b16 %v869
    %v1164 = vunpack.c.h.b16 %v869
    %v1165 = vunpack.c.l.b16 %v870
    %v1166 = vunpack.c.h.b16 %v870
    %v1167 = vunpack.c.l.b16 %v871
    %v1168 = vunpack.c.h.b16 %v871
    %v1169 = vunpack.c.l.b16 %v872
    %v1170 = vunpack.c.h.b16 %v872
    %v1171 = vunpack.c.l.b16 %v873
    %v1172 = vunpack.c.h.b16 %v873
    %v1173 = vunpack.c.l.b16 %v874
    %v1174 = vunpack.c.h.b16 %v874
    %v1175 = vunpack.c.l.b16 %v875
    %v1176 = vunpack.c.h.b16 %v875
    %v1177 = vunpack.c.l.b16 %v876
    %v1178 = vunpack.c.h.b16 %v876
    %v1179 = vunpack.c.l.b16 %v877
    %v1180 = vunpack.c.h.b16 %v877
    %v1181 = vunpack.c.l.b16 %v878
    %v1182 = vunpack.c.h.b16 %v878
    %v1183 = vunpack.c.l.b16 %v879
    %v1184 = vunpack.c.h.b16 %v879
    %v1185 = vunpack.c.l.b16 %v880
    %v1186 = vunpack.c.h.b16 %v880
    %v1187 = vunpack.c.l.b16 %v881
    %v1188 = vunpack.c.h.b16 %v881
    %v1189 = vunpack.c.l.b16 %v882
    %v1190 = vunpack.c.h.b16 %v882
    %v1191 = vunpack.c.l.b16 %v883
    %v1192 = vunpack.c.h.b16 %v883
    %v1193 = vunpack.c.l.b16 %v884
    %v1194 = vunpack.c.h.b16 %v884
    %v1195 = vunpack.c.l.b16 %v885
    %v1196 = vunpack.c.h.b16 %v885
    %v1197 = vunpack.c.l.b16 %v886
    %v1198 = vunpack.c.h.b16 %v886
    %v1199 = vunpack.c.l.b16 %v887
    %v1200 = vunpack.c.h.b16 %v887
    %v1201 = vunpack.c.l.b16 %v888
    %v1202 = vunpack.c.h.b16 %v888
    %v1203 = vunpack.c.l.b16 %v889
    %v1204 = vunpack.c.h.b16 %v889
    %v1205 = vunpack.c.l.b16 %v890
    %v1206 = vunpack.c.h.b16 %v890
    %v1207 = vunpack.c.l.b16 %v891
    %v1208 = vunpack.c.h.b16 %v891
    %v1209 = vunpack.c.l.b16 %v892
    %v1210 = vunpack.c.h.b16 %v892
    %v1211 = vunpack.c.l.b16 %v893
    %v1212 = vunpack.c.h.b16 %v893
    %v1213 = vunpack.c.l.b16 %v894
    %v1214 = vunpack.c.h.b16 %v894
    %v1215 = vunpack.c.l.b16 %v895
    %v1216 = vunpack.c.h.b16 %v895
    %v1217 = vunpack.c.l.b16 %v896
    %v1218 = vunpack.c.h.b16 %v896
    %v1219 = vunpack.c.l.b16 %v897
    %v1220 = vunpack.c.h.b16 %v897
    %v1221 = vunpack.c.l.b16 %v898
    %v1222 = vunpack.c.h.b16 %v898
    %v1223 = vunpack.c.l.b16 %v899
    %v1224 = vunpack.c.h.b16 %v899
    %v1225 = vunpack.c.l.b16 %v900
    %v1226 = vunpack.c.h.b16 %v900
    %v1227 = vunpack.c.l.b16 %v901
    %v1228 = vunpack.c.h.b16 %v901
    %v1229 = vunpack.c.l.b16 %v902
    %v1230 = vunpack.c.h.b16 %v902
    %v1231 = vunpack.c.l.b16 %v903
    %v1232 = vunpack.c.h.b16 %v903
    %v1233 = vunpack.c.l.b16 %v904
    %v1234 = vunpack.c.h.b16 %v904
    %v1235 = vunpack.c.l.b16 %v905
    %v1236 = vunpack.c.h.b16 %v905
    %v1237 = vunpack.c.l.b16 %v906
    %v1238 = vunpack.c.h.b16 %v906
    %v1239 = vunpack.c.l.b16 %v907
    %v1240 = vunpack.c.h.b16 %v907
    %v1241 = vunpack.c.l.b16 %v908
    %v1242 = vunpack.c.h.b16 %v908
    %v1243 = vunpack.c.l.b16 %v909
    %v1244 = vunpack.c.h.b16 %v909
    %v1245 = vunpack.c.l.b16 %v910
    %v1246 = vunpack.c.h.b16 %v910
    %v1247 = vunpack.c.l.b16 %v911
    %v1248 = vunpack.c.h.b16 %v911
    %v1249 = vunpack.c.l.b16 %v912
    %v1250 = vunpack.c.h.b16 %v912
    %v1251 = vunpack.c.l.b16 %v913
    %v1252 = vunpack.c.h.b16 %v913
    %v1253 = vunpack.c.l.b16 %v914
    %v1254 = vunpack.c.h.b16 %v914
    %v1255 = vunpack.c.l.b16 %v915
    %v1256 = vunpack.c.h.b16 %v915
    %v1257 = vunpack.c.l.b16 %v916
    %v1258 = vunpack.c.h.b16 %v916
    %v1259 = vunpack.c.l.b16 %v917
    %v1260 = vunpack.c.h.b16 %v917
    %v1261 = vunpack.c.l.b16 %v918
    %v1262 = vunpack.c.h.b16 %v918
    %v1263 = vunpack.c.l.b16 %v919
    %v1264 = vunpack.c.h.b16 %v919
    %v1265 = vunpack.c.l.b16 %v920
    %v1266 = vunpack.c.h.b16 %v920
    %v1267 = vunpack.c.l.b16 %v921
    %v1268 = vunpack.c.h.b16 %v921
    %v1269 = vunpack.c.l.b16 %v922
    %v1270 = vunpack.c.h.b16 %v922
    %v1271 = vunpack.c.l.b16 %v923
    %v1272 = vunpack.c.h.b16 %v923
    %v1273 = vunpack.c.l.b16 %v924
    %v1274 = vunpack.c.h.b16 %v924
    %v1275 = vunpack.c.l.b16 %v925
    %v1276 = vunpack.c.h.b16 %v925
    %v1277 = vunpack.c.l.b16 %v926
    %v1278 = vunpack.c.h.b16 %v926
    %v1279 = vunpack.c.l.b16 %v927
    %v1280 = vunpack.c.h.b16 %v927
    %v1281 = vunpack.c.l.b16 %v928
    %v1282 = vunpack.c.h.b16 %v928
    %v1283 = vunpack.c.l.b16 %v929
    %v1284 = vunpack.c.h.b16 %v929
    %v1285 = vunpack.c.l.b16 %v930
    %v1286 = vunpack.c.h.b16 %v930
    %v1287 = vunpack.c.l.b16 %v931
    %v1288 = vunpack.c.h.b16 %v931
    %v1289 = vunpack.c.l.b16 %v932
    %v1290 = vunpack.c.h.b16 %v932
    %v1291 = vunpack.c.l.b16 %v933
    %v1292 = vunpack.c.h.b16 %v933
    %v1293 = vunpack.c.l.b16 %v934
    %v1294 = vunpack.c.h.b16 %v934
    %v1295 = vunpack.c.l.b16 %v935
    %v1296 = vunpack.c.h.b16 %v935
    %v1297 = vunpack.c.l.b16 %v936
    %v1298 = vunpack.c.h.b16 %v936
    %v1299 = vunpack.c.l.b16 %v937
    %v1300 = vunpack.c.h.b16 %v937
    %v1301 = vunpack.c.l.b16 %v938
    %v1302 = vunpack.c.h.b16 %v938
    %v1303 = vunpack.c.l.b16 %v939
    %v1304 = vunpack.c.h.b16 %v939
    %v1305 = vunpack.c.l.b16 %v940
    %v1306 = vunpack.c.h.b16 %v940
    %v1307 = vunpack.c.l.b16 %v941
    %v1308 = vunpack.c.h.b16 %v941
    %v1309 = vunpack.c.l.b16 %v942
    %v1310 = vunpack.c.h.b16 %v942
    %v1311 = vunpack.c.l.b16 %v943
    %v1312 = vunpack.c.h.b16 %v943
    %v1313 = vunpack.c.l.b16 %v944
    %v1314 = vunpack.c.h.b16 %v944
    %v1315 = vunpack.c.l.b16 %v945
    %v1316 = vunpack.c.h.b16 %v945
    %v1317 = vunpack.c.l.b16 %v946
    %v1318 = vunpack.c.h.b16 %v946
    %v1319 = vunpack.c.l.b16 %v947
    %v1320 = vunpack.c.h.b16 %v947
    %v1321 = vunpack.c.l.b16 %v948
    %v1322 = vunpack.c.h.b16 %v948
    %v1323 = vunpack.c.l.b16 %v949
    %v1324 = vunpack.c.h.b16 %v949
    %v1325 = vunpack.c.l.b16 %v950
    %v1326 = vunpack.c.h.b16 %v950
    %v1327 = vunpack.c.l.b16 %v951
    %v1328 = vunpack.c.h.b16 %v951
    %v1329 = vunpack.c.l.b16 %v952
    %v1330 = vunpack.c.h.b16 %v952
    %v1331 = vunpack.c.l.b16 %v953
    %v1332 = vunpack.c.h.b16 %v953
    %v1333 = vunpack.c.l.b16 %v954
    %v1334 = vunpack.c.h.b16 %v954
    %v1335 = vunpack.c.l.b16 %v955
    %v1336 = vunpack.c.h.b16 %v955
    %v1337 = vunpack.c.l.b16 %v956
    %v1338 = vunpack.c.h.b16 %v956
    %v1339 = vunpack.c.l.b16 %v957
    %v1340 = vunpack.c.h.b16 %v957
    %v1341 = vunpack.c.l.b16 %v958
    %v1342 = vunpack.c.h.b16 %v958
    %v1343 = vunpack.c.l.b16 %v959
    %v1344 = vunpack.c.h.b16 %v959
    %v1345 = vpack.c.b16 %v1093, %v1089
    %v1346 = vpack.c.b16 %v1094, %v1090
    %v1347 = vpack.c.b16 %v1095, %v1091
    %v1348 = vpack.c.b16 %v1096, %v1092
    %v1349 = vpack.c.b16 %v1101, %v1097
    %v1350 = vpack.c.b16 %v1102, %v1098
    %v1351 = vpack.c.b16 %v1103, %v1099
    %v1352 = vpack.c.b16 %v1104, %v1100
    %v1353 = vpack.c.b16 %v1109, %v1105
    %v1354 = vpack.c.b16 %v1110, %v1106
    %v1355 = vpack.c.b16 %v1111, %v1107
    %v1356 = vpack.c.b16 %v1112, %v1108
    %v1357 = vpack.c.b16 %v1117, %v1113
    %v1358 = vpack.c.b16 %v1118, %v1114
    %v1359 = vpack.c.b16 %v1119, %v1115
    %v1360 = vpack.c.b16 %v1120, %v1116
    %v1361 = vpack.c.b16 %v1125, %v1121
    %v1362 = vpack.c.b16 %v1126, %v1122
    %v1363 = vpack.c.b16 %v1127, %v1123
    %v1364 = vpack.c.b16 %v1128, %v1124
    %v1365 = vpack.c.b16 %v1133, %v1129
    %v1366 = vpack.c.b16 %v1134, %v1130
    %v1367 = vpack.c.b16 %v1135, %v1131
    %v1368 = vpack.c.b16 %v1136, %v1132
    %v1369 = vpack.c.b16 %v1141, %v1137
    %v1370 = vpack.c.b16 %v1142, %v1138
    %v1371 = vpack.c.b16 %v1143, %v1139
    %v1372 = vpack.c.b16 %v1144, %v1140
    %v1373 = vpack.c.b16 %v1149, %v1145
    %v1374 = vpack.c.b16 %v1150, %v1146
    %v1375 = vpack.c.b16 %v1151, %v1147
    %v1376 = vpack.c.b16 %v1152, %v1148
    %v1377 = vpack.c.b16 %v1157, %v1153
    %v1378 = vpack.c.b16 %v1158, %v1154
    %v1379 = vpack.c.b16 %v1159, %v1155
    %v1380 = vpack.c.b16 %v1160, %v1156
    %v1381 = vpack.c.b16 %v1165, %v1161
    %v1382 = vpack.c.b16 %v1166, %v1162
    %v1383 = vpack.c.b16 %v1167, %v1163
    %v1384 = vpack.c.b16 %v1168, %v1164
    %v1385 = vpack.c.b16 %v1173, %v1169
    %v1386 = vpack.c.b16 %v1174, %v1170
    %v1387 = vpack.c.b16 %v1175, %v1171
    %v1388 = vpack.c.b16 %v1176, %v1172
    %v1389 = vpack.c.b16 %v1181, %v1177
    %v1390 = vpack.c.b16 %v1182, %v1178
    %v1391 = vpack.c.b16 %v1183, %v1179
    %v1392 = vpack.c.b16 %v1184, %v1180
    %v1393 = vpack.c.b16 %v1189, %v1185
    %v1394 = vpack.c.b16 %v1190, %v1186
    %v1395 = vpack.c.b16 %v1191, %v1187
    %v1396 = vpack.c.b16 %v1192, %v1188
    %v1397 = vpack.c.b16 %v1197, %v1193
    %v1398 = vpack.c.b16 %v1198, %v1194
    %v1399 = vpack.c.b16 %v1199, %v1195
    %v1400 = vpack.c.b16 %v1200, %v1196
    %v1401 = vpack.c.b16 %v1205, %v1201
    %v1402 = vpack.c.b16 %v1206, %v1202
    %v1403 = vpack.c.b16 %v1207, %v1203
    %v1404 = vpack.c.b16 %v1208, %v1204
    %v1405 = vpack.c.b16 %v1213, %v1209
    %v1406 = vpack.c.b16 %v1214, %v1210
    %v1407 = vpack.c.b16 %v1215, %v1211
    %v1408 = vpack.c.b16 %v1216, %v1212
    %v1409 = vpack.c.b16 %v1221, %v1217
    %v1410 = vpack.c.b16 %v1222, %v1218
    %v1411 = vpack.c.b16 %v1223, %v1219
    %v1412 = vpack.c.b16 %v1224, %v1220
    %v1413 = vpack.c.b16 %v1229, %v1225
    %v1414 = vpack.c.b16 %v1230, %v1226
    %v1415 = vpack.c.b16 %v1231, %v1227
    %v1416 = vpack.c.b16 %v1232, %v1228
    %v1417 = vpack.c.b16 %v1237, %v1233
    %v1418 = vpack.c.b16 %v1238, %v1234
    %v1419 = vpack.c.b16 %v1239, %v1235
    %v1420 = vpack.c.b16 %v1240, %v1236
    %v1421 = vpack.c.b16 %v1245, %v1241
    %v1422 = vpack.c.b16 %v1246, %v1242
    %v1423 = vpack.c.b16 %v1247, %v1243
    %v1424 = vpack.c.b16 %v1248, %v1244
    %v1425 = vpack.c.b16 %v1253, %v1249
    %v1426 = vpack.c.b16 %v1254, %v1250
    %v1427 = vpack.c.b16 %v1255, %v1251
    %v1428 = vpack.c.b16 %v1256, %v1252
    %v1429 = vpack.c.b16 %v1261, %v1257
    %v1430 = vpack.c.b16 %v1262, %v1258
    %v1431 = vpack.c.b16 %v1263, %v1259
    %v1432 = vpack.c.b16 %v1264, %v1260
    %v1433 = vpack.c.b16 %v1269, %v1265
    %v1434 = vpack.c.b16 %v1270, %v1266
    %v1435 = vpack.c.b16 %v1271, %v1267
    %v1436 = vpack.c.b16 %v1272, %v1268
    %v1437 = vpack.c.b16 %v1277, %v1273
    %v1438 = vpack.c.b16 %v1278, %v1274
    %v1439 = vpack.c.b16 %v1279, %v1275
    %v1440 = vpack.c.b16 %v1280, %v1276
    %v1441 = vpack.c.b16 %v1285, %v1281
    %v1442 = vpack.c.b16 %v1286, %v1282
    %v1443 = vpack.c.b16 %v1287, %v1283
    %v1444 = vpack.c.b16 %v1288, %v1284
    %v1445 = vpack.c.b16 %v1293, %v1289
    %v1446 = vpack.c.b16 %v1294, %v1290
    %v1447 = vpack.c.b16 %v1295, %v1291
    %v1448 = vpack.c.b16 %v1296, %v1292
    %v1449 = vpack.c.b16 %v1301, %v1297
    %v1450 = vpack.c.b16 %v1302, %v1298
    %v1451 = vpack.c.b16 %v1303, %v1299
    %v1452 = vpack.c.b16 %v1304, %v1300
    %v1453 = vpack.c.b16 %v1309, %v1305
    %v1454 = vpack.c.b16 %v1310, %v1306
    %v1455 = vpack.c.b16 %v1311, %v1307
    %v1456 = vpack.c.b16 %v1312, %v1308
    %v1457 = vpack.c.b16 %v1317, %v1313
    %v1458 = vpack.c.b16 %v1318, %v1314
    %v1459 = vpack.c.b16 %v1319, %v1315
    %v1460 = vpack.c.b16 %v1320, %v1316
    %v1461 = vpack.c.b16 %v1325, %v1321
    %v1462 = vpack.c.b16 %v1326, %v1322
    %v1463 = vpack.c.b16 %v1327, %v1323
    %v1464 = vpack.c.b16 %v1328, %v1324
    %v1465 = vpack.c.b16 %v1333, %v1329
    %v1466 = vpack.c.b16 %v1334, %v1330
    %v1467 = vpack.c.b16 %v1335, %v1331
    %v1468 = vpack.c.b16 %v1336, %v1332
    %v1469 = vpack.c.b16 %v1341, %v1337
    %v1470 = vpack.c.b16 %v1342, %v1338
    %v1471 = vpack.c.b16 %v1343, %v1339
    %v1472 = vpack.c.b16 %v1344, %v1340
    %v1602 = vlaneseq
    %v1603 = vshrl.u32 %v1602, 7
    %v1604 = vsub.s32 0, %v1603
    %v1605 = vrot.slane %v960, %v1604
    %v1606 = vlaneseq
    %v1607 = vshrl.u32 %v1606, 7
    %v1608 = vsub.s32 1, %v1607
    %v1609 = vrot.slane %v960, %v1608
    %v1610 = vlaneseq
    %v1611 = vshrl.u32 %v1610, 7
    %v1612 = vsub.s32 2, %v1611
    %v1613 = vrot.slane %v960, %v1612
    %v1614 = vlaneseq
    %v1615 = vshrl.u32 %v1614, 7
    %v1616 = vsub.s32 3, %v1615
    %v1617 = vrot.slane %v960, %v1616
    %1622 = vmatprep.subr.bf16.mxu0 %v1346
    %1623 = vmatpush1.bf16.msra.mxu0 %v1345
    %1624 = vmatprep.subr.bf16.mxu0 %v1350
    %1625 = vmatpush1.bf16.msra.mxu0 %v1349
    %1626 = vmatprep.subr.bf16.mxu0 %v1354
    %1627 = vmatpush1.bf16.msra.mxu0 %v1353
    %1628 = vmatprep.subr.bf16.mxu0 %v1358
    %1629 = vmatpush1.bf16.msra.mxu0 %v1357
    %1630 = vmatprep.subr.bf16.mxu0 %v1362
    %1631 = vmatpush1.bf16.msra.mxu0 %v1361
    %1632 = vmatprep.subr.bf16.mxu0 %v1366
    %1633 = vmatpush1.bf16.msra.mxu0 %v1365
    %1634 = vmatprep.subr.bf16.mxu0 %v1370
    %1635 = vmatpush1.bf16.msra.mxu0 %v1369
    %1636 = vmatprep.subr.bf16.mxu0 %v1374
    %1637 = vmatpush1.bf16.msra.mxu0 %v1373
    %1638 = vmatprep.subr.bf16.mxu0 %v1378
    %1639 = vmatpush1.bf16.msra.mxu0 %v1377
    %1640 = vmatprep.subr.bf16.mxu0 %v1382
    %1641 = vmatpush1.bf16.msra.mxu0 %v1381
    %1642 = vmatprep.subr.bf16.mxu0 %v1386
    %1643 = vmatpush1.bf16.msra.mxu0 %v1385
    %1644 = vmatprep.subr.bf16.mxu0 %v1390
    %1645 = vmatpush1.bf16.msra.mxu0 %v1389
    %1646 = vmatprep.subr.bf16.mxu0 %v1394
    %1647 = vmatpush1.bf16.msra.mxu0 %v1393
    %1648 = vmatprep.subr.bf16.mxu0 %v1398
    %1649 = vmatpush1.bf16.msra.mxu0 %v1397
    %1650 = vmatprep.subr.bf16.mxu0 %v1402
    %1651 = vmatpush1.bf16.msra.mxu0 %v1401
    %1652 = vmatprep.subr.bf16.mxu0 %v1406
    %1653 = vmatpush1.bf16.msra.mxu0 %v1405
    %1654 = vmatprep.mubr.bf16.mxu0 %v829
    %1655 = vmatmul.mubr.bf16.gmra.mrb[0].mxu0 %v828
    %v1656 = vpop.f32.mrb[0].mxu0
    %v1657 = vadd.f32 %v1605, %v1656
    %v1658 = vpop.f32.mrb[0].mxu0
    %v1659 = vadd.f32 %v1609, %v1658
    %v1660 = vpop.f32.mrb[0].mxu0
    %v1661 = vpop.f32.mrb[0].mxu0
    %1662 = vdwg.mxu0
    %1663 = vmatprep.subr.bf16.mxu0 %v1410
    %1664 = vmatpush1.bf16.msra.mxu0 %v1409
    %1665 = vmatprep.subr.bf16.mxu0 %v1414
    %1666 = vmatpush1.bf16.msra.mxu0 %v1413
    %1667 = vmatprep.subr.bf16.mxu0 %v1418
    %1668 = vmatpush1.bf16.msra.mxu0 %v1417
    %1669 = vmatprep.subr.bf16.mxu0 %v1422
    %1670 = vmatpush1.bf16.msra.mxu0 %v1421
    %1671 = vmatprep.subr.bf16.mxu0 %v1426
    %1672 = vmatpush1.bf16.msra.mxu0 %v1425
    %1673 = vmatprep.subr.bf16.mxu0 %v1430
    %1674 = vmatpush1.bf16.msra.mxu0 %v1429
    %1675 = vmatprep.subr.bf16.mxu0 %v1434
    %1676 = vmatpush1.bf16.msra.mxu0 %v1433
    %1677 = vmatprep.subr.bf16.mxu0 %v1438
    %1678 = vmatpush1.bf16.msra.mxu0 %v1437
    %1679 = vmatprep.subr.bf16.mxu0 %v1442
    %1680 = vmatpush1.bf16.msra.mxu0 %v1441
    %1681 = vmatprep.subr.bf16.mxu0 %v1446
    %1682 = vmatpush1.bf16.msra.mxu0 %v1445
    %1683 = vmatprep.subr.bf16.mxu0 %v1450
    %1684 = vmatpush1.bf16.msra.mxu0 %v1449
    %1685 = vmatprep.subr.bf16.mxu0 %v1454
    %1686 = vmatpush1.bf16.msra.mxu0 %v1453
    %1687 = vmatprep.subr.bf16.mxu0 %v1458
    %1688 = vmatpush1.bf16.msra.mxu0 %v1457
    %1689 = vmatprep.subr.bf16.mxu0 %v1462
    %1690 = vmatpush1.bf16.msra.mxu0 %v1461
    %1691 = vmatprep.subr.bf16.mxu0 %v1466
    %1692 = vmatpush1.bf16.msra.mxu0 %v1465
    %1693 = vmatprep.subr.bf16.mxu0 %v1470
    %1694 = vmatpush1.bf16.msra.mxu0 %v1469
    %1695 = vmatprep.mubr.bf16.mxu0 %v831
    %1696 = vmatmul.mubr.bf16.gmra.mrb[0].mxu0 %v830
    %v1697 = vpop.f32.mrb[0].mxu0
    %v1698 = vadd.f32 %v1657, %v1697
    %v1699 = vpop.f32.mrb[0].mxu0
    %v1700 = vadd.f32 %v1659, %v1699
    %v1701 = vpop.f32.mrb[0].mxu0
    %v1702 = vpop.f32.mrb[0].mxu0
    %1703 = vdwg.mxu0
    %1704 = vmatprep.subr.bf16.mxu0 %v1348
    %1705 = vmatpush1.bf16.msra.mxu0 %v1347
    %1706 = vmatprep.subr.bf16.mxu0 %v1352
    %1707 = vmatpush1.bf16.msra.mxu0 %v1351
    %1708 = vmatprep.subr.bf16.mxu0 %v1356
    %1709 = vmatpush1.bf16.msra.mxu0 %v1355
    %1710 = vmatprep.subr.bf16.mxu0 %v1360
    %1711 = vmatpush1.bf16.msra.mxu0 %v1359
    %1712 = vmatprep.subr.bf16.mxu0 %v1364
    %1713 = vmatpush1.bf16.msra.mxu0 %v1363
    %1714 = vmatprep.subr.bf16.mxu0 %v1368
    %1715 = vmatpush1.bf16.msra.mxu0 %v1367
    %1716 = vmatprep.subr.bf16.mxu0 %v1372
    %1717 = vmatpush1.bf16.msra.mxu0 %v1371
    %1718 = vmatprep.subr.bf16.mxu0 %v1376
    %1719 = vmatpush1.bf16.msra.mxu0 %v1375
    %1720 = vmatprep.subr.bf16.mxu0 %v1380
    %1721 = vmatpush1.bf16.msra.mxu0 %v1379
    %1722 = vmatprep.subr.bf16.mxu0 %v1384
    %1723 = vmatpush1.bf16.msra.mxu0 %v1383
    %1724 = vmatprep.subr.bf16.mxu0 %v1388
    %1725 = vmatpush1.bf16.msra.mxu0 %v1387
    %1726 = vmatprep.subr.bf16.mxu0 %v1392
    %1727 = vmatpush1.bf16.msra.mxu0 %v1391
    %1728 = vmatprep.subr.bf16.mxu0 %v1396
    %1729 = vmatpush1.bf16.msra.mxu0 %v1395
    %1730 = vmatprep.subr.bf16.mxu0 %v1400
    %1731 = vmatpush1.bf16.msra.mxu0 %v1399
    %1732 = vmatprep.subr.bf16.mxu0 %v1404
    %1733 = vmatpush1.bf16.msra.mxu0 %v1403
    %1734 = vmatprep.subr.bf16.mxu0 %v1408
    %1735 = vmatpush1.bf16.msra.mxu0 %v1407
    %1736 = vmatprep.mubr.bf16.mxu0 %v829
    %1737 = vmatmul.mubr.bf16.gmra.mrb[0].mxu0 %v828
    %v1738 = vpop.f32.mrb[0].mxu0
    %v1739 = vadd.f32 %v1613, %v1738
    %v1740 = vpop.f32.mrb[0].mxu0
    %v1741 = vadd.f32 %v1617, %v1740
    %v1742 = vpop.f32.mrb[0].mxu0
    %v1743 = vpop.f32.mrb[0].mxu0
    %1744 = vdwg.mxu0
    %1745 = vmatprep.subr.bf16.mxu0 %v1412
    %1746 = vmatpush1.bf16.msra.mxu0 %v1411
    %1747 = vmatprep.subr.bf16.mxu0 %v1416
    %1748 = vmatpush1.bf16.msra.mxu0 %v1415
    %1749 = vmatprep.subr.bf16.mxu0 %v1420
    %1750 = vmatpush1.bf16.msra.mxu0 %v1419
    %1751 = vmatprep.subr.bf16.mxu0 %v1424
    %1752 = vmatpush1.bf16.msra.mxu0 %v1423
    %1753 = vmatprep.subr.bf16.mxu0 %v1428
    %1754 = vmatpush1.bf16.msra.mxu0 %v1427
    %1755 = vmatprep.subr.bf16.mxu0 %v1432
    %1756 = vmatpush1.bf16.msra.mxu0 %v1431
    %1757 = vmatprep.subr.bf16.mxu0 %v1436
    %1758 = vmatpush1.bf16.msra.mxu0 %v1435
    %1759 = vmatprep.subr.bf16.mxu0 %v1440
    %1760 = vmatpush1.bf16.msra.mxu0 %v1439
    %1761 = vmatprep.subr.bf16.mxu0 %v1444
    %1762 = vmatpush1.bf16.msra.mxu0 %v1443
    %1763 = vmatprep.subr.bf16.mxu0 %v1448
    %1764 = vmatpush1.bf16.msra.mxu0 %v1447
    %1765 = vmatprep.subr.bf16.mxu0 %v1452
    %1766 = vmatpush1.bf16.msra.mxu0 %v1451
    %1767 = vmatprep.subr.bf16.mxu0 %v1456
    %1768 = vmatpush1.bf16.msra.mxu0 %v1455
    %1769 = vmatprep.subr.bf16.mxu0 %v1460
    %1770 = vmatpush1.bf16.msra.mxu0 %v1459
    %1771 = vmatprep.subr.bf16.mxu0 %v1464
    %1772 = vmatpush1.bf16.msra.mxu0 %v1463
    %1773 = vmatprep.subr.bf16.mxu0 %v1468
    %1774 = vmatpush1.bf16.msra.mxu0 %v1467
    %1775 = vmatprep.subr.bf16.mxu0 %v1472
    %1776 = vmatpush1.bf16.msra.mxu0 %v1471
    %1777 = vmatprep.mubr.bf16.mxu0 %v831
    %1778 = vmatmul.mubr.bf16.gmra.mrb[0].mxu0 %v830
    %v1779 = vpop.f32.mrb[0].mxu0
    %v1780 = vadd.f32 %v1739, %v1779
    %v1781 = vpop.f32.mrb[0].mxu0
    %v1782 = vadd.f32 %v1741, %v1781
    %v1783 = vpop.f32.mrb[0].mxu0
    %v1784 = vpop.f32.mrb[0].mxu0
    %1785 = vdwg.mxu0
    %v1786 = vmax.f32 %v1698, 0.0
    %v1787 = vmax.f32 %v1700, 0.0
    %v1788 = vmax.f32 %v1780, 0.0
    %v1789 = vmax.f32 %v1782, 0.0
    %v1790 = vpack.c.bf16 %v1786, %v1786
    %v1791 = vpack.c.bf16 %v1787, %v1787
    %v1792 = vpack.c.bf16 %v1788, %v1788
    %v1793 = vpack.c.bf16 %v1789, %v1789
    %v1794 = vld [vmem:[#allocation16] sm:$0xff]
    %v1795 = vld [vmem:[#allocation16 + $0x8] sm:$0xff]
    %v1796 = vld [vmem:[#allocation16 + $0x10] sm:$0xff]
    %v1797 = vld [vmem:[#allocation16 + $0x18] sm:$0xff]
    %v1798 = vld [vmem:[#allocation16 + $0x20] sm:$0xff]
    %v1799 = vld [vmem:[#allocation16 + $0x28] sm:$0xff]
    %v1800 = vld [vmem:[#allocation16 + $0x30] sm:$0xff]
    %v1801 = vld [vmem:[#allocation16 + $0x38] sm:$0xff]
    %v1802 = vld [vmem:[#allocation16 + $0x40] sm:$0xff]
    %v1803 = vld [vmem:[#allocation16 + $0x48] sm:$0xff]
    %v1804 = vld [vmem:[#allocation16 + $0x50] sm:$0xff]
    %v1805 = vld [vmem:[#allocation16 + $0x58] sm:$0xff]
    %v1806 = vld [vmem:[#allocation16 + $0x60] sm:$0xff]
    %v1807 = vld [vmem:[#allocation16 + $0x68] sm:$0xff]
    %v1808 = vld [vmem:[#allocation16 + $0x70] sm:$0xff]
    %v1809 = vld [vmem:[#allocation16 + $0x78] sm:$0xff]
    %v1810 = vld [vmem:[#allocation16 + $0x80] sm:$0xff]
    %v1811 = vld [vmem:[#allocation16 + $0x88] sm:$0xff]
    %v1812 = vld [vmem:[#allocation16 + $0x90] sm:$0xff]
    %v1813 = vld [vmem:[#allocation16 + $0x98] sm:$0xff]
    %v1814 = vld [vmem:[#allocation16 + $0xa0] sm:$0xff]
    %v1815 = vld [vmem:[#allocation16 + $0xa8] sm:$0xff]
    %v1816 = vld [vmem:[#allocation16 + $0xb0] sm:$0xff]
    %v1817 = vld [vmem:[#allocation16 + $0xb8] sm:$0xff]
    %v1818 = vld [vmem:[#allocation16 + $0xc0] sm:$0xff]
    %v1819 = vld [vmem:[#allocation16 + $0xc8] sm:$0xff]
    %v1820 = vld [vmem:[#allocation16 + $0xd0] sm:$0xff]
    %v1821 = vld [vmem:[#allocation16 + $0xd8] sm:$0xff]
    %v1822 = vld [vmem:[#allocation16 + $0xe0] sm:$0xff]
    %v1823 = vld [vmem:[#allocation16 + $0xe8] sm:$0xff]
    %v1824 = vld [vmem:[#allocation16 + $0xf0] sm:$0xff]
    %v1825 = vld [vmem:[#allocation16 + $0xf8] sm:$0xff]
    %v1826 = vld [vmem:[#allocation16 + $0x100] sm:$0xff]
    %v1827 = vld [vmem:[#allocation16 + $0x108] sm:$0xff]
    %v1828 = vld [vmem:[#allocation16 + $0x110] sm:$0xff]
    %v1829 = vld [vmem:[#allocation16 + $0x118] sm:$0xff]
    %v1830 = vld [vmem:[#allocation16 + $0x120] sm:$0xff]
    %v1831 = vld [vmem:[#allocation16 + $0x128] sm:$0xff]
    %v1832 = vld [vmem:[#allocation16 + $0x130] sm:$0xff]
    %v1833 = vld [vmem:[#allocation16 + $0x138] sm:$0xff]
    %v1834 = vld [vmem:[#allocation16 + $0x140] sm:$0xff]
    %v1835 = vld [vmem:[#allocation16 + $0x148] sm:$0xff]
    %v1836 = vld [vmem:[#allocation16 + $0x150] sm:$0xff]
    %v1837 = vld [vmem:[#allocation16 + $0x158] sm:$0xff]
    %v1838 = vld [vmem:[#allocation16 + $0x160] sm:$0xff]
    %v1839 = vld [vmem:[#allocation16 + $0x168] sm:$0xff]
    %v1840 = vld [vmem:[#allocation16 + $0x170] sm:$0xff]
    %v1841 = vld [vmem:[#allocation16 + $0x178] sm:$0xff]
    %v1842 = vld [vmem:[#allocation16 + $0x180] sm:$0xff]
    %v1843 = vld [vmem:[#allocation16 + $0x188] sm:$0xff]
    %v1844 = vld [vmem:[#allocation16 + $0x190] sm:$0xff]
    %v1845 = vld [vmem:[#allocation16 + $0x198] sm:$0xff]
    %v1846 = vld [vmem:[#allocation16 + $0x1a0] sm:$0xff]
    %v1847 = vld [vmem:[#allocation16 + $0x1a8] sm:$0xff]
    %v1848 = vld [vmem:[#allocation16 + $0x1b0] sm:$0xff]
    %v1849 = vld [vmem:[#allocation16 + $0x1b8] sm:$0xff]
    %v1850 = vld [vmem:[#allocation16 + $0x1c0] sm:$0xff]
    %v1851 = vld [vmem:[#allocation16 + $0x1c8] sm:$0xff]
    %v1852 = vld [vmem:[#allocation16 + $0x1d0] sm:$0xff]
    %v1853 = vld [vmem:[#allocation16 + $0x1d8] sm:$0xff]
    %v1854 = vld [vmem:[#allocation16 + $0x1e0] sm:$0xff]
    %v1855 = vld [vmem:[#allocation16 + $0x1e8] sm:$0xff]
    %v1856 = vld [vmem:[#allocation16 + $0x1f0] sm:$0xff]
    %v1857 = vld [vmem:[#allocation16 + $0x1f8] sm:$0xff]
    %v1858 = vld [vmem:[#allocation16 + $0x200] sm:$0xff]
    %v1859 = vld [vmem:[#allocation16 + $0x208] sm:$0xff]
    %v1860 = vld [vmem:[#allocation16 + $0x210] sm:$0xff]
    %v1861 = vld [vmem:[#allocation16 + $0x218] sm:$0xff]
    %v1862 = vld [vmem:[#allocation16 + $0x220] sm:$0xff]
    %v1863 = vld [vmem:[#allocation16 + $0x228] sm:$0xff]
    %v1864 = vld [vmem:[#allocation16 + $0x230] sm:$0xff]
    %v1865 = vld [vmem:[#allocation16 + $0x238] sm:$0xff]
    %v1866 = vld [vmem:[#allocation16 + $0x240] sm:$0xff]
    %v1867 = vld [vmem:[#allocation16 + $0x248] sm:$0xff]
    %v1868 = vld [vmem:[#allocation16 + $0x250] sm:$0xff]
    %v1869 = vld [vmem:[#allocation16 + $0x258] sm:$0xff]
    %v1870 = vld [vmem:[#allocation16 + $0x260] sm:$0xff]
    %v1871 = vld [vmem:[#allocation16 + $0x268] sm:$0xff]
    %v1872 = vld [vmem:[#allocation16 + $0x270] sm:$0xff]
    %v1873 = vld [vmem:[#allocation16 + $0x278] sm:$0xff]
    %v1874 = vld [vmem:[#allocation16 + $0x280] sm:$0xff]
    %v1875 = vld [vmem:[#allocation16 + $0x288] sm:$0xff]
    %v1876 = vld [vmem:[#allocation16 + $0x290] sm:$0xff]
    %v1877 = vld [vmem:[#allocation16 + $0x298] sm:$0xff]
    %v1878 = vld [vmem:[#allocation16 + $0x2a0] sm:$0xff]
    %v1879 = vld [vmem:[#allocation16 + $0x2a8] sm:$0xff]
    %v1880 = vld [vmem:[#allocation16 + $0x2b0] sm:$0xff]
    %v1881 = vld [vmem:[#allocation16 + $0x2b8] sm:$0xff]
    %v1882 = vld [vmem:[#allocation16 + $0x2c0] sm:$0xff]
    %v1883 = vld [vmem:[#allocation16 + $0x2c8] sm:$0xff]
    %v1884 = vld [vmem:[#allocation16 + $0x2d0] sm:$0xff]
    %v1885 = vld [vmem:[#allocation16 + $0x2d8] sm:$0xff]
    %v1886 = vld [vmem:[#allocation16 + $0x2e0] sm:$0xff]
    %v1887 = vld [vmem:[#allocation16 + $0x2e8] sm:$0xff]
    %v1888 = vld [vmem:[#allocation16 + $0x2f0] sm:$0xff]
    %v1889 = vld [vmem:[#allocation16 + $0x2f8] sm:$0xff]
    %v1890 = vld [vmem:[#allocation16 + $0x300] sm:$0xff]
    %v1891 = vld [vmem:[#allocation16 + $0x308] sm:$0xff]
    %v1892 = vld [vmem:[#allocation16 + $0x310] sm:$0xff]
    %v1893 = vld [vmem:[#allocation16 + $0x318] sm:$0xff]
    %v1894 = vld [vmem:[#allocation16 + $0x320] sm:$0xff]
    %v1895 = vld [vmem:[#allocation16 + $0x328] sm:$0xff]
    %v1896 = vld [vmem:[#allocation16 + $0x330] sm:$0xff]
    %v1897 = vld [vmem:[#allocation16 + $0x338] sm:$0xff]
    %v1898 = vld [vmem:[#allocation16 + $0x340] sm:$0xff]
    %v1899 = vld [vmem:[#allocation16 + $0x348] sm:$0xff]
    %v1900 = vld [vmem:[#allocation16 + $0x350] sm:$0xff]
    %v1901 = vld [vmem:[#allocation16 + $0x358] sm:$0xff]
    %v1902 = vld [vmem:[#allocation16 + $0x360] sm:$0xff]
    %v1903 = vld [vmem:[#allocation16 + $0x368] sm:$0xff]
    %v1904 = vld [vmem:[#allocation16 + $0x370] sm:$0xff]
    %v1905 = vld [vmem:[#allocation16 + $0x378] sm:$0xff]
    %v1906 = vld [vmem:[#allocation16 + $0x380] sm:$0xff]
    %v1907 = vld [vmem:[#allocation16 + $0x388] sm:$0xff]
    %v1908 = vld [vmem:[#allocation16 + $0x390] sm:$0xff]
    %v1909 = vld [vmem:[#allocation16 + $0x398] sm:$0xff]
    %v1910 = vld [vmem:[#allocation16 + $0x3a0] sm:$0xff]
    %v1911 = vld [vmem:[#allocation16 + $0x3a8] sm:$0xff]
    %v1912 = vld [vmem:[#allocation16 + $0x3b0] sm:$0xff]
    %v1913 = vld [vmem:[#allocation16 + $0x3b8] sm:$0xff]
    %v1914 = vld [vmem:[#allocation16 + $0x3c0] sm:$0xff]
    %v1915 = vld [vmem:[#allocation16 + $0x3c8] sm:$0xff]
    %v1916 = vld [vmem:[#allocation16 + $0x3d0] sm:$0xff]
    %v1917 = vld [vmem:[#allocation16 + $0x3d8] sm:$0xff]
    %v1918 = vld [vmem:[#allocation16 + $0x3e0] sm:$0xff]
    %v1919 = vld [vmem:[#allocation16 + $0x3e8] sm:$0xff]
    %v1920 = vld [vmem:[#allocation16 + $0x3f0] sm:$0xff]
    %v1921 = vld [vmem:[#allocation16 + $0x3f8] sm:$0xff]
    %v1922 = vld [vmem:[%s12] sm:$0xf]
    %v2051 = vunpack.c.l.b16 %v1794
    %v2052 = vunpack.c.h.b16 %v1794
    %v2053 = vunpack.c.l.b16 %v1795
    %v2054 = vunpack.c.h.b16 %v1795
    %v2055 = vunpack.c.l.b16 %v1796
    %v2056 = vunpack.c.h.b16 %v1796
    %v2057 = vunpack.c.l.b16 %v1797
    %v2058 = vunpack.c.h.b16 %v1797
    %v2059 = vunpack.c.l.b16 %v1798
    %v2060 = vunpack.c.h.b16 %v1798
    %v2061 = vunpack.c.l.b16 %v1799
    %v2062 = vunpack.c.h.b16 %v1799
    %v2063 = vunpack.c.l.b16 %v1800
    %v2064 = vunpack.c.h.b16 %v1800
    %v2065 = vunpack.c.l.b16 %v1801
    %v2066 = vunpack.c.h.b16 %v1801
    %v2067 = vunpack.c.l.b16 %v1802
    %v2068 = vunpack.c.h.b16 %v1802
    %v2069 = vunpack.c.l.b16 %v1803
    %v2070 = vunpack.c.h.b16 %v1803
    %v2071 = vunpack.c.l.b16 %v1804
    %v2072 = vunpack.c.h.b16 %v1804
    %v2073 = vunpack.c.l.b16 %v1805
    %v2074 = vunpack.c.h.b16 %v1805
    %v2075 = vunpack.c.l.b16 %v1806
    %v2076 = vunpack.c.h.b16 %v1806
    %v2077 = vunpack.c.l.b16 %v1807
    %v2078 = vunpack.c.h.b16 %v1807
    %v2079 = vunpack.c.l.b16 %v1808
    %v2080 = vunpack.c.h.b16 %v1808
    %v2081 = vunpack.c.l.b16 %v1809
    %v2082 = vunpack.c.h.b16 %v1809
    %v2083 = vunpack.c.l.b16 %v1810
    %v2084 = vunpack.c.h.b16 %v1810
    %v2085 = vunpack.c.l.b16 %v1811
    %v2086 = vunpack.c.h.b16 %v1811
    %v2087 = vunpack.c.l.b16 %v1812
    %v2088 = vunpack.c.h.b16 %v1812
    %v2089 = vunpack.c.l.b16 %v1813
    %v2090 = vunpack.c.h.b16 %v1813
    %v2091 = vunpack.c.l.b16 %v1814
    %v2092 = vunpack.c.h.b16 %v1814
    %v2093 = vunpack.c.l.b16 %v1815
    %v2094 = vunpack.c.h.b16 %v1815
    %v2095 = vunpack.c.l.b16 %v1816
    %v2096 = vunpack.c.h.b16 %v1816
    %v2097 = vunpack.c.l.b16 %v1817
    %v2098 = vunpack.c.h.b16 %v1817
    %v2099 = vunpack.c.l.b16 %v1818
    %v2100 = vunpack.c.h.b16 %v1818
    %v2101 = vunpack.c.l.b16 %v1819
    %v2102 = vunpack.c.h.b16 %v1819
    %v2103 = vunpack.c.l.b16 %v1820
    %v2104 = vunpack.c.h.b16 %v1820
    %v2105 = vunpack.c.l.b16 %v1821
    %v2106 = vunpack.c.h.b16 %v1821
    %v2107 = vunpack.c.l.b16 %v1822
    %v2108 = vunpack.c.h.b16 %v1822
    %v2109 = vunpack.c.l.b16 %v1823
    %v2110 = vunpack.c.h.b16 %v1823
    %v2111 = vunpack.c.l.b16 %v1824
    %v2112 = vunpack.c.h.b16 %v1824
    %v2113 = vunpack.c.l.b16 %v1825
    %v2114 = vunpack.c.h.b16 %v1825
    %v2115 = vunpack.c.l.b16 %v1826
    %v2116 = vunpack.c.h.b16 %v1826
    %v2117 = vunpack.c.l.b16 %v1827
    %v2118 = vunpack.c.h.b16 %v1827
    %v2119 = vunpack.c.l.b16 %v1828
    %v2120 = vunpack.c.h.b16 %v1828
    %v2121 = vunpack.c.l.b16 %v1829
    %v2122 = vunpack.c.h.b16 %v1829
    %v2123 = vunpack.c.l.b16 %v1830
    %v2124 = vunpack.c.h.b16 %v1830
    %v2125 = vunpack.c.l.b16 %v1831
    %v2126 = vunpack.c.h.b16 %v1831
    %v2127 = vunpack.c.l.b16 %v1832
    %v2128 = vunpack.c.h.b16 %v1832
    %v2129 = vunpack.c.l.b16 %v1833
    %v2130 = vunpack.c.h.b16 %v1833
    %v2131 = vunpack.c.l.b16 %v1834
    %v2132 = vunpack.c.h.b16 %v1834
    %v2133 = vunpack.c.l.b16 %v1835
    %v2134 = vunpack.c.h.b16 %v1835
    %v2135 = vunpack.c.l.b16 %v1836
    %v2136 = vunpack.c.h.b16 %v1836
    %v2137 = vunpack.c.l.b16 %v1837
    %v2138 = vunpack.c.h.b16 %v1837
    %v2139 = vunpack.c.l.b16 %v1838
    %v2140 = vunpack.c.h.b16 %v1838
    %v2141 = vunpack.c.l.b16 %v1839
    %v2142 = vunpack.c.h.b16 %v1839
    %v2143 = vunpack.c.l.b16 %v1840
    %v2144 = vunpack.c.h.b16 %v1840
    %v2145 = vunpack.c.l.b16 %v1841
    %v2146 = vunpack.c.h.b16 %v1841
    %v2147 = vunpack.c.l.b16 %v1842
    %v2148 = vunpack.c.h.b16 %v1842
    %v2149 = vunpack.c.l.b16 %v1843
    %v2150 = vunpack.c.h.b16 %v1843
    %v2151 = vunpack.c.l.b16 %v1844
    %v2152 = vunpack.c.h.b16 %v1844
    %v2153 = vunpack.c.l.b16 %v1845
    %v2154 = vunpack.c.h.b16 %v1845
    %v2155 = vunpack.c.l.b16 %v1846
    %v2156 = vunpack.c.h.b16 %v1846
    %v2157 = vunpack.c.l.b16 %v1847
    %v2158 = vunpack.c.h.b16 %v1847
    %v2159 = vunpack.c.l.b16 %v1848
    %v2160 = vunpack.c.h.b16 %v1848
    %v2161 = vunpack.c.l.b16 %v1849
    %v2162 = vunpack.c.h.b16 %v1849
    %v2163 = vunpack.c.l.b16 %v1850
    %v2164 = vunpack.c.h.b16 %v1850
    %v2165 = vunpack.c.l.b16 %v1851
    %v2166 = vunpack.c.h.b16 %v1851
    %v2167 = vunpack.c.l.b16 %v1852
    %v2168 = vunpack.c.h.b16 %v1852
    %v2169 = vunpack.c.l.b16 %v1853
    %v2170 = vunpack.c.h.b16 %v1853
    %v2171 = vunpack.c.l.b16 %v1854
    %v2172 = vunpack.c.h.b16 %v1854
    %v2173 = vunpack.c.l.b16 %v1855
    %v2174 = vunpack.c.h.b16 %v1855
    %v2175 = vunpack.c.l.b16 %v1856
    %v2176 = vunpack.c.h.b16 %v1856
    %v2177 = vunpack.c.l.b16 %v1857
    %v2178 = vunpack.c.h.b16 %v1857
    %v2179 = vunpack.c.l.b16 %v1858
    %v2180 = vunpack.c.h.b16 %v1858
    %v2181 = vunpack.c.l.b16 %v1859
    %v2182 = vunpack.c.h.b16 %v1859
    %v2183 = vunpack.c.l.b16 %v1860
    %v2184 = vunpack.c.h.b16 %v1860
    %v2185 = vunpack.c.l.b16 %v1861
    %v2186 = vunpack.c.h.b16 %v1861
    %v2187 = vunpack.c.l.b16 %v1862
    %v2188 = vunpack.c.h.b16 %v1862
    %v2189 = vunpack.c.l.b16 %v1863
    %v2190 = vunpack.c.h.b16 %v1863
    %v2191 = vunpack.c.l.b16 %v1864
    %v2192 = vunpack.c.h.b16 %v1864
    %v2193 = vunpack.c.l.b16 %v1865
    %v2194 = vunpack.c.h.b16 %v1865
    %v2195 = vunpack.c.l.b16 %v1866
    %v2196 = vunpack.c.h.b16 %v1866
    %v2197 = vunpack.c.l.b16 %v1867
    %v2198 = vunpack.c.h.b16 %v1867
    %v2199 = vunpack.c.l.b16 %v1868
    %v2200 = vunpack.c.h.b16 %v1868
    %v2201 = vunpack.c.l.b16 %v1869
    %v2202 = vunpack.c.h.b16 %v1869
    %v2203 = vunpack.c.l.b16 %v1870
    %v2204 = vunpack.c.h.b16 %v1870
    %v2205 = vunpack.c.l.b16 %v1871
    %v2206 = vunpack.c.h.b16 %v1871
    %v2207 = vunpack.c.l.b16 %v1872
    %v2208 = vunpack.c.h.b16 %v1872
    %v2209 = vunpack.c.l.b16 %v1873
    %v2210 = vunpack.c.h.b16 %v1873
    %v2211 = vunpack.c.l.b16 %v1874
    %v2212 = vunpack.c.h.b16 %v1874
    %v2213 = vunpack.c.l.b16 %v1875
    %v2214 = vunpack.c.h.b16 %v1875
    %v2215 = vunpack.c.l.b16 %v1876
    %v2216 = vunpack.c.h.b16 %v1876
    %v2217 = vunpack.c.l.b16 %v1877
    %v2218 = vunpack.c.h.b16 %v1877
    %v2219 = vunpack.c.l.b16 %v1878
    %v2220 = vunpack.c.h.b16 %v1878
    %v2221 = vunpack.c.l.b16 %v1879
    %v2222 = vunpack.c.h.b16 %v1879
    %v2223 = vunpack.c.l.b16 %v1880
    %v2224 = vunpack.c.h.b16 %v1880
    %v2225 = vunpack.c.l.b16 %v1881
    %v2226 = vunpack.c.h.b16 %v1881
    %v2227 = vunpack.c.l.b16 %v1882
    %v2228 = vunpack.c.h.b16 %v1882
    %v2229 = vunpack.c.l.b16 %v1883
    %v2230 = vunpack.c.h.b16 %v1883
    %v2231 = vunpack.c.l.b16 %v1884
    %v2232 = vunpack.c.h.b16 %v1884
    %v2233 = vunpack.c.l.b16 %v1885
    %v2234 = vunpack.c.h.b16 %v1885
    %v2235 = vunpack.c.l.b16 %v1886
    %v2236 = vunpack.c.h.b16 %v1886
    %v2237 = vunpack.c.l.b16 %v1887
    %v2238 = vunpack.c.h.b16 %v1887
    %v2239 = vunpack.c.l.b16 %v1888
    %v2240 = vunpack.c.h.b16 %v1888
    %v2241 = vunpack.c.l.b16 %v1889
    %v2242 = vunpack.c.h.b16 %v1889
    %v2243 = vunpack.c.l.b16 %v1890
    %v2244 = vunpack.c.h.b16 %v1890
    %v2245 = vunpack.c.l.b16 %v1891
    %v2246 = vunpack.c.h.b16 %v1891
    %v2247 = vunpack.c.l.b16 %v1892
    %v2248 = vunpack.c.h.b16 %v1892
    %v2249 = vunpack.c.l.b16 %v1893
    %v2250 = vunpack.c.h.b16 %v1893
    %v2251 = vunpack.c.l.b16 %v1894
    %v2252 = vunpack.c.h.b16 %v1894
    %v2253 = vunpack.c.l.b16 %v1895
    %v2254 = vunpack.c.h.b16 %v1895
    %v2255 = vunpack.c.l.b16 %v1896
    %v2256 = vunpack.c.h.b16 %v1896
    %v2257 = vunpack.c.l.b16 %v1897
    %v2258 = vunpack.c.h.b16 %v1897
    %v2259 = vunpack.c.l.b16 %v1898
    %v2260 = vunpack.c.h.b16 %v1898
    %v2261 = vunpack.c.l.b16 %v1899
    %v2262 = vunpack.c.h.b16 %v1899
    %v2263 = vunpack.c.l.b16 %v1900
    %v2264 = vunpack.c.h.b16 %v1900
    %v2265 = vunpack.c.l.b16 %v1901
    %v2266 = vunpack.c.h.b16 %v1901
    %v2267 = vunpack.c.l.b16 %v1902
    %v2268 = vunpack.c.h.b16 %v1902
    %v2269 = vunpack.c.l.b16 %v1903
    %v2270 = vunpack.c.h.b16 %v1903
    %v2271 = vunpack.c.l.b16 %v1904
    %v2272 = vunpack.c.h.b16 %v1904
    %v2273 = vunpack.c.l.b16 %v1905
    %v2274 = vunpack.c.h.b16 %v1905
    %v2275 = vunpack.c.l.b16 %v1906
    %v2276 = vunpack.c.h.b16 %v1906
    %v2277 = vunpack.c.l.b16 %v1907
    %v2278 = vunpack.c.h.b16 %v1907
    %v2279 = vunpack.c.l.b16 %v1908
    %v2280 = vunpack.c.h.b16 %v1908
    %v2281 = vunpack.c.l.b16 %v1909
    %v2282 = vunpack.c.h.b16 %v1909
    %v2283 = vunpack.c.l.b16 %v1910
    %v2284 = vunpack.c.h.b16 %v1910
    %v2285 = vunpack.c.l.b16 %v1911
    %v2286 = vunpack.c.h.b16 %v1911
    %v2287 = vunpack.c.l.b16 %v1912
    %v2288 = vunpack.c.h.b16 %v1912
    %v2289 = vunpack.c.l.b16 %v1913
    %v2290 = vunpack.c.h.b16 %v1913
    %v2291 = vunpack.c.l.b16 %v1914
    %v2292 = vunpack.c.h.b16 %v1914
    %v2293 = vunpack.c.l.b16 %v1915
    %v2294 = vunpack.c.h.b16 %v1915
    %v2295 = vunpack.c.l.b16 %v1916
    %v2296 = vunpack.c.h.b16 %v1916
    %v2297 = vunpack.c.l.b16 %v1917
    %v2298 = vunpack.c.h.b16 %v1917
    %v2299 = vunpack.c.l.b16 %v1918
    %v2300 = vunpack.c.h.b16 %v1918
    %v2301 = vunpack.c.l.b16 %v1919
    %v2302 = vunpack.c.h.b16 %v1919
    %v2303 = vunpack.c.l.b16 %v1920
    %v2304 = vunpack.c.h.b16 %v1920
    %v2305 = vunpack.c.l.b16 %v1921
    %v2306 = vunpack.c.h.b16 %v1921
    %v2307 = vpack.c.b16 %v2055, %v2051
    %v2308 = vpack.c.b16 %v2056, %v2052
    %v2309 = vpack.c.b16 %v2057, %v2053
    %v2310 = vpack.c.b16 %v2058, %v2054
    %v2311 = vpack.c.b16 %v2063, %v2059
    %v2312 = vpack.c.b16 %v2064, %v2060
    %v2313 = vpack.c.b16 %v2065, %v2061
    %v2314 = vpack.c.b16 %v2066, %v2062
    %v2315 = vpack.c.b16 %v2071, %v2067
    %v2316 = vpack.c.b16 %v2072, %v2068
    %v2317 = vpack.c.b16 %v2073, %v2069
    %v2318 = vpack.c.b16 %v2074, %v2070
    %v2319 = vpack.c.b16 %v2079, %v2075
    %v2320 = vpack.c.b16 %v2080, %v2076
    %v2321 = vpack.c.b16 %v2081, %v2077
    %v2322 = vpack.c.b16 %v2082, %v2078
    %v2323 = vpack.c.b16 %v2087, %v2083
    %v2324 = vpack.c.b16 %v2088, %v2084
    %v2325 = vpack.c.b16 %v2089, %v2085
    %v2326 = vpack.c.b16 %v2090, %v2086
    %v2327 = vpack.c.b16 %v2095, %v2091
    %v2328 = vpack.c.b16 %v2096, %v2092
    %v2329 = vpack.c.b16 %v2097, %v2093
    %v2330 = vpack.c.b16 %v2098, %v2094
    %v2331 = vpack.c.b16 %v2103, %v2099
    %v2332 = vpack.c.b16 %v2104, %v2100
    %v2333 = vpack.c.b16 %v2105, %v2101
    %v2334 = vpack.c.b16 %v2106, %v2102
    %v2335 = vpack.c.b16 %v2111, %v2107
    %v2336 = vpack.c.b16 %v2112, %v2108
    %v2337 = vpack.c.b16 %v2113, %v2109
    %v2338 = vpack.c.b16 %v2114, %v2110
    %v2339 = vpack.c.b16 %v2119, %v2115
    %v2340 = vpack.c.b16 %v2120, %v2116
    %v2341 = vpack.c.b16 %v2121, %v2117
    %v2342 = vpack.c.b16 %v2122, %v2118
    %v2343 = vpack.c.b16 %v2127, %v2123
    %v2344 = vpack.c.b16 %v2128, %v2124
    %v2345 = vpack.c.b16 %v2129, %v2125
    %v2346 = vpack.c.b16 %v2130, %v2126
    %v2347 = vpack.c.b16 %v2135, %v2131
    %v2348 = vpack.c.b16 %v2136, %v2132
    %v2349 = vpack.c.b16 %v2137, %v2133
    %v2350 = vpack.c.b16 %v2138, %v2134
    %v2351 = vpack.c.b16 %v2143, %v2139
    %v2352 = vpack.c.b16 %v2144, %v2140
    %v2353 = vpack.c.b16 %v2145, %v2141
    %v2354 = vpack.c.b16 %v2146, %v2142
    %v2355 = vpack.c.b16 %v2151, %v2147
    %v2356 = vpack.c.b16 %v2152, %v2148
    %v2357 = vpack.c.b16 %v2153, %v2149
    %v2358 = vpack.c.b16 %v2154, %v2150
    %v2359 = vpack.c.b16 %v2159, %v2155
    %v2360 = vpack.c.b16 %v2160, %v2156
    %v2361 = vpack.c.b16 %v2161, %v2157
    %v2362 = vpack.c.b16 %v2162, %v2158
    %v2363 = vpack.c.b16 %v2167, %v2163
    %v2364 = vpack.c.b16 %v2168, %v2164
    %v2365 = vpack.c.b16 %v2169, %v2165
    %v2366 = vpack.c.b16 %v2170, %v2166
    %v2367 = vpack.c.b16 %v2175, %v2171
    %v2368 = vpack.c.b16 %v2176, %v2172
    %v2369 = vpack.c.b16 %v2177, %v2173
    %v2370 = vpack.c.b16 %v2178, %v2174
    %v2371 = vpack.c.b16 %v2183, %v2179
    %v2372 = vpack.c.b16 %v2184, %v2180
    %v2373 = vpack.c.b16 %v2185, %v2181
    %v2374 = vpack.c.b16 %v2186, %v2182
    %v2375 = vpack.c.b16 %v2191, %v2187
    %v2376 = vpack.c.b16 %v2192, %v2188
    %v2377 = vpack.c.b16 %v2193, %v2189
    %v2378 = vpack.c.b16 %v2194, %v2190
    %v2379 = vpack.c.b16 %v2199, %v2195
    %v2380 = vpack.c.b16 %v2200, %v2196
    %v2381 = vpack.c.b16 %v2201, %v2197
    %v2382 = vpack.c.b16 %v2202, %v2198
    %v2383 = vpack.c.b16 %v2207, %v2203
    %v2384 = vpack.c.b16 %v2208, %v2204
    %v2385 = vpack.c.b16 %v2209, %v2205
    %v2386 = vpack.c.b16 %v2210, %v2206
    %v2387 = vpack.c.b16 %v2215, %v2211
    %v2388 = vpack.c.b16 %v2216, %v2212
    %v2389 = vpack.c.b16 %v2217, %v2213
    %v2390 = vpack.c.b16 %v2218, %v2214
    %v2391 = vpack.c.b16 %v2223, %v2219
    %v2392 = vpack.c.b16 %v2224, %v2220
    %v2393 = vpack.c.b16 %v2225, %v2221
    %v2394 = vpack.c.b16 %v2226, %v2222
    %v2395 = vpack.c.b16 %v2231, %v2227
    %v2396 = vpack.c.b16 %v2232, %v2228
    %v2397 = vpack.c.b16 %v2233, %v2229
    %v2398 = vpack.c.b16 %v2234, %v2230
    %v2399 = vpack.c.b16 %v2239, %v2235
    %v2400 = vpack.c.b16 %v2240, %v2236
    %v2401 = vpack.c.b16 %v2241, %v2237
    %v2402 = vpack.c.b16 %v2242, %v2238
    %v2403 = vpack.c.b16 %v2247, %v2243
    %v2404 = vpack.c.b16 %v2248, %v2244
    %v2405 = vpack.c.b16 %v2249, %v2245
    %v2406 = vpack.c.b16 %v2250, %v2246
    %v2407 = vpack.c.b16 %v2255, %v2251
    %v2408 = vpack.c.b16 %v2256, %v2252
    %v2409 = vpack.c.b16 %v2257, %v2253
    %v2410 = vpack.c.b16 %v2258, %v2254
    %v2411 = vpack.c.b16 %v2263, %v2259
    %v2412 = vpack.c.b16 %v2264, %v2260
    %v2413 = vpack.c.b16 %v2265, %v2261
    %v2414 = vpack.c.b16 %v2266, %v2262
    %v2415 = vpack.c.b16 %v2271, %v2267
    %v2416 = vpack.c.b16 %v2272, %v2268
    %v2417 = vpack.c.b16 %v2273, %v2269
    %v2418 = vpack.c.b16 %v2274, %v2270
    %v2419 = vpack.c.b16 %v2279, %v2275
    %v2420 = vpack.c.b16 %v2280, %v2276
    %v2421 = vpack.c.b16 %v2281, %v2277
    %v2422 = vpack.c.b16 %v2282, %v2278
    %v2423 = vpack.c.b16 %v2287, %v2283
    %v2424 = vpack.c.b16 %v2288, %v2284
    %v2425 = vpack.c.b16 %v2289, %v2285
    %v2426 = vpack.c.b16 %v2290, %v2286
    %v2427 = vpack.c.b16 %v2295, %v2291
    %v2428 = vpack.c.b16 %v2296, %v2292
    %v2429 = vpack.c.b16 %v2297, %v2293
    %v2430 = vpack.c.b16 %v2298, %v2294
    %v2431 = vpack.c.b16 %v2303, %v2299
    %v2432 = vpack.c.b16 %v2304, %v2300
    %v2433 = vpack.c.b16 %v2305, %v2301
    %v2434 = vpack.c.b16 %v2306, %v2302
    %v2564 = vlaneseq
    %v2565 = vshrl.u32 %v2564, 7
    %v2566 = vsub.s32 0, %v2565
    %v2567 = vrot.slane %v1922, %v2566
    %v2568 = vlaneseq
    %v2569 = vshrl.u32 %v2568, 7
    %v2570 = vsub.s32 1, %v2569
    %v2571 = vrot.slane %v1922, %v2570
    %v2572 = vlaneseq
    %v2573 = vshrl.u32 %v2572, 7
    %v2574 = vsub.s32 2, %v2573
    %v2575 = vrot.slane %v1922, %v2574
    %v2576 = vlaneseq
    %v2577 = vshrl.u32 %v2576, 7
    %v2578 = vsub.s32 3, %v2577
    %v2579 = vrot.slane %v1922, %v2578
    %2584 = vmatprep.subr.bf16.mxu0 %v2308
    %2585 = vmatpush1.bf16.msra.mxu0 %v2307
    %2586 = vmatprep.subr.bf16.mxu0 %v2312
    %2587 = vmatpush1.bf16.msra.mxu0 %v2311
    %2588 = vmatprep.subr.bf16.mxu0 %v2316
    %2589 = vmatpush1.bf16.msra.mxu0 %v2315
    %2590 = vmatprep.subr.bf16.mxu0 %v2320
    %2591 = vmatpush1.bf16.msra.mxu0 %v2319
    %2592 = vmatprep.subr.bf16.mxu0 %v2324
    %2593 = vmatpush1.bf16.msra.mxu0 %v2323
    %2594 = vmatprep.subr.bf16.mxu0 %v2328
    %2595 = vmatpush1.bf16.msra.mxu0 %v2327
    %2596 = vmatprep.subr.bf16.mxu0 %v2332
    %2597 = vmatpush1.bf16.msra.mxu0 %v2331
    %2598 = vmatprep.subr.bf16.mxu0 %v2336
    %2599 = vmatpush1.bf16.msra.mxu0 %v2335
    %2600 = vmatprep.subr.bf16.mxu0 %v2340
    %2601 = vmatpush1.bf16.msra.mxu0 %v2339
    %2602 = vmatprep.subr.bf16.mxu0 %v2344
    %2603 = vmatpush1.bf16.msra.mxu0 %v2343
    %2604 = vmatprep.subr.bf16.mxu0 %v2348
    %2605 = vmatpush1.bf16.msra.mxu0 %v2347
    %2606 = vmatprep.subr.bf16.mxu0 %v2352
    %2607 = vmatpush1.bf16.msra.mxu0 %v2351
    %2608 = vmatprep.subr.bf16.mxu0 %v2356
    %2609 = vmatpush1.bf16.msra.mxu0 %v2355
    %2610 = vmatprep.subr.bf16.mxu0 %v2360
    %2611 = vmatpush1.bf16.msra.mxu0 %v2359
    %2612 = vmatprep.subr.bf16.mxu0 %v2364
    %2613 = vmatpush1.bf16.msra.mxu0 %v2363
    %2614 = vmatprep.subr.bf16.mxu0 %v2368
    %2615 = vmatpush1.bf16.msra.mxu0 %v2367
    %2616 = vmatprep.mubr.bf16.mxu0 %v1791
    %2617 = vmatmul.mubr.bf16.gmra.mrb[0].mxu0 %v1790
    %v2618 = vpop.f32.mrb[0].mxu0
    %v2619 = vadd.f32 %v2567, %v2618
    %v2620 = vpop.f32.mrb[0].mxu0
    %v2621 = vadd.f32 %v2571, %v2620
    %v2622 = vpop.f32.mrb[0].mxu0
    %v2623 = vpop.f32.mrb[0].mxu0
    %2624 = vdwg.mxu0
    %2625 = vmatprep.subr.bf16.mxu0 %v2372
    %2626 = vmatpush1.bf16.msra.mxu0 %v2371
    %2627 = vmatprep.subr.bf16.mxu0 %v2376
    %2628 = vmatpush1.bf16.msra.mxu0 %v2375
    %2629 = vmatprep.subr.bf16.mxu0 %v2380
    %2630 = vmatpush1.bf16.msra.mxu0 %v2379
    %2631 = vmatprep.subr.bf16.mxu0 %v2384
    %2632 = vmatpush1.bf16.msra.mxu0 %v2383
    %2633 = vmatprep.subr.bf16.mxu0 %v2388
    %2634 = vmatpush1.bf16.msra.mxu0 %v2387
    %2635 = vmatprep.subr.bf16.mxu0 %v2392
    %2636 = vmatpush1.bf16.msra.mxu0 %v2391
    %2637 = vmatprep.subr.bf16.mxu0 %v2396
    %2638 = vmatpush1.bf16.msra.mxu0 %v2395
    %2639 = vmatprep.subr.bf16.mxu0 %v2400
    %2640 = vmatpush1.bf16.msra.mxu0 %v2399
    %2641 = vmatprep.subr.bf16.mxu0 %v2404
    %2642 = vmatpush1.bf16.msra.mxu0 %v2403
    %2643 = vmatprep.subr.bf16.mxu0 %v2408
    %2644 = vmatpush1.bf16.msra.mxu0 %v2407
    %2645 = vmatprep.subr.bf16.mxu0 %v2412
    %2646 = vmatpush1.bf16.msra.mxu0 %v2411
    %2647 = vmatprep.subr.bf16.mxu0 %v2416
    %2648 = vmatpush1.bf16.msra.mxu0 %v2415
    %2649 = vmatprep.subr.bf16.mxu0 %v2420
    %2650 = vmatpush1.bf16.msra.mxu0 %v2419
    %2651 = vmatprep.subr.bf16.mxu0 %v2424
    %2652 = vmatpush1.bf16.msra.mxu0 %v2423
    %2653 = vmatprep.subr.bf16.mxu0 %v2428
    %2654 = vmatpush1.bf16.msra.mxu0 %v2427
    %2655 = vmatprep.subr.bf16.mxu0 %v2432
    %2656 = vmatpush1.bf16.msra.mxu0 %v2431
    %2657 = vmatprep.mubr.bf16.mxu0 %v1793
    %2658 = vmatmul.mubr.bf16.gmra.mrb[0].mxu0 %v1792
    %v2659 = vpop.f32.mrb[0].mxu0
    %v2660 = vadd.f32 %v2619, %v2659
    %v2661 = vpop.f32.mrb[0].mxu0
    %v2662 = vadd.f32 %v2621, %v2661
    %v2663 = vpop.f32.mrb[0].mxu0
    %v2664 = vpop.f32.mrb[0].mxu0
    %2665 = vdwg.mxu0
    %2666 = vmatprep.subr.bf16.mxu0 %v2310
    %2667 = vmatpush1.bf16.msra.mxu0 %v2309
    %2668 = vmatprep.subr.bf16.mxu0 %v2314
    %2669 = vmatpush1.bf16.msra.mxu0 %v2313
    %2670 = vmatprep.subr.bf16.mxu0 %v2318
    %2671 = vmatpush1.bf16.msra.mxu0 %v2317
    %2672 = vmatprep.subr.bf16.mxu0 %v2322
    %2673 = vmatpush1.bf16.msra.mxu0 %v2321
    %2674 = vmatprep.subr.bf16.mxu0 %v2326
    %2675 = vmatpush1.bf16.msra.mxu0 %v2325
    %2676 = vmatprep.subr.bf16.mxu0 %v2330
    %2677 = vmatpush1.bf16.msra.mxu0 %v2329
    %2678 = vmatprep.subr.bf16.mxu0 %v2334
    %2679 = vmatpush1.bf16.msra.mxu0 %v2333
    %2680 = vmatprep.subr.bf16.mxu0 %v2338
    %2681 = vmatpush1.bf16.msra.mxu0 %v2337
    %2682 = vmatprep.subr.bf16.mxu0 %v2342
    %2683 = vmatpush1.bf16.msra.mxu0 %v2341
    %2684 = vmatprep.subr.bf16.mxu0 %v2346
    %2685 = vmatpush1.bf16.msra.mxu0 %v2345
    %2686 = vmatprep.subr.bf16.mxu0 %v2350
    %2687 = vmatpush1.bf16.msra.mxu0 %v2349
    %2688 = vmatprep.subr.bf16.mxu0 %v2354
    %2689 = vmatpush1.bf16.msra.mxu0 %v2353
    %2690 = vmatprep.subr.bf16.mxu0 %v2358
    %2691 = vmatpush1.bf16.msra.mxu0 %v2357
    %2692 = vmatprep.subr.bf16.mxu0 %v2362
    %2693 = vmatpush1.bf16.msra.mxu0 %v2361
    %2694 = vmatprep.subr.bf16.mxu0 %v2366
    %2695 = vmatpush1.bf16.msra.mxu0 %v2365
    %2696 = vmatprep.subr.bf16.mxu0 %v2370
    %2697 = vmatpush1.bf16.msra.mxu0 %v2369
    %2698 = vmatprep.mubr.bf16.mxu0 %v1791
    %2699 = vmatmul.mubr.bf16.gmra.mrb[0].mxu0 %v1790
    %v2700 = vpop.f32.mrb[0].mxu0
    %v2701 = vadd.f32 %v2575, %v2700
    %v2702 = vpop.f32.mrb[0].mxu0
    %v2703 = vadd.f32 %v2579, %v2702
    %v2704 = vpop.f32.mrb[0].mxu0
    %v2705 = vpop.f32.mrb[0].mxu0
    %2706 = vdwg.mxu0
    %2707 = vmatprep.subr.bf16.mxu0 %v2374
    %2708 = vmatpush1.bf16.msra.mxu0 %v2373
    %2709 = vmatprep.subr.bf16.mxu0 %v2378
    %2710 = vmatpush1.bf16.msra.mxu0 %v2377
    %2711 = vmatprep.subr.bf16.mxu0 %v2382
    %2712 = vmatpush1.bf16.msra.mxu0 %v2381
    %2713 = vmatprep.subr.bf16.mxu0 %v2386
    %2714 = vmatpush1.bf16.msra.mxu0 %v2385
    %2715 = vmatprep.subr.bf16.mxu0 %v2390
    %2716 = vmatpush1.bf16.msra.mxu0 %v2389
    %2717 = vmatprep.subr.bf16.mxu0 %v2394
    %2718 = vmatpush1.bf16.msra.mxu0 %v2393
    %2719 = vmatprep.subr.bf16.mxu0 %v2398
    %2720 = vmatpush1.bf16.msra.mxu0 %v2397
    %2721 = vmatprep.subr.bf16.mxu0 %v2402
    %2722 = vmatpush1.bf16.msra.mxu0 %v2401
    %2723 = vmatprep.subr.bf16.mxu0 %v2406
    %2724 = vmatpush1.bf16.msra.mxu0 %v2405
    %2725 = vmatprep.subr.bf16.mxu0 %v2410
    %2726 = vmatpush1.bf16.msra.mxu0 %v2409
    %2727 = vmatprep.subr.bf16.mxu0 %v2414
    %2728 = vmatpush1.bf16.msra.mxu0 %v2413
    %2729 = vmatprep.subr.bf16.mxu0 %v2418
    %2730 = vmatpush1.bf16.msra.mxu0 %v2417
    %2731 = vmatprep.subr.bf16.mxu0 %v2422
    %2732 = vmatpush1.bf16.msra.mxu0 %v2421
    %2733 = vmatprep.subr.bf16.mxu0 %v2426
    %2734 = vmatpush1.bf16.msra.mxu0 %v2425
    %2735 = vmatprep.subr.bf16.mxu0 %v2430
    %2736 = vmatpush1.bf16.msra.mxu0 %v2429
    %2737 = vmatprep.subr.bf16.mxu0 %v2434
    %2738 = vmatpush1.bf16.msra.mxu0 %v2433
    %2739 = vmatprep.mubr.bf16.mxu0 %v1793
    %2740 = vmatmul.mubr.bf16.gmra.mrb[0].mxu0 %v1792
    %v2741 = vpop.f32.mrb[0].mxu0
    %v2742 = vadd.f32 %v2701, %v2741
    %v2743 = vpop.f32.mrb[0].mxu0
    %v2744 = vadd.f32 %v2703, %v2743
    %v2745 = vpop.f32.mrb[0].mxu0
    %v2746 = vpop.f32.mrb[0].mxu0
    %2747 = vdwg.mxu0
    %v2748 = vmax.f32 %v2660, 0.0
    %v2749 = vmax.f32 %v2662, 0.0
    %v2750 = vmax.f32 %v2742, 0.0
    %v2751 = vmax.f32 %v2744, 0.0
    %v2752 = vpack.c.bf16 %v2748, %v2748
    %v2753 = vpack.c.bf16 %v2749, %v2749
    %v2754 = vpack.c.bf16 %v2750, %v2750
    %v2755 = vpack.c.bf16 %v2751, %v2751
    %v2756 = vld [vmem:[#allocation17] sm:$0xff]
    %v2757 = vld [vmem:[#allocation17 + $0x8] sm:$0xff]
    %v2758 = vld [vmem:[#allocation17 + $0x10] sm:$0xff]
    %v2759 = vld [vmem:[#allocation17 + $0x18] sm:$0xff]
    %v2760 = vld [vmem:[#allocation17 + $0x20] sm:$0xff]
    %v2761 = vld [vmem:[#allocation17 + $0x28] sm:$0xff]
    %v2762 = vld [vmem:[#allocation17 + $0x30] sm:$0xff]
    %v2763 = vld [vmem:[#allocation17 + $0x38] sm:$0xff]
    %v2764 = vld [vmem:[#allocation17 + $0x40] sm:$0xff]
    %v2765 = vld [vmem:[#allocation17 + $0x48] sm:$0xff]
    %v2766 = vld [vmem:[#allocation17 + $0x50] sm:$0xff]
    %v2767 = vld [vmem:[#allocation17 + $0x58] sm:$0xff]
    %v2768 = vld [vmem:[#allocation17 + $0x60] sm:$0xff]
    %v2769 = vld [vmem:[#allocation17 + $0x68] sm:$0xff]
    %v2770 = vld [vmem:[#allocation17 + $0x70] sm:$0xff]
    %v2771 = vld [vmem:[#allocation17 + $0x78] sm:$0xff]
    %v2772 = vld [vmem:[#allocation17 + $0x80] sm:$0xff]
    %v2773 = vld [vmem:[#allocation17 + $0x88] sm:$0xff]
    %v2774 = vld [vmem:[#allocation17 + $0x90] sm:$0xff]
    %v2775 = vld [vmem:[#allocation17 + $0x98] sm:$0xff]
    %v2776 = vld [vmem:[#allocation17 + $0xa0] sm:$0xff]
    %v2777 = vld [vmem:[#allocation17 + $0xa8] sm:$0xff]
    %v2778 = vld [vmem:[#allocation17 + $0xb0] sm:$0xff]
    %v2779 = vld [vmem:[#allocation17 + $0xb8] sm:$0xff]
    %v2780 = vld [vmem:[#allocation17 + $0xc0] sm:$0xff]
    %v2781 = vld [vmem:[#allocation17 + $0xc8] sm:$0xff]
    %v2782 = vld [vmem:[#allocation17 + $0xd0] sm:$0xff]
    %v2783 = vld [vmem:[#allocation17 + $0xd8] sm:$0xff]
    %v2784 = vld [vmem:[#allocation17 + $0xe0] sm:$0xff]
    %v2785 = vld [vmem:[#allocation17 + $0xe8] sm:$0xff]
    %v2786 = vld [vmem:[#allocation17 + $0xf0] sm:$0xff]
    %v2787 = vld [vmem:[#allocation17 + $0xf8] sm:$0xff]
    %v2788 = vld [vmem:[#allocation17 + $0x100] sm:$0xff]
    %v2789 = vld [vmem:[#allocation17 + $0x108] sm:$0xff]
    %v2790 = vld [vmem:[#allocation17 + $0x110] sm:$0xff]
    %v2791 = vld [vmem:[#allocation17 + $0x118] sm:$0xff]
    %v2792 = vld [vmem:[#allocation17 + $0x120] sm:$0xff]
    %v2793 = vld [vmem:[#allocation17 + $0x128] sm:$0xff]
    %v2794 = vld [vmem:[#allocation17 + $0x130] sm:$0xff]
    %v2795 = vld [vmem:[#allocation17 + $0x138] sm:$0xff]
    %v2796 = vld [vmem:[#allocation17 + $0x140] sm:$0xff]
    %v2797 = vld [vmem:[#allocation17 + $0x148] sm:$0xff]
    %v2798 = vld [vmem:[#allocation17 + $0x150] sm:$0xff]
    %v2799 = vld [vmem:[#allocation17 + $0x158] sm:$0xff]
    %v2800 = vld [vmem:[#allocation17 + $0x160] sm:$0xff]
    %v2801 = vld [vmem:[#allocation17 + $0x168] sm:$0xff]
    %v2802 = vld [vmem:[#allocation17 + $0x170] sm:$0xff]
    %v2803 = vld [vmem:[#allocation17 + $0x178] sm:$0xff]
    %v2804 = vld [vmem:[#allocation17 + $0x180] sm:$0xff]
    %v2805 = vld [vmem:[#allocation17 + $0x188] sm:$0xff]
    %v2806 = vld [vmem:[#allocation17 + $0x190] sm:$0xff]
    %v2807 = vld [vmem:[#allocation17 + $0x198] sm:$0xff]
    %v2808 = vld [vmem:[#allocation17 + $0x1a0] sm:$0xff]
    %v2809 = vld [vmem:[#allocation17 + $0x1a8] sm:$0xff]
    %v2810 = vld [vmem:[#allocation17 + $0x1b0] sm:$0xff]
    %v2811 = vld [vmem:[#allocation17 + $0x1b8] sm:$0xff]
    %v2812 = vld [vmem:[#allocation17 + $0x1c0] sm:$0xff]
    %v2813 = vld [vmem:[#allocation17 + $0x1c8] sm:$0xff]
    %v2814 = vld [vmem:[#allocation17 + $0x1d0] sm:$0xff]
    %v2815 = vld [vmem:[#allocation17 + $0x1d8] sm:$0xff]
    %v2816 = vld [vmem:[#allocation17 + $0x1e0] sm:$0xff]
    %v2817 = vld [vmem:[#allocation17 + $0x1e8] sm:$0xff]
    %v2818 = vld [vmem:[#allocation17 + $0x1f0] sm:$0xff]
    %v2819 = vld [vmem:[#allocation17 + $0x1f8] sm:$0xff]
    %v2820 = vld [vmem:[#allocation17 + $0x200] sm:$0xff]
    %v2821 = vld [vmem:[#allocation17 + $0x208] sm:$0xff]
    %v2822 = vld [vmem:[#allocation17 + $0x210] sm:$0xff]
    %v2823 = vld [vmem:[#allocation17 + $0x218] sm:$0xff]
    %v2824 = vld [vmem:[#allocation17 + $0x220] sm:$0xff]
    %v2825 = vld [vmem:[#allocation17 + $0x228] sm:$0xff]
    %v2826 = vld [vmem:[#allocation17 + $0x230] sm:$0xff]
    %v2827 = vld [vmem:[#allocation17 + $0x238] sm:$0xff]
    %v2828 = vld [vmem:[#allocation17 + $0x240] sm:$0xff]
    %v2829 = vld [vmem:[#allocation17 + $0x248] sm:$0xff]
    %v2830 = vld [vmem:[#allocation17 + $0x250] sm:$0xff]
    %v2831 = vld [vmem:[#allocation17 + $0x258] sm:$0xff]
    %v2832 = vld [vmem:[#allocation17 + $0x260] sm:$0xff]
    %v2833 = vld [vmem:[#allocation17 + $0x268] sm:$0xff]
    %v2834 = vld [vmem:[#allocation17 + $0x270] sm:$0xff]
    %v2835 = vld [vmem:[#allocation17 + $0x278] sm:$0xff]
    %v2836 = vld [vmem:[#allocation17 + $0x280] sm:$0xff]
    %v2837 = vld [vmem:[#allocation17 + $0x288] sm:$0xff]
    %v2838 = vld [vmem:[#allocation17 + $0x290] sm:$0xff]
    %v2839 = vld [vmem:[#allocation17 + $0x298] sm:$0xff]
    %v2840 = vld [vmem:[#allocation17 + $0x2a0] sm:$0xff]
    %v2841 = vld [vmem:[#allocation17 + $0x2a8] sm:$0xff]
    %v2842 = vld [vmem:[#allocation17 + $0x2b0] sm:$0xff]
    %v2843 = vld [vmem:[#allocation17 + $0x2b8] sm:$0xff]
    %v2844 = vld [vmem:[#allocation17 + $0x2c0] sm:$0xff]
    %v2845 = vld [vmem:[#allocation17 + $0x2c8] sm:$0xff]
    %v2846 = vld [vmem:[#allocation17 + $0x2d0] sm:$0xff]
    %v2847 = vld [vmem:[#allocation17 + $0x2d8] sm:$0xff]
    %v2848 = vld [vmem:[#allocation17 + $0x2e0] sm:$0xff]
    %v2849 = vld [vmem:[#allocation17 + $0x2e8] sm:$0xff]
    %v2850 = vld [vmem:[#allocation17 + $0x2f0] sm:$0xff]
    %v2851 = vld [vmem:[#allocation17 + $0x2f8] sm:$0xff]
    %v2852 = vld [vmem:[#allocation17 + $0x300] sm:$0xff]
    %v2853 = vld [vmem:[#allocation17 + $0x308] sm:$0xff]
    %v2854 = vld [vmem:[#allocation17 + $0x310] sm:$0xff]
    %v2855 = vld [vmem:[#allocation17 + $0x318] sm:$0xff]
    %v2856 = vld [vmem:[#allocation17 + $0x320] sm:$0xff]
    %v2857 = vld [vmem:[#allocation17 + $0x328] sm:$0xff]
    %v2858 = vld [vmem:[#allocation17 + $0x330] sm:$0xff]
    %v2859 = vld [vmem:[#allocation17 + $0x338] sm:$0xff]
    %v2860 = vld [vmem:[#allocation17 + $0x340] sm:$0xff]
    %v2861 = vld [vmem:[#allocation17 + $0x348] sm:$0xff]
    %v2862 = vld [vmem:[#allocation17 + $0x350] sm:$0xff]
    %v2863 = vld [vmem:[#allocation17 + $0x358] sm:$0xff]
    %v2864 = vld [vmem:[#allocation17 + $0x360] sm:$0xff]
    %v2865 = vld [vmem:[#allocation17 + $0x368] sm:$0xff]
    %v2866 = vld [vmem:[#allocation17 + $0x370] sm:$0xff]
    %v2867 = vld [vmem:[#allocation17 + $0x378] sm:$0xff]
    %v2868 = vld [vmem:[#allocation17 + $0x380] sm:$0xff]
    %v2869 = vld [vmem:[#allocation17 + $0x388] sm:$0xff]
    %v2870 = vld [vmem:[#allocation17 + $0x390] sm:$0xff]
    %v2871 = vld [vmem:[#allocation17 + $0x398] sm:$0xff]
    %v2872 = vld [vmem:[#allocation17 + $0x3a0] sm:$0xff]
    %v2873 = vld [vmem:[#allocation17 + $0x3a8] sm:$0xff]
    %v2874 = vld [vmem:[#allocation17 + $0x3b0] sm:$0xff]
    %v2875 = vld [vmem:[#allocation17 + $0x3b8] sm:$0xff]
    %v2876 = vld [vmem:[#allocation17 + $0x3c0] sm:$0xff]
    %v2877 = vld [vmem:[#allocation17 + $0x3c8] sm:$0xff]
    %v2878 = vld [vmem:[#allocation17 + $0x3d0] sm:$0xff]
    %v2879 = vld [vmem:[#allocation17 + $0x3d8] sm:$0xff]
    %v2880 = vld [vmem:[#allocation17 + $0x3e0] sm:$0xff]
    %v2881 = vld [vmem:[#allocation17 + $0x3e8] sm:$0xff]
    %v2882 = vld [vmem:[#allocation17 + $0x3f0] sm:$0xff]
    %v2883 = vld [vmem:[#allocation17 + $0x3f8] sm:$0xff]
    %v2884 = vld [vmem:[%s14] sm:$0xf]
    %v3013 = vunpack.c.l.b16 %v2756
    %v3014 = vunpack.c.h.b16 %v2756
    %v3015 = vunpack.c.l.b16 %v2757
    %v3016 = vunpack.c.h.b16 %v2757
    %v3017 = vunpack.c.l.b16 %v2758
    %v3018 = vunpack.c.h.b16 %v2758
    %v3019 = vunpack.c.l.b16 %v2759
    %v3020 = vunpack.c.h.b16 %v2759
    %v3021 = vunpack.c.l.b16 %v2760
    %v3022 = vunpack.c.h.b16 %v2760
    %v3023 = vunpack.c.l.b16 %v2761
    %v3024 = vunpack.c.h.b16 %v2761
    %v3025 = vunpack.c.l.b16 %v2762
    %v3026 = vunpack.c.h.b16 %v2762
    %v3027 = vunpack.c.l.b16 %v2763
    %v3028 = vunpack.c.h.b16 %v2763
    %v3029 = vunpack.c.l.b16 %v2764
    %v3030 = vunpack.c.h.b16 %v2764
    %v3031 = vunpack.c.l.b16 %v2765
    %v3032 = vunpack.c.h.b16 %v2765
    %v3033 = vunpack.c.l.b16 %v2766
    %v3034 = vunpack.c.h.b16 %v2766
    %v3035 = vunpack.c.l.b16 %v2767
    %v3036 = vunpack.c.h.b16 %v2767
    %v3037 = vunpack.c.l.b16 %v2768
    %v3038 = vunpack.c.h.b16 %v2768
    %v3039 = vunpack.c.l.b16 %v2769
    %v3040 = vunpack.c.h.b16 %v2769
    %v3041 = vunpack.c.l.b16 %v2770
    %v3042 = vunpack.c.h.b16 %v2770
    %v3043 = vunpack.c.l.b16 %v2771
    %v3044 = vunpack.c.h.b16 %v2771
    %v3045 = vunpack.c.l.b16 %v2772
    %v3046 = vunpack.c.h.b16 %v2772
    %v3047 = vunpack.c.l.b16 %v2773
    %v3048 = vunpack.c.h.b16 %v2773
    %v3049 = vunpack.c.l.b16 %v2774
    %v3050 = vunpack.c.h.b16 %v2774
    %v3051 = vunpack.c.l.b16 %v2775
    %v3052 = vunpack.c.h.b16 %v2775
    %v3053 = vunpack.c.l.b16 %v2776
    %v3054 = vunpack.c.h.b16 %v2776
    %v3055 = vunpack.c.l.b16 %v2777
    %v3056 = vunpack.c.h.b16 %v2777
    %v3057 = vunpack.c.l.b16 %v2778
    %v3058 = vunpack.c.h.b16 %v2778
    %v3059 = vunpack.c.l.b16 %v2779
    %v3060 = vunpack.c.h.b16 %v2779
    %v3061 = vunpack.c.l.b16 %v2780
    %v3062 = vunpack.c.h.b16 %v2780
    %v3063 = vunpack.c.l.b16 %v2781
    %v3064 = vunpack.c.h.b16 %v2781
    %v3065 = vunpack.c.l.b16 %v2782
    %v3066 = vunpack.c.h.b16 %v2782
    %v3067 = vunpack.c.l.b16 %v2783
    %v3068 = vunpack.c.h.b16 %v2783
    %v3069 = vunpack.c.l.b16 %v2784
    %v3070 = vunpack.c.h.b16 %v2784
    %v3071 = vunpack.c.l.b16 %v2785
    %v3072 = vunpack.c.h.b16 %v2785
    %v3073 = vunpack.c.l.b16 %v2786
    %v3074 = vunpack.c.h.b16 %v2786
    %v3075 = vunpack.c.l.b16 %v2787
    %v3076 = vunpack.c.h.b16 %v2787
    %v3077 = vunpack.c.l.b16 %v2788
    %v3078 = vunpack.c.h.b16 %v2788
    %v3079 = vunpack.c.l.b16 %v2789
    %v3080 = vunpack.c.h.b16 %v2789
    %v3081 = vunpack.c.l.b16 %v2790
    %v3082 = vunpack.c.h.b16 %v2790
    %v3083 = vunpack.c.l.b16 %v2791
    %v3084 = vunpack.c.h.b16 %v2791
    %v3085 = vunpack.c.l.b16 %v2792
    %v3086 = vunpack.c.h.b16 %v2792
    %v3087 = vunpack.c.l.b16 %v2793
    %v3088 = vunpack.c.h.b16 %v2793
    %v3089 = vunpack.c.l.b16 %v2794
    %v3090 = vunpack.c.h.b16 %v2794
    %v3091 = vunpack.c.l.b16 %v2795
    %v3092 = vunpack.c.h.b16 %v2795
    %v3093 = vunpack.c.l.b16 %v2796
    %v3094 = vunpack.c.h.b16 %v2796
    %v3095 = vunpack.c.l.b16 %v2797
    %v3096 = vunpack.c.h.b16 %v2797
    %v3097 = vunpack.c.l.b16 %v2798
    %v3098 = vunpack.c.h.b16 %v2798
    %v3099 = vunpack.c.l.b16 %v2799
    %v3100 = vunpack.c.h.b16 %v2799
    %v3101 = vunpack.c.l.b16 %v2800
    %v3102 = vunpack.c.h.b16 %v2800
    %v3103 = vunpack.c.l.b16 %v2801
    %v3104 = vunpack.c.h.b16 %v2801
    %v3105 = vunpack.c.l.b16 %v2802
    %v3106 = vunpack.c.h.b16 %v2802
    %v3107 = vunpack.c.l.b16 %v2803
    %v3108 = vunpack.c.h.b16 %v2803
    %v3109 = vunpack.c.l.b16 %v2804
    %v3110 = vunpack.c.h.b16 %v2804
    %v3111 = vunpack.c.l.b16 %v2805
    %v3112 = vunpack.c.h.b16 %v2805
    %v3113 = vunpack.c.l.b16 %v2806
    %v3114 = vunpack.c.h.b16 %v2806
    %v3115 = vunpack.c.l.b16 %v2807
    %v3116 = vunpack.c.h.b16 %v2807
    %v3117 = vunpack.c.l.b16 %v2808
    %v3118 = vunpack.c.h.b16 %v2808
    %v3119 = vunpack.c.l.b16 %v2809
    %v3120 = vunpack.c.h.b16 %v2809
    %v3121 = vunpack.c.l.b16 %v2810
    %v3122 = vunpack.c.h.b16 %v2810
    %v3123 = vunpack.c.l.b16 %v2811
    %v3124 = vunpack.c.h.b16 %v2811
    %v3125 = vunpack.c.l.b16 %v2812
    %v3126 = vunpack.c.h.b16 %v2812
    %v3127 = vunpack.c.l.b16 %v2813
    %v3128 = vunpack.c.h.b16 %v2813
    %v3129 = vunpack.c.l.b16 %v2814
    %v3130 = vunpack.c.h.b16 %v2814
    %v3131 = vunpack.c.l.b16 %v2815
    %v3132 = vunpack.c.h.b16 %v2815
    %v3133 = vunpack.c.l.b16 %v2816
    %v3134 = vunpack.c.h.b16 %v2816
    %v3135 = vunpack.c.l.b16 %v2817
    %v3136 = vunpack.c.h.b16 %v2817
    %v3137 = vunpack.c.l.b16 %v2818
    %v3138 = vunpack.c.h.b16 %v2818
    %v3139 = vunpack.c.l.b16 %v2819
    %v3140 = vunpack.c.h.b16 %v2819
    %v3141 = vunpack.c.l.b16 %v2820
    %v3142 = vunpack.c.h.b16 %v2820
    %v3143 = vunpack.c.l.b16 %v2821
    %v3144 = vunpack.c.h.b16 %v2821
    %v3145 = vunpack.c.l.b16 %v2822
    %v3146 = vunpack.c.h.b16 %v2822
    %v3147 = vunpack.c.l.b16 %v2823
    %v3148 = vunpack.c.h.b16 %v2823
    %v3149 = vunpack.c.l.b16 %v2824
    %v3150 = vunpack.c.h.b16 %v2824
    %v3151 = vunpack.c.l.b16 %v2825
    %v3152 = vunpack.c.h.b16 %v2825
    %v3153 = vunpack.c.l.b16 %v2826
    %v3154 = vunpack.c.h.b16 %v2826
    %v3155 = vunpack.c.l.b16 %v2827
    %v3156 = vunpack.c.h.b16 %v2827
    %v3157 = vunpack.c.l.b16 %v2828
    %v3158 = vunpack.c.h.b16 %v2828
    %v3159 = vunpack.c.l.b16 %v2829
    %v3160 = vunpack.c.h.b16 %v2829
    %v3161 = vunpack.c.l.b16 %v2830
    %v3162 = vunpack.c.h.b16 %v2830
    %v3163 = vunpack.c.l.b16 %v2831
    %v3164 = vunpack.c.h.b16 %v2831
    %v3165 = vunpack.c.l.b16 %v2832
    %v3166 = vunpack.c.h.b16 %v2832
    %v3167 = vunpack.c.l.b16 %v2833
    %v3168 = vunpack.c.h.b16 %v2833
    %v3169 = vunpack.c.l.b16 %v2834
    %v3170 = vunpack.c.h.b16 %v2834
    %v3171 = vunpack.c.l.b16 %v2835
    %v3172 = vunpack.c.h.b16 %v2835
    %v3173 = vunpack.c.l.b16 %v2836
    %v3174 = vunpack.c.h.b16 %v2836
    %v3175 = vunpack.c.l.b16 %v2837
    %v3176 = vunpack.c.h.b16 %v2837
    %v3177 = vunpack.c.l.b16 %v2838
    %v3178 = vunpack.c.h.b16 %v2838
    %v3179 = vunpack.c.l.b16 %v2839
    %v3180 = vunpack.c.h.b16 %v2839
    %v3181 = vunpack.c.l.b16 %v2840
    %v3182 = vunpack.c.h.b16 %v2840
    %v3183 = vunpack.c.l.b16 %v2841
    %v3184 = vunpack.c.h.b16 %v2841
    %v3185 = vunpack.c.l.b16 %v2842
    %v3186 = vunpack.c.h.b16 %v2842
    %v3187 = vunpack.c.l.b16 %v2843
    %v3188 = vunpack.c.h.b16 %v2843
    %v3189 = vunpack.c.l.b16 %v2844
    %v3190 = vunpack.c.h.b16 %v2844
    %v3191 = vunpack.c.l.b16 %v2845
    %v3192 = vunpack.c.h.b16 %v2845
    %v3193 = vunpack.c.l.b16 %v2846
    %v3194 = vunpack.c.h.b16 %v2846
    %v3195 = vunpack.c.l.b16 %v2847
    %v3196 = vunpack.c.h.b16 %v2847
    %v3197 = vunpack.c.l.b16 %v2848
    %v3198 = vunpack.c.h.b16 %v2848
    %v3199 = vunpack.c.l.b16 %v2849
    %v3200 = vunpack.c.h.b16 %v2849
    %v3201 = vunpack.c.l.b16 %v2850
    %v3202 = vunpack.c.h.b16 %v2850
    %v3203 = vunpack.c.l.b16 %v2851
    %v3204 = vunpack.c.h.b16 %v2851
    %v3205 = vunpack.c.l.b16 %v2852
    %v3206 = vunpack.c.h.b16 %v2852
    %v3207 = vunpack.c.l.b16 %v2853
    %v3208 = vunpack.c.h.b16 %v2853
    %v3209 = vunpack.c.l.b16 %v2854
    %v3210 = vunpack.c.h.b16 %v2854
    %v3211 = vunpack.c.l.b16 %v2855
    %v3212 = vunpack.c.h.b16 %v2855
    %v3213 = vunpack.c.l.b16 %v2856
    %v3214 = vunpack.c.h.b16 %v2856
    %v3215 = vunpack.c.l.b16 %v2857
    %v3216 = vunpack.c.h.b16 %v2857
    %v3217 = vunpack.c.l.b16 %v2858
    %v3218 = vunpack.c.h.b16 %v2858
    %v3219 = vunpack.c.l.b16 %v2859
    %v3220 = vunpack.c.h.b16 %v2859
    %v3221 = vunpack.c.l.b16 %v2860
    %v3222 = vunpack.c.h.b16 %v2860
    %v3223 = vunpack.c.l.b16 %v2861
    %v3224 = vunpack.c.h.b16 %v2861
    %v3225 = vunpack.c.l.b16 %v2862
    %v3226 = vunpack.c.h.b16 %v2862
    %v3227 = vunpack.c.l.b16 %v2863
    %v3228 = vunpack.c.h.b16 %v2863
    %v3229 = vunpack.c.l.b16 %v2864
    %v3230 = vunpack.c.h.b16 %v2864
    %v3231 = vunpack.c.l.b16 %v2865
    %v3232 = vunpack.c.h.b16 %v2865
    %v3233 = vunpack.c.l.b16 %v2866
    %v3234 = vunpack.c.h.b16 %v2866
    %v3235 = vunpack.c.l.b16 %v2867
    %v3236 = vunpack.c.h.b16 %v2867
    %v3237 = vunpack.c.l.b16 %v2868
    %v3238 = vunpack.c.h.b16 %v2868
    %v3239 = vunpack.c.l.b16 %v2869
    %v3240 = vunpack.c.h.b16 %v2869
    %v3241 = vunpack.c.l.b16 %v2870
    %v3242 = vunpack.c.h.b16 %v2870
    %v3243 = vunpack.c.l.b16 %v2871
    %v3244 = vunpack.c.h.b16 %v2871
    %v3245 = vunpack.c.l.b16 %v2872
    %v3246 = vunpack.c.h.b16 %v2872
    %v3247 = vunpack.c.l.b16 %v2873
    %v3248 = vunpack.c.h.b16 %v2873
    %v3249 = vunpack.c.l.b16 %v2874
    %v3250 = vunpack.c.h.b16 %v2874
    %v3251 = vunpack.c.l.b16 %v2875
    %v3252 = vunpack.c.h.b16 %v2875
    %v3253 = vunpack.c.l.b16 %v2876
    %v3254 = vunpack.c.h.b16 %v2876
    %v3255 = vunpack.c.l.b16 %v2877
    %v3256 = vunpack.c.h.b16 %v2877
    %v3257 = vunpack.c.l.b16 %v2878
    %v3258 = vunpack.c.h.b16 %v2878
    %v3259 = vunpack.c.l.b16 %v2879
    %v3260 = vunpack.c.h.b16 %v2879
    %v3261 = vunpack.c.l.b16 %v2880
    %v3262 = vunpack.c.h.b16 %v2880
    %v3263 = vunpack.c.l.b16 %v2881
    %v3264 = vunpack.c.h.b16 %v2881
    %v3265 = vunpack.c.l.b16 %v2882
    %v3266 = vunpack.c.h.b16 %v2882
    %v3267 = vunpack.c.l.b16 %v2883
    %v3268 = vunpack.c.h.b16 %v2883
    %v3269 = vpack.c.b16 %v3017, %v3013
    %v3270 = vpack.c.b16 %v3018, %v3014
    %v3271 = vpack.c.b16 %v3019, %v3015
    %v3272 = vpack.c.b16 %v3020, %v3016
    %v3273 = vpack.c.b16 %v3025, %v3021
    %v3274 = vpack.c.b16 %v3026, %v3022
    %v3275 = vpack.c.b16 %v3027, %v3023
    %v3276 = vpack.c.b16 %v3028, %v3024
    %v3277 = vpack.c.b16 %v3033, %v3029
    %v3278 = vpack.c.b16 %v3034, %v3030
    %v3279 = vpack.c.b16 %v3035, %v3031
    %v3280 = vpack.c.b16 %v3036, %v3032
    %v3281 = vpack.c.b16 %v3041, %v3037
    %v3282 = vpack.c.b16 %v3042, %v3038
    %v3283 = vpack.c.b16 %v3043, %v3039
    %v3284 = vpack.c.b16 %v3044, %v3040
    %v3285 = vpack.c.b16 %v3049, %v3045
    %v3286 = vpack.c.b16 %v3050, %v3046
    %v3287 = vpack.c.b16 %v3051, %v3047
    %v3288 = vpack.c.b16 %v3052, %v3048
    %v3289 = vpack.c.b16 %v3057, %v3053
    %v3290 = vpack.c.b16 %v3058, %v3054
    %v3291 = vpack.c.b16 %v3059, %v3055
    %v3292 = vpack.c.b16 %v3060, %v3056
    %v3293 = vpack.c.b16 %v3065, %v3061
    %v3294 = vpack.c.b16 %v3066, %v3062
    %v3295 = vpack.c.b16 %v3067, %v3063
    %v3296 = vpack.c.b16 %v3068, %v3064
    %v3297 = vpack.c.b16 %v3073, %v3069
    %v3298 = vpack.c.b16 %v3074, %v3070
    %v3299 = vpack.c.b16 %v3075, %v3071
    %v3300 = vpack.c.b16 %v3076, %v3072
    %v3301 = vpack.c.b16 %v3081, %v3077
    %v3302 = vpack.c.b16 %v3082, %v3078
    %v3303 = vpack.c.b16 %v3083, %v3079
    %v3304 = vpack.c.b16 %v3084, %v3080
    %v3305 = vpack.c.b16 %v3089, %v3085
    %v3306 = vpack.c.b16 %v3090, %v3086
    %v3307 = vpack.c.b16 %v3091, %v3087
    %v3308 = vpack.c.b16 %v3092, %v3088
    %v3309 = vpack.c.b16 %v3097, %v3093
    %v3310 = vpack.c.b16 %v3098, %v3094
    %v3311 = vpack.c.b16 %v3099, %v3095
    %v3312 = vpack.c.b16 %v3100, %v3096
    %v3313 = vpack.c.b16 %v3105, %v3101
    %v3314 = vpack.c.b16 %v3106, %v3102
    %v3315 = vpack.c.b16 %v3107, %v3103
    %v3316 = vpack.c.b16 %v3108, %v3104
    %v3317 = vpack.c.b16 %v3113, %v3109
    %v3318 = vpack.c.b16 %v3114, %v3110
    %v3319 = vpack.c.b16 %v3115, %v3111
    %v3320 = vpack.c.b16 %v3116, %v3112
    %v3321 = vpack.c.b16 %v3121, %v3117
    %v3322 = vpack.c.b16 %v3122, %v3118
    %v3323 = vpack.c.b16 %v3123, %v3119
    %v3324 = vpack.c.b16 %v3124, %v3120
    %v3325 = vpack.c.b16 %v3129, %v3125
    %v3326 = vpack.c.b16 %v3130, %v3126
    %v3327 = vpack.c.b16 %v3131, %v3127
    %v3328 = vpack.c.b16 %v3132, %v3128
    %v3329 = vpack.c.b16 %v3137, %v3133
    %v3330 = vpack.c.b16 %v3138, %v3134
    %v3331 = vpack.c.b16 %v3139, %v3135
    %v3332 = vpack.c.b16 %v3140, %v3136
    %v3333 = vpack.c.b16 %v3145, %v3141
    %v3334 = vpack.c.b16 %v3146, %v3142
    %v3335 = vpack.c.b16 %v3147, %v3143
    %v3336 = vpack.c.b16 %v3148, %v3144
    %v3337 = vpack.c.b16 %v3153, %v3149
    %v3338 = vpack.c.b16 %v3154, %v3150
    %v3339 = vpack.c.b16 %v3155, %v3151
    %v3340 = vpack.c.b16 %v3156, %v3152
    %v3341 = vpack.c.b16 %v3161, %v3157
    %v3342 = vpack.c.b16 %v3162, %v3158
    %v3343 = vpack.c.b16 %v3163, %v3159
    %v3344 = vpack.c.b16 %v3164, %v3160
    %v3345 = vpack.c.b16 %v3169, %v3165
    %v3346 = vpack.c.b16 %v3170, %v3166
    %v3347 = vpack.c.b16 %v3171, %v3167
    %v3348 = vpack.c.b16 %v3172, %v3168
    %v3349 = vpack.c.b16 %v3177, %v3173
    %v3350 = vpack.c.b16 %v3178, %v3174
    %v3351 = vpack.c.b16 %v3179, %v3175
    %v3352 = vpack.c.b16 %v3180, %v3176
    %v3353 = vpack.c.b16 %v3185, %v3181
    %v3354 = vpack.c.b16 %v3186, %v3182
    %v3355 = vpack.c.b16 %v3187, %v3183
    %v3356 = vpack.c.b16 %v3188, %v3184
    %v3357 = vpack.c.b16 %v3193, %v3189
    %v3358 = vpack.c.b16 %v3194, %v3190
    %v3359 = vpack.c.b16 %v3195, %v3191
    %v3360 = vpack.c.b16 %v3196, %v3192
    %v3361 = vpack.c.b16 %v3201, %v3197
    %v3362 = vpack.c.b16 %v3202, %v3198
    %v3363 = vpack.c.b16 %v3203, %v3199
    %v3364 = vpack.c.b16 %v3204, %v3200
    %v3365 = vpack.c.b16 %v3209, %v3205
    %v3366 = vpack.c.b16 %v3210, %v3206
    %v3367 = vpack.c.b16 %v3211, %v3207
    %v3368 = vpack.c.b16 %v3212, %v3208
    %v3369 = vpack.c.b16 %v3217, %v3213
    %v3370 = vpack.c.b16 %v3218, %v3214
    %v3371 = vpack.c.b16 %v3219, %v3215
    %v3372 = vpack.c.b16 %v3220, %v3216
    %v3373 = vpack.c.b16 %v3225, %v3221
    %v3374 = vpack.c.b16 %v3226, %v3222
    %v3375 = vpack.c.b16 %v3227, %v3223
    %v3376 = vpack.c.b16 %v3228, %v3224
    %v3377 = vpack.c.b16 %v3233, %v3229
    %v3378 = vpack.c.b16 %v3234, %v3230
    %v3379 = vpack.c.b16 %v3235, %v3231
    %v3380 = vpack.c.b16 %v3236, %v3232
    %v3381 = vpack.c.b16 %v3241, %v3237
    %v3382 = vpack.c.b16 %v3242, %v3238
    %v3383 = vpack.c.b16 %v3243, %v3239
    %v3384 = vpack.c.b16 %v3244, %v3240
    %v3385 = vpack.c.b16 %v3249, %v3245
    %v3386 = vpack.c.b16 %v3250, %v3246
    %v3387 = vpack.c.b16 %v3251, %v3247
    %v3388 = vpack.c.b16 %v3252, %v3248
    %v3389 = vpack.c.b16 %v3257, %v3253
    %v3390 = vpack.c.b16 %v3258, %v3254
    %v3391 = vpack.c.b16 %v3259, %v3255
    %v3392 = vpack.c.b16 %v3260, %v3256
    %v3393 = vpack.c.b16 %v3265, %v3261
    %v3394 = vpack.c.b16 %v3266, %v3262
    %v3395 = vpack.c.b16 %v3267, %v3263
    %v3396 = vpack.c.b16 %v3268, %v3264
    %v3526 = vlaneseq
    %v3527 = vshrl.u32 %v3526, 7
    %v3528 = vsub.s32 0, %v3527
    %v3529 = vrot.slane %v2884, %v3528
    %v3530 = vlaneseq
    %v3531 = vshrl.u32 %v3530, 7
    %v3532 = vsub.s32 1, %v3531
    %v3533 = vrot.slane %v2884, %v3532
    %v3534 = vlaneseq
    %v3535 = vshrl.u32 %v3534, 7
    %v3536 = vsub.s32 2, %v3535
    %v3537 = vrot.slane %v2884, %v3536
    %v3538 = vlaneseq
    %v3539 = vshrl.u32 %v3538, 7
    %v3540 = vsub.s32 3, %v3539
    %v3541 = vrot.slane %v2884, %v3540
    %3546 = vmatprep.subr.bf16.mxu0 %v3270
    %3547 = vmatpush1.bf16.msra.mxu0 %v3269
    %3548 = vmatprep.subr.bf16.mxu0 %v3274
    %3549 = vmatpush1.bf16.msra.mxu0 %v3273
    %3550 = vmatprep.subr.bf16.mxu0 %v3278
    %3551 = vmatpush1.bf16.msra.mxu0 %v3277
    %3552 = vmatprep.subr.bf16.mxu0 %v3282
    %3553 = vmatpush1.bf16.msra.mxu0 %v3281
    %3554 = vmatprep.subr.bf16.mxu0 %v3286
    %3555 = vmatpush1.bf16.msra.mxu0 %v3285
    %3556 = vmatprep.subr.bf16.mxu0 %v3290
    %3557 = vmatpush1.bf16.msra.mxu0 %v3289
    %3558 = vmatprep.subr.bf16.mxu0 %v3294
    %3559 = vmatpush1.bf16.msra.mxu0 %v3293
    %3560 = vmatprep.subr.bf16.mxu0 %v3298
    %3561 = vmatpush1.bf16.msra.mxu0 %v3297
    %3562 = vmatprep.subr.bf16.mxu0 %v3302
    %3563 = vmatpush1.bf16.msra.mxu0 %v3301
    %3564 = vmatprep.subr.bf16.mxu0 %v3306
    %3565 = vmatpush1.bf16.msra.mxu0 %v3305
    %3566 = vmatprep.subr.bf16.mxu0 %v3310
    %3567 = vmatpush1.bf16.msra.mxu0 %v3309
    %3568 = vmatprep.subr.bf16.mxu0 %v3314
    %3569 = vmatpush1.bf16.msra.mxu0 %v3313
    %3570 = vmatprep.subr.bf16.mxu0 %v3318
    %3571 = vmatpush1.bf16.msra.mxu0 %v3317
    %3572 = vmatprep.subr.bf16.mxu0 %v3322
    %3573 = vmatpush1.bf16.msra.mxu0 %v3321
    %3574 = vmatprep.subr.bf16.mxu0 %v3326
    %3575 = vmatpush1.bf16.msra.mxu0 %v3325
    %3576 = vmatprep.subr.bf16.mxu0 %v3330
    %3577 = vmatpush1.bf16.msra.mxu0 %v3329
    %3578 = vmatprep.mubr.bf16.mxu0 %v2753
    %3579 = vmatmul.mubr.bf16.gmra.mrb[0].mxu0 %v2752
    %v3580 = vpop.f32.mrb[0].mxu0
    %v3581 = vadd.f32 %v3529, %v3580
    %v3582 = vpop.f32.mrb[0].mxu0
    %v3583 = vadd.f32 %v3533, %v3582
    %v3584 = vpop.f32.mrb[0].mxu0
    %v3585 = vpop.f32.mrb[0].mxu0
    %3586 = vdwg.mxu0
    %3587 = vmatprep.subr.bf16.mxu0 %v3334
    %3588 = vmatpush1.bf16.msra.mxu0 %v3333
    %3589 = vmatprep.subr.bf16.mxu0 %v3338
    %3590 = vmatpush1.bf16.msra.mxu0 %v3337
    %3591 = vmatprep.subr.bf16.mxu0 %v3342
    %3592 = vmatpush1.bf16.msra.mxu0 %v3341
    %3593 = vmatprep.subr.bf16.mxu0 %v3346
    %3594 = vmatpush1.bf16.msra.mxu0 %v3345
    %3595 = vmatprep.subr.bf16.mxu0 %v3350
    %3596 = vmatpush1.bf16.msra.mxu0 %v3349
    %3597 = vmatprep.subr.bf16.mxu0 %v3354
    %3598 = vmatpush1.bf16.msra.mxu0 %v3353
    %3599 = vmatprep.subr.bf16.mxu0 %v3358
    %3600 = vmatpush1.bf16.msra.mxu0 %v3357
    %3601 = vmatprep.subr.bf16.mxu0 %v3362
    %3602 = vmatpush1.bf16.msra.mxu0 %v3361
    %3603 = vmatprep.subr.bf16.mxu0 %v3366
    %3604 = vmatpush1.bf16.msra.mxu0 %v3365
    %3605 = vmatprep.subr.bf16.mxu0 %v3370
    %3606 = vmatpush1.bf16.msra.mxu0 %v3369
    %3607 = vmatprep.subr.bf16.mxu0 %v3374
    %3608 = vmatpush1.bf16.msra.mxu0 %v3373
    %3609 = vmatprep.subr.bf16.mxu0 %v3378
    %3610 = vmatpush1.bf16.msra.mxu0 %v3377
    %3611 = vmatprep.subr.bf16.mxu0 %v3382
    %3612 = vmatpush1.bf16.msra.mxu0 %v3381
    %3613 = vmatprep.subr.bf16.mxu0 %v3386
    %3614 = vmatpush1.bf16.msra.mxu0 %v3385
    %3615 = vmatprep.subr.bf16.mxu0 %v3390
    %3616 = vmatpush1.bf16.msra.mxu0 %v3389
    %3617 = vmatprep.subr.bf16.mxu0 %v3394
    %3618 = vmatpush1.bf16.msra.mxu0 %v3393
    %3619 = vmatprep.mubr.bf16.mxu0 %v2755
    %3620 = vmatmul.mubr.bf16.gmra.mrb[0].mxu0 %v2754
    %v3621 = vpop.f32.mrb[0].mxu0
    %v3622 = vadd.f32 %v3581, %v3621
    %v3623 = vpop.f32.mrb[0].mxu0
    %v3624 = vadd.f32 %v3583, %v3623
    %v3625 = vpop.f32.mrb[0].mxu0
    %v3626 = vpop.f32.mrb[0].mxu0
    %3627 = vdwg.mxu0
    %3628 = vmatprep.subr.bf16.mxu0 %v3272
    %3629 = vmatpush1.bf16.msra.mxu0 %v3271
    %3630 = vmatprep.subr.bf16.mxu0 %v3276
    %3631 = vmatpush1.bf16.msra.mxu0 %v3275
    %3632 = vmatprep.subr.bf16.mxu0 %v3280
    %3633 = vmatpush1.bf16.msra.mxu0 %v3279
    %3634 = vmatprep.subr.bf16.mxu0 %v3284
    %3635 = vmatpush1.bf16.msra.mxu0 %v3283
    %3636 = vmatprep.subr.bf16.mxu0 %v3288
    %3637 = vmatpush1.bf16.msra.mxu0 %v3287
    %3638 = vmatprep.subr.bf16.mxu0 %v3292
    %3639 = vmatpush1.bf16.msra.mxu0 %v3291
    %3640 = vmatprep.subr.bf16.mxu0 %v3296
    %3641 = vmatpush1.bf16.msra.mxu0 %v3295
    %3642 = vmatprep.subr.bf16.mxu0 %v3300
    %3643 = vmatpush1.bf16.msra.mxu0 %v3299
    %3644 = vmatprep.subr.bf16.mxu0 %v3304
    %3645 = vmatpush1.bf16.msra.mxu0 %v3303
    %3646 = vmatprep.subr.bf16.mxu0 %v3308
    %3647 = vmatpush1.bf16.msra.mxu0 %v3307
    %3648 = vmatprep.subr.bf16.mxu0 %v3312
    %3649 = vmatpush1.bf16.msra.mxu0 %v3311
    %3650 = vmatprep.subr.bf16.mxu0 %v3316
    %3651 = vmatpush1.bf16.msra.mxu0 %v3315
    %3652 = vmatprep.subr.bf16.mxu0 %v3320
    %3653 = vmatpush1.bf16.msra.mxu0 %v3319
    %3654 = vmatprep.subr.bf16.mxu0 %v3324
    %3655 = vmatpush1.bf16.msra.mxu0 %v3323
    %3656 = vmatprep.subr.bf16.mxu0 %v3328
    %3657 = vmatpush1.bf16.msra.mxu0 %v3327
    %3658 = vmatprep.subr.bf16.mxu0 %v3332
    %3659 = vmatpush1.bf16.msra.mxu0 %v3331
    %3660 = vmatprep.mubr.bf16.mxu0 %v2753
    %3661 = vmatmul.mubr.bf16.gmra.mrb[0].mxu0 %v2752
    %v3662 = vpop.f32.mrb[0].mxu0
    %v3663 = vadd.f32 %v3537, %v3662
    %v3664 = vpop.f32.mrb[0].mxu0
    %v3665 = vadd.f32 %v3541, %v3664
    %v3666 = vpop.f32.mrb[0].mxu0
    %v3667 = vpop.f32.mrb[0].mxu0
    %3668 = vdwg.mxu0
    %3669 = vmatprep.subr.bf16.mxu0 %v3336
    %3670 = vmatpush1.bf16.msra.mxu0 %v3335
    %3671 = vmatprep.subr.bf16.mxu0 %v3340
    %3672 = vmatpush1.bf16.msra.mxu0 %v3339
    %3673 = vmatprep.subr.bf16.mxu0 %v3344
    %3674 = vmatpush1.bf16.msra.mxu0 %v3343
    %3675 = vmatprep.subr.bf16.mxu0 %v3348
    %3676 = vmatpush1.bf16.msra.mxu0 %v3347
    %3677 = vmatprep.subr.bf16.mxu0 %v3352
    %3678 = vmatpush1.bf16.msra.mxu0 %v3351
    %3679 = vmatprep.subr.bf16.mxu0 %v3356
    %3680 = vmatpush1.bf16.msra.mxu0 %v3355
    %3681 = vmatprep.subr.bf16.mxu0 %v3360
    %3682 = vmatpush1.bf16.msra.mxu0 %v3359
    %3683 = vmatprep.subr.bf16.mxu0 %v3364
    %3684 = vmatpush1.bf16.msra.mxu0 %v3363
    %3685 = vmatprep.subr.bf16.mxu0 %v3368
    %3686 = vmatpush1.bf16.msra.mxu0 %v3367
    %3687 = vmatprep.subr.bf16.mxu0 %v3372
    %3688 = vmatpush1.bf16.msra.mxu0 %v3371
    %3689 = vmatprep.subr.bf16.mxu0 %v3376
    %3690 = vmatpush1.bf16.msra.mxu0 %v3375
    %3691 = vmatprep.subr.bf16.mxu0 %v3380
    %3692 = vmatpush1.bf16.msra.mxu0 %v3379
    %3693 = vmatprep.subr.bf16.mxu0 %v3384
    %3694 = vmatpush1.bf16.msra.mxu0 %v3383
    %3695 = vmatprep.subr.bf16.mxu0 %v3388
    %3696 = vmatpush1.bf16.msra.mxu0 %v3387
    %3697 = vmatprep.subr.bf16.mxu0 %v3392
    %3698 = vmatpush1.bf16.msra.mxu0 %v3391
    %3699 = vmatprep.subr.bf16.mxu0 %v3396
    %3700 = vmatpush1.bf16.msra.mxu0 %v3395
    %3701 = vmatprep.mubr.bf16.mxu0 %v2755
    %3702 = vmatmul.mubr.bf16.gmra.mrb[0].mxu0 %v2754
    %v3703 = vpop.f32.mrb[0].mxu0
    %v3704 = vadd.f32 %v3663, %v3703
    %v3705 = vpop.f32.mrb[0].mxu0
    %v3706 = vadd.f32 %v3665, %v3705
    %v3707 = vpop.f32.mrb[0].mxu0
    %v3708 = vpop.f32.mrb[0].mxu0
    %3709 = vdwg.mxu0
    %v3710 = vmax.f32 %v3622, 0.0
    %v3711 = vmax.f32 %v3624, 0.0
    %v3712 = vmax.f32 %v3704, 0.0
    %v3713 = vmax.f32 %v3706, 0.0
    %v3714 = vpack.c.bf16 %v3710, %v3710
    %v3715 = vpack.c.bf16 %v3711, %v3711
    %v3716 = vpack.c.bf16 %v3712, %v3712
    %v3717 = vpack.c.bf16 %v3713, %v3713
    %v3718 = vld [vmem:[#allocation19] sm:$0xff]
    %v3719 = vld [vmem:[#allocation19 + $0x8] sm:$0xff]
    %v3720 = vld [vmem:[#allocation19 + $0x10] sm:$0xff]
    %v3721 = vld [vmem:[#allocation19 + $0x18] sm:$0xff]
    %v3722 = vld [vmem:[#allocation19 + $0x20] sm:$0xff]
    %v3723 = vld [vmem:[#allocation19 + $0x28] sm:$0xff]
    %v3724 = vld [vmem:[#allocation19 + $0x30] sm:$0xff]
    %v3725 = vld [vmem:[#allocation19 + $0x38] sm:$0xff]
    %v3726 = vld [vmem:[#allocation19 + $0x40] sm:$0xff]
    %v3727 = vld [vmem:[#allocation19 + $0x48] sm:$0xff]
    %v3728 = vld [vmem:[#allocation19 + $0x50] sm:$0xff]
    %v3729 = vld [vmem:[#allocation19 + $0x58] sm:$0xff]
    %v3730 = vld [vmem:[#allocation19 + $0x60] sm:$0xff]
    %v3731 = vld [vmem:[#allocation19 + $0x68] sm:$0xff]
    %v3732 = vld [vmem:[#allocation19 + $0x70] sm:$0xff]
    %v3733 = vld [vmem:[#allocation19 + $0x78] sm:$0xff]
    %v3734 = vld [vmem:[#allocation19 + $0x80] sm:$0xff]
    %v3735 = vld [vmem:[#allocation19 + $0x88] sm:$0xff]
    %v3736 = vld [vmem:[#allocation19 + $0x90] sm:$0xff]
    %v3737 = vld [vmem:[#allocation19 + $0x98] sm:$0xff]
    %v3738 = vld [vmem:[#allocation19 + $0xa0] sm:$0xff]
    %v3739 = vld [vmem:[#allocation19 + $0xa8] sm:$0xff]
    %v3740 = vld [vmem:[#allocation19 + $0xb0] sm:$0xff]
    %v3741 = vld [vmem:[#allocation19 + $0xb8] sm:$0xff]
    %v3742 = vld [vmem:[#allocation19 + $0xc0] sm:$0xff]
    %v3743 = vld [vmem:[#allocation19 + $0xc8] sm:$0xff]
    %v3744 = vld [vmem:[#allocation19 + $0xd0] sm:$0xff]
    %v3745 = vld [vmem:[#allocation19 + $0xd8] sm:$0xff]
    %v3746 = vld [vmem:[#allocation19 + $0xe0] sm:$0xff]
    %v3747 = vld [vmem:[#allocation19 + $0xe8] sm:$0xff]
    %v3748 = vld [vmem:[#allocation19 + $0xf0] sm:$0xff]
    %v3749 = vld [vmem:[#allocation19 + $0xf8] sm:$0xff]
    %v3750 = vld [vmem:[#allocation19 + $0x100] sm:$0xff]
    %v3751 = vld [vmem:[#allocation19 + $0x108] sm:$0xff]
    %v3752 = vld [vmem:[#allocation19 + $0x110] sm:$0xff]
    %v3753 = vld [vmem:[#allocation19 + $0x118] sm:$0xff]
    %v3754 = vld [vmem:[#allocation19 + $0x120] sm:$0xff]
    %v3755 = vld [vmem:[#allocation19 + $0x128] sm:$0xff]
    %v3756 = vld [vmem:[#allocation19 + $0x130] sm:$0xff]
    %v3757 = vld [vmem:[#allocation19 + $0x138] sm:$0xff]
    %v3758 = vld [vmem:[#allocation19 + $0x140] sm:$0xff]
    %v3759 = vld [vmem:[#allocation19 + $0x148] sm:$0xff]
    %v3760 = vld [vmem:[#allocation19 + $0x150] sm:$0xff]
    %v3761 = vld [vmem:[#allocation19 + $0x158] sm:$0xff]
    %v3762 = vld [vmem:[#allocation19 + $0x160] sm:$0xff]
    %v3763 = vld [vmem:[#allocation19 + $0x168] sm:$0xff]
    %v3764 = vld [vmem:[#allocation19 + $0x170] sm:$0xff]
    %v3765 = vld [vmem:[#allocation19 + $0x178] sm:$0xff]
    %v3766 = vld [vmem:[#allocation19 + $0x180] sm:$0xff]
    %v3767 = vld [vmem:[#allocation19 + $0x188] sm:$0xff]
    %v3768 = vld [vmem:[#allocation19 + $0x190] sm:$0xff]
    %v3769 = vld [vmem:[#allocation19 + $0x198] sm:$0xff]
    %v3770 = vld [vmem:[#allocation19 + $0x1a0] sm:$0xff]
    %v3771 = vld [vmem:[#allocation19 + $0x1a8] sm:$0xff]
    %v3772 = vld [vmem:[#allocation19 + $0x1b0] sm:$0xff]
    %v3773 = vld [vmem:[#allocation19 + $0x1b8] sm:$0xff]
    %v3774 = vld [vmem:[#allocation19 + $0x1c0] sm:$0xff]
    %v3775 = vld [vmem:[#allocation19 + $0x1c8] sm:$0xff]
    %v3776 = vld [vmem:[#allocation19 + $0x1d0] sm:$0xff]
    %v3777 = vld [vmem:[#allocation19 + $0x1d8] sm:$0xff]
    %v3778 = vld [vmem:[#allocation19 + $0x1e0] sm:$0xff]
    %v3779 = vld [vmem:[#allocation19 + $0x1e8] sm:$0xff]
    %v3780 = vld [vmem:[#allocation19 + $0x1f0] sm:$0xff]
    %v3781 = vld [vmem:[#allocation19 + $0x1f8] sm:$0xff]
    %v3782 = vld [vmem:[#allocation19 + $0x200] sm:$0xff]
    %v3783 = vld [vmem:[#allocation19 + $0x208] sm:$0xff]
    %v3784 = vld [vmem:[#allocation19 + $0x210] sm:$0xff]
    %v3785 = vld [vmem:[#allocation19 + $0x218] sm:$0xff]
    %v3786 = vld [vmem:[#allocation19 + $0x220] sm:$0xff]
    %v3787 = vld [vmem:[#allocation19 + $0x228] sm:$0xff]
    %v3788 = vld [vmem:[#allocation19 + $0x230] sm:$0xff]
    %v3789 = vld [vmem:[#allocation19 + $0x238] sm:$0xff]
    %v3790 = vld [vmem:[#allocation19 + $0x240] sm:$0xff]
    %v3791 = vld [vmem:[#allocation19 + $0x248] sm:$0xff]
    %v3792 = vld [vmem:[#allocation19 + $0x250] sm:$0xff]
    %v3793 = vld [vmem:[#allocation19 + $0x258] sm:$0xff]
    %v3794 = vld [vmem:[#allocation19 + $0x260] sm:$0xff]
    %v3795 = vld [vmem:[#allocation19 + $0x268] sm:$0xff]
    %v3796 = vld [vmem:[#allocation19 + $0x270] sm:$0xff]
    %v3797 = vld [vmem:[#allocation19 + $0x278] sm:$0xff]
    %v3798 = vld [vmem:[#allocation19 + $0x280] sm:$0xff]
    %v3799 = vld [vmem:[#allocation19 + $0x288] sm:$0xff]
    %v3800 = vld [vmem:[#allocation19 + $0x290] sm:$0xff]
    %v3801 = vld [vmem:[#allocation19 + $0x298] sm:$0xff]
    %v3802 = vld [vmem:[#allocation19 + $0x2a0] sm:$0xff]
    %v3803 = vld [vmem:[#allocation19 + $0x2a8] sm:$0xff]
    %v3804 = vld [vmem:[#allocation19 + $0x2b0] sm:$0xff]
    %v3805 = vld [vmem:[#allocation19 + $0x2b8] sm:$0xff]
    %v3806 = vld [vmem:[#allocation19 + $0x2c0] sm:$0xff]
    %v3807 = vld [vmem:[#allocation19 + $0x2c8] sm:$0xff]
    %v3808 = vld [vmem:[#allocation19 + $0x2d0] sm:$0xff]
    %v3809 = vld [vmem:[#allocation19 + $0x2d8] sm:$0xff]
    %v3810 = vld [vmem:[#allocation19 + $0x2e0] sm:$0xff]
    %v3811 = vld [vmem:[#allocation19 + $0x2e8] sm:$0xff]
    %v3812 = vld [vmem:[#allocation19 + $0x2f0] sm:$0xff]
    %v3813 = vld [vmem:[#allocation19 + $0x2f8] sm:$0xff]
    %v3814 = vld [vmem:[#allocation19 + $0x300] sm:$0xff]
    %v3815 = vld [vmem:[#allocation19 + $0x308] sm:$0xff]
    %v3816 = vld [vmem:[#allocation19 + $0x310] sm:$0xff]
    %v3817 = vld [vmem:[#allocation19 + $0x318] sm:$0xff]
    %v3818 = vld [vmem:[#allocation19 + $0x320] sm:$0xff]
    %v3819 = vld [vmem:[#allocation19 + $0x328] sm:$0xff]
    %v3820 = vld [vmem:[#allocation19 + $0x330] sm:$0xff]
    %v3821 = vld [vmem:[#allocation19 + $0x338] sm:$0xff]
    %v3822 = vld [vmem:[#allocation19 + $0x340] sm:$0xff]
    %v3823 = vld [vmem:[#allocation19 + $0x348] sm:$0xff]
    %v3824 = vld [vmem:[#allocation19 + $0x350] sm:$0xff]
    %v3825 = vld [vmem:[#allocation19 + $0x358] sm:$0xff]
    %v3826 = vld [vmem:[#allocation19 + $0x360] sm:$0xff]
    %v3827 = vld [vmem:[#allocation19 + $0x368] sm:$0xff]
    %v3828 = vld [vmem:[#allocation19 + $0x370] sm:$0xff]
    %v3829 = vld [vmem:[#allocation19 + $0x378] sm:$0xff]
    %v3830 = vld [vmem:[#allocation19 + $0x380] sm:$0xff]
    %v3831 = vld [vmem:[#allocation19 + $0x388] sm:$0xff]
    %v3832 = vld [vmem:[#allocation19 + $0x390] sm:$0xff]
    %v3833 = vld [vmem:[#allocation19 + $0x398] sm:$0xff]
    %v3834 = vld [vmem:[#allocation19 + $0x3a0] sm:$0xff]
    %v3835 = vld [vmem:[#allocation19 + $0x3a8] sm:$0xff]
    %v3836 = vld [vmem:[#allocation19 + $0x3b0] sm:$0xff]
    %v3837 = vld [vmem:[#allocation19 + $0x3b8] sm:$0xff]
    %v3838 = vld [vmem:[#allocation19 + $0x3c0] sm:$0xff]
    %v3839 = vld [vmem:[#allocation19 + $0x3c8] sm:$0xff]
    %v3840 = vld [vmem:[#allocation19 + $0x3d0] sm:$0xff]
    %v3841 = vld [vmem:[#allocation19 + $0x3d8] sm:$0xff]
    %v3842 = vld [vmem:[#allocation19 + $0x3e0] sm:$0xff]
    %v3843 = vld [vmem:[#allocation19 + $0x3e8] sm:$0xff]
    %v3844 = vld [vmem:[#allocation19 + $0x3f0] sm:$0xff]
    %v3845 = vld [vmem:[#allocation19 + $0x3f8] sm:$0xff]
    %v3846 = vld [vmem:[%s16] sm:$0xf]
    %v3975 = vunpack.c.l.b16 %v3718
    %v3976 = vunpack.c.h.b16 %v3718
    %v3977 = vunpack.c.l.b16 %v3719
    %v3978 = vunpack.c.h.b16 %v3719
    %v3979 = vunpack.c.l.b16 %v3720
    %v3980 = vunpack.c.h.b16 %v3720
    %v3981 = vunpack.c.l.b16 %v3721
    %v3982 = vunpack.c.h.b16 %v3721
    %v3983 = vunpack.c.l.b16 %v3722
    %v3984 = vunpack.c.h.b16 %v3722
    %v3985 = vunpack.c.l.b16 %v3723
    %v3986 = vunpack.c.h.b16 %v3723
    %v3987 = vunpack.c.l.b16 %v3724
    %v3988 = vunpack.c.h.b16 %v3724
    %v3989 = vunpack.c.l.b16 %v3725
    %v3990 = vunpack.c.h.b16 %v3725
    %v3991 = vunpack.c.l.b16 %v3726
    %v3992 = vunpack.c.h.b16 %v3726
    %v3993 = vunpack.c.l.b16 %v3727
    %v3994 = vunpack.c.h.b16 %v3727
    %v3995 = vunpack.c.l.b16 %v3728
    %v3996 = vunpack.c.h.b16 %v3728
    %v3997 = vunpack.c.l.b16 %v3729
    %v3998 = vunpack.c.h.b16 %v3729
    %v3999 = vunpack.c.l.b16 %v3730
    %v4000 = vunpack.c.h.b16 %v3730
    %v4001 = vunpack.c.l.b16 %v3731
    %v4002 = vunpack.c.h.b16 %v3731
    %v4003 = vunpack.c.l.b16 %v3732
    %v4004 = vunpack.c.h.b16 %v3732
    %v4005 = vunpack.c.l.b16 %v3733
    %v4006 = vunpack.c.h.b16 %v3733
    %v4007 = vunpack.c.l.b16 %v3734
    %v4008 = vunpack.c.h.b16 %v3734
    %v4009 = vunpack.c.l.b16 %v3735
    %v4010 = vunpack.c.h.b16 %v3735
    %v4011 = vunpack.c.l.b16 %v3736
    %v4012 = vunpack.c.h.b16 %v3736
    %v4013 = vunpack.c.l.b16 %v3737
    %v4014 = vunpack.c.h.b16 %v3737
    %v4015 = vunpack.c.l.b16 %v3738
    %v4016 = vunpack.c.h.b16 %v3738
    %v4017 = vunpack.c.l.b16 %v3739
    %v4018 = vunpack.c.h.b16 %v3739
    %v4019 = vunpack.c.l.b16 %v3740
    %v4020 = vunpack.c.h.b16 %v3740
    %v4021 = vunpack.c.l.b16 %v3741
    %v4022 = vunpack.c.h.b16 %v3741
    %v4023 = vunpack.c.l.b16 %v3742
    %v4024 = vunpack.c.h.b16 %v3742
    %v4025 = vunpack.c.l.b16 %v3743
    %v4026 = vunpack.c.h.b16 %v3743
    %v4027 = vunpack.c.l.b16 %v3744
    %v4028 = vunpack.c.h.b16 %v3744
    %v4029 = vunpack.c.l.b16 %v3745
    %v4030 = vunpack.c.h.b16 %v3745
    %v4031 = vunpack.c.l.b16 %v3746
    %v4032 = vunpack.c.h.b16 %v3746
    %v4033 = vunpack.c.l.b16 %v3747
    %v4034 = vunpack.c.h.b16 %v3747
    %v4035 = vunpack.c.l.b16 %v3748
    %v4036 = vunpack.c.h.b16 %v3748
    %v4037 = vunpack.c.l.b16 %v3749
    %v4038 = vunpack.c.h.b16 %v3749
    %v4039 = vunpack.c.l.b16 %v3750
    %v4040 = vunpack.c.h.b16 %v3750
    %v4041 = vunpack.c.l.b16 %v3751
    %v4042 = vunpack.c.h.b16 %v3751
    %v4043 = vunpack.c.l.b16 %v3752
    %v4044 = vunpack.c.h.b16 %v3752
    %v4045 = vunpack.c.l.b16 %v3753
    %v4046 = vunpack.c.h.b16 %v3753
    %v4047 = vunpack.c.l.b16 %v3754
    %v4048 = vunpack.c.h.b16 %v3754
    %v4049 = vunpack.c.l.b16 %v3755
    %v4050 = vunpack.c.h.b16 %v3755
    %v4051 = vunpack.c.l.b16 %v3756
    %v4052 = vunpack.c.h.b16 %v3756
    %v4053 = vunpack.c.l.b16 %v3757
    %v4054 = vunpack.c.h.b16 %v3757
    %v4055 = vunpack.c.l.b16 %v3758
    %v4056 = vunpack.c.h.b16 %v3758
    %v4057 = vunpack.c.l.b16 %v3759
    %v4058 = vunpack.c.h.b16 %v3759
    %v4059 = vunpack.c.l.b16 %v3760
    %v4060 = vunpack.c.h.b16 %v3760
    %v4061 = vunpack.c.l.b16 %v3761
    %v4062 = vunpack.c.h.b16 %v3761
    %v4063 = vunpack.c.l.b16 %v3762
    %v4064 = vunpack.c.h.b16 %v3762
    %v4065 = vunpack.c.l.b16 %v3763
    %v4066 = vunpack.c.h.b16 %v3763
    %v4067 = vunpack.c.l.b16 %v3764
    %v4068 = vunpack.c.h.b16 %v3764
    %v4069 = vunpack.c.l.b16 %v3765
    %v4070 = vunpack.c.h.b16 %v3765
    %v4071 = vunpack.c.l.b16 %v3766
    %v4072 = vunpack.c.h.b16 %v3766
    %v4073 = vunpack.c.l.b16 %v3767
    %v4074 = vunpack.c.h.b16 %v3767
    %v4075 = vunpack.c.l.b16 %v3768
    %v4076 = vunpack.c.h.b16 %v3768
    %v4077 = vunpack.c.l.b16 %v3769
    %v4078 = vunpack.c.h.b16 %v3769
    %v4079 = vunpack.c.l.b16 %v3770
    %v4080 = vunpack.c.h.b16 %v3770
    %v4081 = vunpack.c.l.b16 %v3771
    %v4082 = vunpack.c.h.b16 %v3771
    %v4083 = vunpack.c.l.b16 %v3772
    %v4084 = vunpack.c.h.b16 %v3772
    %v4085 = vunpack.c.l.b16 %v3773
    %v4086 = vunpack.c.h.b16 %v3773
    %v4087 = vunpack.c.l.b16 %v3774
    %v4088 = vunpack.c.h.b16 %v3774
    %v4089 = vunpack.c.l.b16 %v3775
    %v4090 = vunpack.c.h.b16 %v3775
    %v4091 = vunpack.c.l.b16 %v3776
    %v4092 = vunpack.c.h.b16 %v3776
    %v4093 = vunpack.c.l.b16 %v3777
    %v4094 = vunpack.c.h.b16 %v3777
    %v4095 = vunpack.c.l.b16 %v3778
    %v4096 = vunpack.c.h.b16 %v3778
    %v4097 = vunpack.c.l.b16 %v3779
    %v4098 = vunpack.c.h.b16 %v3779
    %v4099 = vunpack.c.l.b16 %v3780
    %v4100 = vunpack.c.h.b16 %v3780
    %v4101 = vunpack.c.l.b16 %v3781
    %v4102 = vunpack.c.h.b16 %v3781
    %v4103 = vunpack.c.l.b16 %v3782
    %v4104 = vunpack.c.h.b16 %v3782
    %v4105 = vunpack.c.l.b16 %v3783
    %v4106 = vunpack.c.h.b16 %v3783
    %v4107 = vunpack.c.l.b16 %v3784
    %v4108 = vunpack.c.h.b16 %v3784
    %v4109 = vunpack.c.l.b16 %v3785
    %v4110 = vunpack.c.h.b16 %v3785
    %v4111 = vunpack.c.l.b16 %v3786
    %v4112 = vunpack.c.h.b16 %v3786
    %v4113 = vunpack.c.l.b16 %v3787
    %v4114 = vunpack.c.h.b16 %v3787
    %v4115 = vunpack.c.l.b16 %v3788
    %v4116 = vunpack.c.h.b16 %v3788
    %v4117 = vunpack.c.l.b16 %v3789
    %v4118 = vunpack.c.h.b16 %v3789
    %v4119 = vunpack.c.l.b16 %v3790
    %v4120 = vunpack.c.h.b16 %v3790
    %v4121 = vunpack.c.l.b16 %v3791
    %v4122 = vunpack.c.h.b16 %v3791
    %v4123 = vunpack.c.l.b16 %v3792
    %v4124 = vunpack.c.h.b16 %v3792
    %v4125 = vunpack.c.l.b16 %v3793
    %v4126 = vunpack.c.h.b16 %v3793
    %v4127 = vunpack.c.l.b16 %v3794
    %v4128 = vunpack.c.h.b16 %v3794
    %v4129 = vunpack.c.l.b16 %v3795
    %v4130 = vunpack.c.h.b16 %v3795
    %v4131 = vunpack.c.l.b16 %v3796
    %v4132 = vunpack.c.h.b16 %v3796
    %v4133 = vunpack.c.l.b16 %v3797
    %v4134 = vunpack.c.h.b16 %v3797
    %v4135 = vunpack.c.l.b16 %v3798
    %v4136 = vunpack.c.h.b16 %v3798
    %v4137 = vunpack.c.l.b16 %v3799
    %v4138 = vunpack.c.h.b16 %v3799
    %v4139 = vunpack.c.l.b16 %v3800
    %v4140 = vunpack.c.h.b16 %v3800
    %v4141 = vunpack.c.l.b16 %v3801
    %v4142 = vunpack.c.h.b16 %v3801
    %v4143 = vunpack.c.l.b16 %v3802
    %v4144 = vunpack.c.h.b16 %v3802
    %v4145 = vunpack.c.l.b16 %v3803
    %v4146 = vunpack.c.h.b16 %v3803
    %v4147 = vunpack.c.l.b16 %v3804
    %v4148 = vunpack.c.h.b16 %v3804
    %v4149 = vunpack.c.l.b16 %v3805
    %v4150 = vunpack.c.h.b16 %v3805
    %v4151 = vunpack.c.l.b16 %v3806
    %v4152 = vunpack.c.h.b16 %v3806
    %v4153 = vunpack.c.l.b16 %v3807
    %v4154 = vunpack.c.h.b16 %v3807
    %v4155 = vunpack.c.l.b16 %v3808
    %v4156 = vunpack.c.h.b16 %v3808
    %v4157 = vunpack.c.l.b16 %v3809
    %v4158 = vunpack.c.h.b16 %v3809
    %v4159 = vunpack.c.l.b16 %v3810
    %v4160 = vunpack.c.h.b16 %v3810
    %v4161 = vunpack.c.l.b16 %v3811
    %v4162 = vunpack.c.h.b16 %v3811
    %v4163 = vunpack.c.l.b16 %v3812
    %v4164 = vunpack.c.h.b16 %v3812
    %v4165 = vunpack.c.l.b16 %v3813
    %v4166 = vunpack.c.h.b16 %v3813
    %v4167 = vunpack.c.l.b16 %v3814
    %v4168 = vunpack.c.h.b16 %v3814
    %v4169 = vunpack.c.l.b16 %v3815
    %v4170 = vunpack.c.h.b16 %v3815
    %v4171 = vunpack.c.l.b16 %v3816
    %v4172 = vunpack.c.h.b16 %v3816
    %v4173 = vunpack.c.l.b16 %v3817
    %v4174 = vunpack.c.h.b16 %v3817
    %v4175 = vunpack.c.l.b16 %v3818
    %v4176 = vunpack.c.h.b16 %v3818
    %v4177 = vunpack.c.l.b16 %v3819
    %v4178 = vunpack.c.h.b16 %v3819
    %v4179 = vunpack.c.l.b16 %v3820
    %v4180 = vunpack.c.h.b16 %v3820
    %v4181 = vunpack.c.l.b16 %v3821
    %v4182 = vunpack.c.h.b16 %v3821
    %v4183 = vunpack.c.l.b16 %v3822
    %v4184 = vunpack.c.h.b16 %v3822
    %v4185 = vunpack.c.l.b16 %v3823
    %v4186 = vunpack.c.h.b16 %v3823
    %v4187 = vunpack.c.l.b16 %v3824
    %v4188 = vunpack.c.h.b16 %v3824
    %v4189 = vunpack.c.l.b16 %v3825
    %v4190 = vunpack.c.h.b16 %v3825
    %v4191 = vunpack.c.l.b16 %v3826
    %v4192 = vunpack.c.h.b16 %v3826
    %v4193 = vunpack.c.l.b16 %v3827
    %v4194 = vunpack.c.h.b16 %v3827
    %v4195 = vunpack.c.l.b16 %v3828
    %v4196 = vunpack.c.h.b16 %v3828
    %v4197 = vunpack.c.l.b16 %v3829
    %v4198 = vunpack.c.h.b16 %v3829
    %v4199 = vunpack.c.l.b16 %v3830
    %v4200 = vunpack.c.h.b16 %v3830
    %v4201 = vunpack.c.l.b16 %v3831
    %v4202 = vunpack.c.h.b16 %v3831
    %v4203 = vunpack.c.l.b16 %v3832
    %v4204 = vunpack.c.h.b16 %v3832
    %v4205 = vunpack.c.l.b16 %v3833
    %v4206 = vunpack.c.h.b16 %v3833
    %v4207 = vunpack.c.l.b16 %v3834
    %v4208 = vunpack.c.h.b16 %v3834
    %v4209 = vunpack.c.l.b16 %v3835
    %v4210 = vunpack.c.h.b16 %v3835
    %v4211 = vunpack.c.l.b16 %v3836
    %v4212 = vunpack.c.h.b16 %v3836
    %v4213 = vunpack.c.l.b16 %v3837
    %v4214 = vunpack.c.h.b16 %v3837
    %v4215 = vunpack.c.l.b16 %v3838
    %v4216 = vunpack.c.h.b16 %v3838
    %v4217 = vunpack.c.l.b16 %v3839
    %v4218 = vunpack.c.h.b16 %v3839
    %v4219 = vunpack.c.l.b16 %v3840
    %v4220 = vunpack.c.h.b16 %v3840
    %v4221 = vunpack.c.l.b16 %v3841
    %v4222 = vunpack.c.h.b16 %v3841
    %v4223 = vunpack.c.l.b16 %v3842
    %v4224 = vunpack.c.h.b16 %v3842
    %v4225 = vunpack.c.l.b16 %v3843
    %v4226 = vunpack.c.h.b16 %v3843
    %v4227 = vunpack.c.l.b16 %v3844
    %v4228 = vunpack.c.h.b16 %v3844
    %v4229 = vunpack.c.l.b16 %v3845
    %v4230 = vunpack.c.h.b16 %v3845
    %v4231 = vpack.c.b16 %v3979, %v3975
    %v4232 = vpack.c.b16 %v3980, %v3976
    %v4233 = vpack.c.b16 %v3981, %v3977
    %v4234 = vpack.c.b16 %v3982, %v3978
    %v4235 = vpack.c.b16 %v3987, %v3983
    %v4236 = vpack.c.b16 %v3988, %v3984
    %v4237 = vpack.c.b16 %v3989, %v3985
    %v4238 = vpack.c.b16 %v3990, %v3986
    %v4239 = vpack.c.b16 %v3995, %v3991
    %v4240 = vpack.c.b16 %v3996, %v3992
    %v4241 = vpack.c.b16 %v3997, %v3993
    %v4242 = vpack.c.b16 %v3998, %v3994
    %v4243 = vpack.c.b16 %v4003, %v3999
    %v4244 = vpack.c.b16 %v4004, %v4000
    %v4245 = vpack.c.b16 %v4005, %v4001
    %v4246 = vpack.c.b16 %v4006, %v4002
    %v4247 = vpack.c.b16 %v4011, %v4007
    %v4248 = vpack.c.b16 %v4012, %v4008
    %v4249 = vpack.c.b16 %v4013, %v4009
    %v4250 = vpack.c.b16 %v4014, %v4010
    %v4251 = vpack.c.b16 %v4019, %v4015
    %v4252 = vpack.c.b16 %v4020, %v4016
    %v4253 = vpack.c.b16 %v4021, %v4017
    %v4254 = vpack.c.b16 %v4022, %v4018
    %v4255 = vpack.c.b16 %v4027, %v4023
    %v4256 = vpack.c.b16 %v4028, %v4024
    %v4257 = vpack.c.b16 %v4029, %v4025
    %v4258 = vpack.c.b16 %v4030, %v4026
    %v4259 = vpack.c.b16 %v4035, %v4031
    %v4260 = vpack.c.b16 %v4036, %v4032
    %v4261 = vpack.c.b16 %v4037, %v4033
    %v4262 = vpack.c.b16 %v4038, %v4034
    %v4263 = vpack.c.b16 %v4043, %v4039
    %v4264 = vpack.c.b16 %v4044, %v4040
    %v4265 = vpack.c.b16 %v4045, %v4041
    %v4266 = vpack.c.b16 %v4046, %v4042
    %v4267 = vpack.c.b16 %v4051, %v4047
    %v4268 = vpack.c.b16 %v4052, %v4048
    %v4269 = vpack.c.b16 %v4053, %v4049
    %v4270 = vpack.c.b16 %v4054, %v4050
    %v4271 = vpack.c.b16 %v4059, %v4055
    %v4272 = vpack.c.b16 %v4060, %v4056
    %v4273 = vpack.c.b16 %v4061, %v4057
    %v4274 = vpack.c.b16 %v4062, %v4058
    %v4275 = vpack.c.b16 %v4067, %v4063
    %v4276 = vpack.c.b16 %v4068, %v4064
    %v4277 = vpack.c.b16 %v4069, %v4065
    %v4278 = vpack.c.b16 %v4070, %v4066
    %v4279 = vpack.c.b16 %v4075, %v4071
    %v4280 = vpack.c.b16 %v4076, %v4072
    %v4281 = vpack.c.b16 %v4077, %v4073
    %v4282 = vpack.c.b16 %v4078, %v4074
    %v4283 = vpack.c.b16 %v4083, %v4079
    %v4284 = vpack.c.b16 %v4084, %v4080
    %v4285 = vpack.c.b16 %v4085, %v4081
    %v4286 = vpack.c.b16 %v4086, %v4082
    %v4287 = vpack.c.b16 %v4091, %v4087
    %v4288 = vpack.c.b16 %v4092, %v4088
    %v4289 = vpack.c.b16 %v4093, %v4089
    %v4290 = vpack.c.b16 %v4094, %v4090
    %v4291 = vpack.c.b16 %v4099, %v4095
    %v4292 = vpack.c.b16 %v4100, %v4096
    %v4293 = vpack.c.b16 %v4101, %v4097
    %v4294 = vpack.c.b16 %v4102, %v4098
    %v4295 = vpack.c.b16 %v4107, %v4103
    %v4296 = vpack.c.b16 %v4108, %v4104
    %v4297 = vpack.c.b16 %v4109, %v4105
    %v4298 = vpack.c.b16 %v4110, %v4106
    %v4299 = vpack.c.b16 %v4115, %v4111
    %v4300 = vpack.c.b16 %v4116, %v4112
    %v4301 = vpack.c.b16 %v4117, %v4113
    %v4302 = vpack.c.b16 %v4118, %v4114
    %v4303 = vpack.c.b16 %v4123, %v4119
    %v4304 = vpack.c.b16 %v4124, %v4120
    %v4305 = vpack.c.b16 %v4125, %v4121
    %v4306 = vpack.c.b16 %v4126, %v4122
    %v4307 = vpack.c.b16 %v4131, %v4127
    %v4308 = vpack.c.b16 %v4132, %v4128
    %v4309 = vpack.c.b16 %v4133, %v4129
    %v4310 = vpack.c.b16 %v4134, %v4130
    %v4311 = vpack.c.b16 %v4139, %v4135
    %v4312 = vpack.c.b16 %v4140, %v4136
    %v4313 = vpack.c.b16 %v4141, %v4137
    %v4314 = vpack.c.b16 %v4142, %v4138
    %v4315 = vpack.c.b16 %v4147, %v4143
    %v4316 = vpack.c.b16 %v4148, %v4144
    %v4317 = vpack.c.b16 %v4149, %v4145
    %v4318 = vpack.c.b16 %v4150, %v4146
    %v4319 = vpack.c.b16 %v4155, %v4151
    %v4320 = vpack.c.b16 %v4156, %v4152
    %v4321 = vpack.c.b16 %v4157, %v4153
    %v4322 = vpack.c.b16 %v4158, %v4154
    %v4323 = vpack.c.b16 %v4163, %v4159
    %v4324 = vpack.c.b16 %v4164, %v4160
    %v4325 = vpack.c.b16 %v4165, %v4161
    %v4326 = vpack.c.b16 %v4166, %v4162
    %v4327 = vpack.c.b16 %v4171, %v4167
    %v4328 = vpack.c.b16 %v4172, %v4168
    %v4329 = vpack.c.b16 %v4173, %v4169
    %v4330 = vpack.c.b16 %v4174, %v4170
    %v4331 = vpack.c.b16 %v4179, %v4175
    %v4332 = vpack.c.b16 %v4180, %v4176
    %v4333 = vpack.c.b16 %v4181, %v4177
    %v4334 = vpack.c.b16 %v4182, %v4178
    %v4335 = vpack.c.b16 %v4187, %v4183
    %v4336 = vpack.c.b16 %v4188, %v4184
    %v4337 = vpack.c.b16 %v4189, %v4185
    %v4338 = vpack.c.b16 %v4190, %v4186
    %v4339 = vpack.c.b16 %v4195, %v4191
    %v4340 = vpack.c.b16 %v4196, %v4192
    %v4341 = vpack.c.b16 %v4197, %v4193
    %v4342 = vpack.c.b16 %v4198, %v4194
    %v4343 = vpack.c.b16 %v4203, %v4199
    %v4344 = vpack.c.b16 %v4204, %v4200
    %v4345 = vpack.c.b16 %v4205, %v4201
    %v4346 = vpack.c.b16 %v4206, %v4202
    %v4347 = vpack.c.b16 %v4211, %v4207
    %v4348 = vpack.c.b16 %v4212, %v4208
    %v4349 = vpack.c.b16 %v4213, %v4209
    %v4350 = vpack.c.b16 %v4214, %v4210
    %v4351 = vpack.c.b16 %v4219, %v4215
    %v4352 = vpack.c.b16 %v4220, %v4216
    %v4353 = vpack.c.b16 %v4221, %v4217
    %v4354 = vpack.c.b16 %v4222, %v4218
    %v4355 = vpack.c.b16 %v4227, %v4223
    %v4356 = vpack.c.b16 %v4228, %v4224
    %v4357 = vpack.c.b16 %v4229, %v4225
    %v4358 = vpack.c.b16 %v4230, %v4226
    %v4488 = vlaneseq
    %v4489 = vshrl.u32 %v4488, 7
    %v4490 = vsub.s32 0, %v4489
    %v4491 = vrot.slane %v3846, %v4490
    %v4492 = vlaneseq
    %v4493 = vshrl.u32 %v4492, 7
    %v4494 = vsub.s32 1, %v4493
    %v4495 = vrot.slane %v3846, %v4494
    %v4496 = vlaneseq
    %v4497 = vshrl.u32 %v4496, 7
    %v4498 = vsub.s32 2, %v4497
    %v4499 = vrot.slane %v3846, %v4498
    %v4500 = vlaneseq
    %v4501 = vshrl.u32 %v4500, 7
    %v4502 = vsub.s32 3, %v4501
    %v4503 = vrot.slane %v3846, %v4502
    %4508 = vmatprep.subr.bf16.mxu0 %v4232
    %4509 = vmatpush1.bf16.msra.mxu0 %v4231
    %4510 = vmatprep.subr.bf16.mxu0 %v4236
    %4511 = vmatpush1.bf16.msra.mxu0 %v4235
    %4512 = vmatprep.subr.bf16.mxu0 %v4240
    %4513 = vmatpush1.bf16.msra.mxu0 %v4239
    %4514 = vmatprep.subr.bf16.mxu0 %v4244
    %4515 = vmatpush1.bf16.msra.mxu0 %v4243
    %4516 = vmatprep.subr.bf16.mxu0 %v4248
    %4517 = vmatpush1.bf16.msra.mxu0 %v4247
    %4518 = vmatprep.subr.bf16.mxu0 %v4252
    %4519 = vmatpush1.bf16.msra.mxu0 %v4251
    %4520 = vmatprep.subr.bf16.mxu0 %v4256
    %4521 = vmatpush1.bf16.msra.mxu0 %v4255
    %4522 = vmatprep.subr.bf16.mxu0 %v4260
    %4523 = vmatpush1.bf16.msra.mxu0 %v4259
    %4524 = vmatprep.subr.bf16.mxu0 %v4264
    %4525 = vmatpush1.bf16.msra.mxu0 %v4263
    %4526 = vmatprep.subr.bf16.mxu0 %v4268
    %4527 = vmatpush1.bf16.msra.mxu0 %v4267
    %4528 = vmatprep.subr.bf16.mxu0 %v4272
    %4529 = vmatpush1.bf16.msra.mxu0 %v4271
    %4530 = vmatprep.subr.bf16.mxu0 %v4276
    %4531 = vmatpush1.bf16.msra.mxu0 %v4275
    %4532 = vmatprep.subr.bf16.mxu0 %v4280
    %4533 = vmatpush1.bf16.msra.mxu0 %v4279
    %4534 = vmatprep.subr.bf16.mxu0 %v4284
    %4535 = vmatpush1.bf16.msra.mxu0 %v4283
    %4536 = vmatprep.subr.bf16.mxu0 %v4288
    %4537 = vmatpush1.bf16.msra.mxu0 %v4287
    %4538 = vmatprep.subr.bf16.mxu0 %v4292
    %4539 = vmatpush1.bf16.msra.mxu0 %v4291
    %4540 = vmatprep.mubr.bf16.mxu0 %v3715
    %4541 = vmatmul.mubr.bf16.gmra.mrb[0].mxu0 %v3714
    %v4542 = vpop.f32.mrb[0].mxu0
    %v4543 = vadd.f32 %v4491, %v4542
    %v4544 = vpop.f32.mrb[0].mxu0
    %v4545 = vadd.f32 %v4495, %v4544
    %v4546 = vpop.f32.mrb[0].mxu0
    %v4547 = vpop.f32.mrb[0].mxu0
    %4548 = vdwg.mxu0
    %4549 = vmatprep.subr.bf16.mxu0 %v4296
    %4550 = vmatpush1.bf16.msra.mxu0 %v4295
    %4551 = vmatprep.subr.bf16.mxu0 %v4300
    %4552 = vmatpush1.bf16.msra.mxu0 %v4299
    %4553 = vmatprep.subr.bf16.mxu0 %v4304
    %4554 = vmatpush1.bf16.msra.mxu0 %v4303
    %4555 = vmatprep.subr.bf16.mxu0 %v4308
    %4556 = vmatpush1.bf16.msra.mxu0 %v4307
    %4557 = vmatprep.subr.bf16.mxu0 %v4312
    %4558 = vmatpush1.bf16.msra.mxu0 %v4311
    %4559 = vmatprep.subr.bf16.mxu0 %v4316
    %4560 = vmatpush1.bf16.msra.mxu0 %v4315
    %4561 = vmatprep.subr.bf16.mxu0 %v4320
    %4562 = vmatpush1.bf16.msra.mxu0 %v4319
    %4563 = vmatprep.subr.bf16.mxu0 %v4324
    %4564 = vmatpush1.bf16.msra.mxu0 %v4323
    %4565 = vmatprep.subr.bf16.mxu0 %v4328
    %4566 = vmatpush1.bf16.msra.mxu0 %v4327
    %4567 = vmatprep.subr.bf16.mxu0 %v4332
    %4568 = vmatpush1.bf16.msra.mxu0 %v4331
    %4569 = vmatprep.subr.bf16.mxu0 %v4336
    %4570 = vmatpush1.bf16.msra.mxu0 %v4335
    %4571 = vmatprep.subr.bf16.mxu0 %v4340
    %4572 = vmatpush1.bf16.msra.mxu0 %v4339
    %4573 = vmatprep.subr.bf16.mxu0 %v4344
    %4574 = vmatpush1.bf16.msra.mxu0 %v4343
    %4575 = vmatprep.subr.bf16.mxu0 %v4348
    %4576 = vmatpush1.bf16.msra.mxu0 %v4347
    %4577 = vmatprep.subr.bf16.mxu0 %v4352
    %4578 = vmatpush1.bf16.msra.mxu0 %v4351
    %4579 = vmatprep.subr.bf16.mxu0 %v4356
    %4580 = vmatpush1.bf16.msra.mxu0 %v4355
    %4581 = vmatprep.mubr.bf16.mxu0 %v3717
    %4582 = vmatmul.mubr.bf16.gmra.mrb[0].mxu0 %v3716
    %v4583 = vpop.f32.mrb[0].mxu0
    %v4584 = vadd.f32 %v4543, %v4583
    %v4585 = vpop.f32.mrb[0].mxu0
    %v4586 = vadd.f32 %v4545, %v4585
    %v4587 = vpop.f32.mrb[0].mxu0
    %v4588 = vpop.f32.mrb[0].mxu0
    %4589 = vdwg.mxu0
    %4590 = vmatprep.subr.bf16.mxu0 %v4234
    %4591 = vmatpush1.bf16.msra.mxu0 %v4233
    %4592 = vmatprep.subr.bf16.mxu0 %v4238
    %4593 = vmatpush1.bf16.msra.mxu0 %v4237
    %4594 = vmatprep.subr.bf16.mxu0 %v4242
    %4595 = vmatpush1.bf16.msra.mxu0 %v4241
    %4596 = vmatprep.subr.bf16.mxu0 %v4246
    %4597 = vmatpush1.bf16.msra.mxu0 %v4245
    %4598 = vmatprep.subr.bf16.mxu0 %v4250
    %4599 = vmatpush1.bf16.msra.mxu0 %v4249
    %4600 = vmatprep.subr.bf16.mxu0 %v4254
    %4601 = vmatpush1.bf16.msra.mxu0 %v4253
    %4602 = vmatprep.subr.bf16.mxu0 %v4258
    %4603 = vmatpush1.bf16.msra.mxu0 %v4257
    %4604 = vmatprep.subr.bf16.mxu0 %v4262
    %4605 = vmatpush1.bf16.msra.mxu0 %v4261
    %4606 = vmatprep.subr.bf16.mxu0 %v4266
    %4607 = vmatpush1.bf16.msra.mxu0 %v4265
    %4608 = vmatprep.subr.bf16.mxu0 %v4270
    %4609 = vmatpush1.bf16.msra.mxu0 %v4269
    %4610 = vmatprep.subr.bf16.mxu0 %v4274
    %4611 = vmatpush1.bf16.msra.mxu0 %v4273
    %4612 = vmatprep.subr.bf16.mxu0 %v4278
    %4613 = vmatpush1.bf16.msra.mxu0 %v4277
    %4614 = vmatprep.subr.bf16.mxu0 %v4282
    %4615 = vmatpush1.bf16.msra.mxu0 %v4281
    %4616 = vmatprep.subr.bf16.mxu0 %v4286
    %4617 = vmatpush1.bf16.msra.mxu0 %v4285
    %4618 = vmatprep.subr.bf16.mxu0 %v4290
    %4619 = vmatpush1.bf16.msra.mxu0 %v4289
    %4620 = vmatprep.subr.bf16.mxu0 %v4294
    %4621 = vmatpush1.bf16.msra.mxu0 %v4293
    %4622 = vmatprep.mubr.bf16.mxu0 %v3715
    %4623 = vmatmul.mubr.bf16.gmra.mrb[0].mxu0 %v3714
    %v4624 = vpop.f32.mrb[0].mxu0
    %v4625 = vadd.f32 %v4499, %v4624
    %v4626 = vpop.f32.mrb[0].mxu0
    %v4627 = vadd.f32 %v4503, %v4626
    %v4628 = vpop.f32.mrb[0].mxu0
    %v4629 = vpop.f32.mrb[0].mxu0
    %4630 = vdwg.mxu0
    %4631 = vmatprep.subr.bf16.mxu0 %v4298
    %4632 = vmatpush1.bf16.msra.mxu0 %v4297
    %4633 = vmatprep.subr.bf16.mxu0 %v4302
    %4634 = vmatpush1.bf16.msra.mxu0 %v4301
    %4635 = vmatprep.subr.bf16.mxu0 %v4306
    %4636 = vmatpush1.bf16.msra.mxu0 %v4305
    %4637 = vmatprep.subr.bf16.mxu0 %v4310
    %4638 = vmatpush1.bf16.msra.mxu0 %v4309
    %4639 = vmatprep.subr.bf16.mxu0 %v4314
    %4640 = vmatpush1.bf16.msra.mxu0 %v4313
    %4641 = vmatprep.subr.bf16.mxu0 %v4318
    %4642 = vmatpush1.bf16.msra.mxu0 %v4317
    %4643 = vmatprep.subr.bf16.mxu0 %v4322
    %4644 = vmatpush1.bf16.msra.mxu0 %v4321
    %4645 = vmatprep.subr.bf16.mxu0 %v4326
    %4646 = vmatpush1.bf16.msra.mxu0 %v4325
    %4647 = vmatprep.subr.bf16.mxu0 %v4330
    %4648 = vmatpush1.bf16.msra.mxu0 %v4329
    %4649 = vmatprep.subr.bf16.mxu0 %v4334
    %4650 = vmatpush1.bf16.msra.mxu0 %v4333
    %4651 = vmatprep.subr.bf16.mxu0 %v4338
    %4652 = vmatpush1.bf16.msra.mxu0 %v4337
    %4653 = vmatprep.subr.bf16.mxu0 %v4342
    %4654 = vmatpush1.bf16.msra.mxu0 %v4341
    %4655 = vmatprep.subr.bf16.mxu0 %v4346
    %4656 = vmatpush1.bf16.msra.mxu0 %v4345
    %4657 = vmatprep.subr.bf16.mxu0 %v4350
    %4658 = vmatpush1.bf16.msra.mxu0 %v4349
    %4659 = vmatprep.subr.bf16.mxu0 %v4354
    %4660 = vmatpush1.bf16.msra.mxu0 %v4353
    %4661 = vmatprep.subr.bf16.mxu0 %v4358
    %4662 = vmatpush1.bf16.msra.mxu0 %v4357
    %4663 = vmatprep.mubr.bf16.mxu0 %v3717
    %4664 = vmatmul.mubr.bf16.gmra.mrb[0].mxu0 %v3716
    %v4665 = vpop.f32.mrb[0].mxu0
    %v4666 = vadd.f32 %v4625, %v4665
    %v4667 = vpop.f32.mrb[0].mxu0
    %v4668 = vadd.f32 %v4627, %v4667
    %v4669 = vpop.f32.mrb[0].mxu0
    %v4670 = vpop.f32.mrb[0].mxu0
    %4671 = vdwg.mxu0
    %v4672 = vmax.f32 %v4584, 0.0
    %v4673 = vmax.f32 %v4586, 0.0
    %v4674 = vmax.f32 %v4666, 0.0
    %v4675 = vmax.f32 %v4668, 0.0
    %v4676 = vpack.c.bf16 %v4672, %v4672
    %v4677 = vpack.c.bf16 %v4673, %v4673
    %v4678 = vpack.c.bf16 %v4674, %v4674
    %v4679 = vpack.c.bf16 %v4675, %v4675
    %v4680 = vld [vmem:[#allocation20] sm:$0xff]
    %v4681 = vld [vmem:[#allocation20 + $0x8] sm:$0xff]
    %v4682 = vld [vmem:[#allocation20 + $0x10] sm:$0xff]
    %v4683 = vld [vmem:[#allocation20 + $0x18] sm:$0xff]
    %v4684 = vld [vmem:[#allocation20 + $0x20] sm:$0xff]
    %v4685 = vld [vmem:[#allocation20 + $0x28] sm:$0xff]
    %v4686 = vld [vmem:[#allocation20 + $0x30] sm:$0xff]
    %v4687 = vld [vmem:[#allocation20 + $0x38] sm:$0xff]
    %v4688 = vld [vmem:[#allocation20 + $0x40] sm:$0xff]
    %v4689 = vld [vmem:[#allocation20 + $0x48] sm:$0xff]
    %v4690 = vld [vmem:[#allocation20 + $0x50] sm:$0xff]
    %v4691 = vld [vmem:[#allocation20 + $0x58] sm:$0xff]
    %v4692 = vld [vmem:[#allocation20 + $0x60] sm:$0xff]
    %v4693 = vld [vmem:[#allocation20 + $0x68] sm:$0xff]
    %v4694 = vld [vmem:[#allocation20 + $0x70] sm:$0xff]
    %v4695 = vld [vmem:[#allocation20 + $0x78] sm:$0xff]
    %v4696 = vld [vmem:[#allocation20 + $0x80] sm:$0xff]
    %v4697 = vld [vmem:[#allocation20 + $0x88] sm:$0xff]
    %v4698 = vld [vmem:[#allocation20 + $0x90] sm:$0xff]
    %v4699 = vld [vmem:[#allocation20 + $0x98] sm:$0xff]
    %v4700 = vld [vmem:[#allocation20 + $0xa0] sm:$0xff]
    %v4701 = vld [vmem:[#allocation20 + $0xa8] sm:$0xff]
    %v4702 = vld [vmem:[#allocation20 + $0xb0] sm:$0xff]
    %v4703 = vld [vmem:[#allocation20 + $0xb8] sm:$0xff]
    %v4704 = vld [vmem:[#allocation20 + $0xc0] sm:$0xff]
    %v4705 = vld [vmem:[#allocation20 + $0xc8] sm:$0xff]
    %v4706 = vld [vmem:[#allocation20 + $0xd0] sm:$0xff]
    %v4707 = vld [vmem:[#allocation20 + $0xd8] sm:$0xff]
    %v4708 = vld [vmem:[#allocation20 + $0xe0] sm:$0xff]
    %v4709 = vld [vmem:[#allocation20 + $0xe8] sm:$0xff]
    %v4710 = vld [vmem:[#allocation20 + $0xf0] sm:$0xff]
    %v4711 = vld [vmem:[#allocation20 + $0xf8] sm:$0xff]
    %v4712 = vld [vmem:[#allocation20 + $0x100] sm:$0xff]
    %v4713 = vld [vmem:[#allocation20 + $0x108] sm:$0xff]
    %v4714 = vld [vmem:[#allocation20 + $0x110] sm:$0xff]
    %v4715 = vld [vmem:[#allocation20 + $0x118] sm:$0xff]
    %v4716 = vld [vmem:[#allocation20 + $0x120] sm:$0xff]
    %v4717 = vld [vmem:[#allocation20 + $0x128] sm:$0xff]
    %v4718 = vld [vmem:[#allocation20 + $0x130] sm:$0xff]
    %v4719 = vld [vmem:[#allocation20 + $0x138] sm:$0xff]
    %v4720 = vld [vmem:[#allocation20 + $0x140] sm:$0xff]
    %v4721 = vld [vmem:[#allocation20 + $0x148] sm:$0xff]
    %v4722 = vld [vmem:[#allocation20 + $0x150] sm:$0xff]
    %v4723 = vld [vmem:[#allocation20 + $0x158] sm:$0xff]
    %v4724 = vld [vmem:[#allocation20 + $0x160] sm:$0xff]
    %v4725 = vld [vmem:[#allocation20 + $0x168] sm:$0xff]
    %v4726 = vld [vmem:[#allocation20 + $0x170] sm:$0xff]
    %v4727 = vld [vmem:[#allocation20 + $0x178] sm:$0xff]
    %v4728 = vld [vmem:[#allocation20 + $0x180] sm:$0xff]
    %v4729 = vld [vmem:[#allocation20 + $0x188] sm:$0xff]
    %v4730 = vld [vmem:[#allocation20 + $0x190] sm:$0xff]
    %v4731 = vld [vmem:[#allocation20 + $0x198] sm:$0xff]
    %v4732 = vld [vmem:[#allocation20 + $0x1a0] sm:$0xff]
    %v4733 = vld [vmem:[#allocation20 + $0x1a8] sm:$0xff]
    %v4734 = vld [vmem:[#allocation20 + $0x1b0] sm:$0xff]
    %v4735 = vld [vmem:[#allocation20 + $0x1b8] sm:$0xff]
    %v4736 = vld [vmem:[#allocation20 + $0x1c0] sm:$0xff]
    %v4737 = vld [vmem:[#allocation20 + $0x1c8] sm:$0xff]
    %v4738 = vld [vmem:[#allocation20 + $0x1d0] sm:$0xff]
    %v4739 = vld [vmem:[#allocation20 + $0x1d8] sm:$0xff]
    %v4740 = vld [vmem:[#allocation20 + $0x1e0] sm:$0xff]
    %v4741 = vld [vmem:[#allocation20 + $0x1e8] sm:$0xff]
    %v4742 = vld [vmem:[#allocation20 + $0x1f0] sm:$0xff]
    %v4743 = vld [vmem:[#allocation20 + $0x1f8] sm:$0xff]
    %v4744 = vld [vmem:[#allocation20 + $0x200] sm:$0xff]
    %v4745 = vld [vmem:[#allocation20 + $0x208] sm:$0xff]
    %v4746 = vld [vmem:[#allocation20 + $0x210] sm:$0xff]
    %v4747 = vld [vmem:[#allocation20 + $0x218] sm:$0xff]
    %v4748 = vld [vmem:[#allocation20 + $0x220] sm:$0xff]
    %v4749 = vld [vmem:[#allocation20 + $0x228] sm:$0xff]
    %v4750 = vld [vmem:[#allocation20 + $0x230] sm:$0xff]
    %v4751 = vld [vmem:[#allocation20 + $0x238] sm:$0xff]
    %v4752 = vld [vmem:[#allocation20 + $0x240] sm:$0xff]
    %v4753 = vld [vmem:[#allocation20 + $0x248] sm:$0xff]
    %v4754 = vld [vmem:[#allocation20 + $0x250] sm:$0xff]
    %v4755 = vld [vmem:[#allocation20 + $0x258] sm:$0xff]
    %v4756 = vld [vmem:[#allocation20 + $0x260] sm:$0xff]
    %v4757 = vld [vmem:[#allocation20 + $0x268] sm:$0xff]
    %v4758 = vld [vmem:[#allocation20 + $0x270] sm:$0xff]
    %v4759 = vld [vmem:[#allocation20 + $0x278] sm:$0xff]
    %v4760 = vld [vmem:[#allocation20 + $0x280] sm:$0xff]
    %v4761 = vld [vmem:[#allocation20 + $0x288] sm:$0xff]
    %v4762 = vld [vmem:[#allocation20 + $0x290] sm:$0xff]
    %v4763 = vld [vmem:[#allocation20 + $0x298] sm:$0xff]
    %v4764 = vld [vmem:[#allocation20 + $0x2a0] sm:$0xff]
    %v4765 = vld [vmem:[#allocation20 + $0x2a8] sm:$0xff]
    %v4766 = vld [vmem:[#allocation20 + $0x2b0] sm:$0xff]
    %v4767 = vld [vmem:[#allocation20 + $0x2b8] sm:$0xff]
    %v4768 = vld [vmem:[#allocation20 + $0x2c0] sm:$0xff]
    %v4769 = vld [vmem:[#allocation20 + $0x2c8] sm:$0xff]
    %v4770 = vld [vmem:[#allocation20 + $0x2d0] sm:$0xff]
    %v4771 = vld [vmem:[#allocation20 + $0x2d8] sm:$0xff]
    %v4772 = vld [vmem:[#allocation20 + $0x2e0] sm:$0xff]
    %v4773 = vld [vmem:[#allocation20 + $0x2e8] sm:$0xff]
    %v4774 = vld [vmem:[#allocation20 + $0x2f0] sm:$0xff]
    %v4775 = vld [vmem:[#allocation20 + $0x2f8] sm:$0xff]
    %v4776 = vld [vmem:[#allocation20 + $0x300] sm:$0xff]
    %v4777 = vld [vmem:[#allocation20 + $0x308] sm:$0xff]
    %v4778 = vld [vmem:[#allocation20 + $0x310] sm:$0xff]
    %v4779 = vld [vmem:[#allocation20 + $0x318] sm:$0xff]
    %v4780 = vld [vmem:[#allocation20 + $0x320] sm:$0xff]
    %v4781 = vld [vmem:[#allocation20 + $0x328] sm:$0xff]
    %v4782 = vld [vmem:[#allocation20 + $0x330] sm:$0xff]
    %v4783 = vld [vmem:[#allocation20 + $0x338] sm:$0xff]
    %v4784 = vld [vmem:[#allocation20 + $0x340] sm:$0xff]
    %v4785 = vld [vmem:[#allocation20 + $0x348] sm:$0xff]
    %v4786 = vld [vmem:[#allocation20 + $0x350] sm:$0xff]
    %v4787 = vld [vmem:[#allocation20 + $0x358] sm:$0xff]
    %v4788 = vld [vmem:[#allocation20 + $0x360] sm:$0xff]
    %v4789 = vld [vmem:[#allocation20 + $0x368] sm:$0xff]
    %v4790 = vld [vmem:[#allocation20 + $0x370] sm:$0xff]
    %v4791 = vld [vmem:[#allocation20 + $0x378] sm:$0xff]
    %v4792 = vld [vmem:[#allocation20 + $0x380] sm:$0xff]
    %v4793 = vld [vmem:[#allocation20 + $0x388] sm:$0xff]
    %v4794 = vld [vmem:[#allocation20 + $0x390] sm:$0xff]
    %v4795 = vld [vmem:[#allocation20 + $0x398] sm:$0xff]
    %v4796 = vld [vmem:[#allocation20 + $0x3a0] sm:$0xff]
    %v4797 = vld [vmem:[#allocation20 + $0x3a8] sm:$0xff]
    %v4798 = vld [vmem:[#allocation20 + $0x3b0] sm:$0xff]
    %v4799 = vld [vmem:[#allocation20 + $0x3b8] sm:$0xff]
    %v4800 = vld [vmem:[#allocation20 + $0x3c0] sm:$0xff]
    %v4801 = vld [vmem:[#allocation20 + $0x3c8] sm:$0xff]
    %v4802 = vld [vmem:[#allocation20 + $0x3d0] sm:$0xff]
    %v4803 = vld [vmem:[#allocation20 + $0x3d8] sm:$0xff]
    %v4804 = vld [vmem:[#allocation20 + $0x3e0] sm:$0xff]
    %v4805 = vld [vmem:[#allocation20 + $0x3e8] sm:$0xff]
    %v4806 = vld [vmem:[#allocation20 + $0x3f0] sm:$0xff]
    %v4807 = vld [vmem:[#allocation20 + $0x3f8] sm:$0xff]
    %v4808 = vld [vmem:[%s18] sm:$0xf]
    %v4937 = vunpack.c.l.b16 %v4680
    %v4938 = vunpack.c.h.b16 %v4680
    %v4939 = vunpack.c.l.b16 %v4681
    %v4940 = vunpack.c.h.b16 %v4681
    %v4941 = vunpack.c.l.b16 %v4682
    %v4942 = vunpack.c.h.b16 %v4682
    %v4943 = vunpack.c.l.b16 %v4683
    %v4944 = vunpack.c.h.b16 %v4683
    %v4945 = vunpack.c.l.b16 %v4684
    %v4946 = vunpack.c.h.b16 %v4684
    %v4947 = vunpack.c.l.b16 %v4685
    %v4948 = vunpack.c.h.b16 %v4685
    %v4949 = vunpack.c.l.b16 %v4686
    %v4950 = vunpack.c.h.b16 %v4686
    %v4951 = vunpack.c.l.b16 %v4687
    %v4952 = vunpack.c.h.b16 %v4687
    %v4953 = vunpack.c.l.b16 %v4688
    %v4954 = vunpack.c.h.b16 %v4688
    %v4955 = vunpack.c.l.b16 %v4689
    %v4956 = vunpack.c.h.b16 %v4689
    %v4957 = vunpack.c.l.b16 %v4690
    %v4958 = vunpack.c.h.b16 %v4690
    %v4959 = vunpack.c.l.b16 %v4691
    %v4960 = vunpack.c.h.b16 %v4691
    %v4961 = vunpack.c.l.b16 %v4692
    %v4962 = vunpack.c.h.b16 %v4692
    %v4963 = vunpack.c.l.b16 %v4693
    %v4964 = vunpack.c.h.b16 %v4693
    %v4965 = vunpack.c.l.b16 %v4694
    %v4966 = vunpack.c.h.b16 %v4694
    %v4967 = vunpack.c.l.b16 %v4695
    %v4968 = vunpack.c.h.b16 %v4695
    %v4969 = vunpack.c.l.b16 %v4696
    %v4970 = vunpack.c.h.b16 %v4696
    %v4971 = vunpack.c.l.b16 %v4697
    %v4972 = vunpack.c.h.b16 %v4697
    %v4973 = vunpack.c.l.b16 %v4698
    %v4974 = vunpack.c.h.b16 %v4698
    %v4975 = vunpack.c.l.b16 %v4699
    %v4976 = vunpack.c.h.b16 %v4699
    %v4977 = vunpack.c.l.b16 %v4700
    %v4978 = vunpack.c.h.b16 %v4700
    %v4979 = vunpack.c.l.b16 %v4701
    %v4980 = vunpack.c.h.b16 %v4701
    %v4981 = vunpack.c.l.b16 %v4702
    %v4982 = vunpack.c.h.b16 %v4702
    %v4983 = vunpack.c.l.b16 %v4703
    %v4984 = vunpack.c.h.b16 %v4703
    %v4985 = vunpack.c.l.b16 %v4704
    %v4986 = vunpack.c.h.b16 %v4704
    %v4987 = vunpack.c.l.b16 %v4705
    %v4988 = vunpack.c.h.b16 %v4705
    %v4989 = vunpack.c.l.b16 %v4706
    %v4990 = vunpack.c.h.b16 %v4706
    %v4991 = vunpack.c.l.b16 %v4707
    %v4992 = vunpack.c.h.b16 %v4707
    %v4993 = vunpack.c.l.b16 %v4708
    %v4994 = vunpack.c.h.b16 %v4708
    %v4995 = vunpack.c.l.b16 %v4709
    %v4996 = vunpack.c.h.b16 %v4709
    %v4997 = vunpack.c.l.b16 %v4710
    %v4998 = vunpack.c.h.b16 %v4710
    %v4999 = vunpack.c.l.b16 %v4711
    %v5000 = vunpack.c.h.b16 %v4711
    %v5001 = vunpack.c.l.b16 %v4712
    %v5002 = vunpack.c.h.b16 %v4712
    %v5003 = vunpack.c.l.b16 %v4713
    %v5004 = vunpack.c.h.b16 %v4713
    %v5005 = vunpack.c.l.b16 %v4714
    %v5006 = vunpack.c.h.b16 %v4714
    %v5007 = vunpack.c.l.b16 %v4715
    %v5008 = vunpack.c.h.b16 %v4715
    %v5009 = vunpack.c.l.b16 %v4716
    %v5010 = vunpack.c.h.b16 %v4716
    %v5011 = vunpack.c.l.b16 %v4717
    %v5012 = vunpack.c.h.b16 %v4717
    %v5013 = vunpack.c.l.b16 %v4718
    %v5014 = vunpack.c.h.b16 %v4718
    %v5015 = vunpack.c.l.b16 %v4719
    %v5016 = vunpack.c.h.b16 %v4719
    %v5017 = vunpack.c.l.b16 %v4720
    %v5018 = vunpack.c.h.b16 %v4720
    %v5019 = vunpack.c.l.b16 %v4721
    %v5020 = vunpack.c.h.b16 %v4721
    %v5021 = vunpack.c.l.b16 %v4722
    %v5022 = vunpack.c.h.b16 %v4722
    %v5023 = vunpack.c.l.b16 %v4723
    %v5024 = vunpack.c.h.b16 %v4723
    %v5025 = vunpack.c.l.b16 %v4724
    %v5026 = vunpack.c.h.b16 %v4724
    %v5027 = vunpack.c.l.b16 %v4725
    %v5028 = vunpack.c.h.b16 %v4725
    %v5029 = vunpack.c.l.b16 %v4726
    %v5030 = vunpack.c.h.b16 %v4726
    %v5031 = vunpack.c.l.b16 %v4727
    %v5032 = vunpack.c.h.b16 %v4727
    %v5033 = vunpack.c.l.b16 %v4728
    %v5034 = vunpack.c.h.b16 %v4728
    %v5035 = vunpack.c.l.b16 %v4729
    %v5036 = vunpack.c.h.b16 %v4729
    %v5037 = vunpack.c.l.b16 %v4730
    %v5038 = vunpack.c.h.b16 %v4730
    %v5039 = vunpack.c.l.b16 %v4731
    %v5040 = vunpack.c.h.b16 %v4731
    %v5041 = vunpack.c.l.b16 %v4732
    %v5042 = vunpack.c.h.b16 %v4732
    %v5043 = vunpack.c.l.b16 %v4733
    %v5044 = vunpack.c.h.b16 %v4733
    %v5045 = vunpack.c.l.b16 %v4734
    %v5046 = vunpack.c.h.b16 %v4734
    %v5047 = vunpack.c.l.b16 %v4735
    %v5048 = vunpack.c.h.b16 %v4735
    %v5049 = vunpack.c.l.b16 %v4736
    %v5050 = vunpack.c.h.b16 %v4736
    %v5051 = vunpack.c.l.b16 %v4737
    %v5052 = vunpack.c.h.b16 %v4737
    %v5053 = vunpack.c.l.b16 %v4738
    %v5054 = vunpack.c.h.b16 %v4738
    %v5055 = vunpack.c.l.b16 %v4739
    %v5056 = vunpack.c.h.b16 %v4739
    %v5057 = vunpack.c.l.b16 %v4740
    %v5058 = vunpack.c.h.b16 %v4740
    %v5059 = vunpack.c.l.b16 %v4741
    %v5060 = vunpack.c.h.b16 %v4741
    %v5061 = vunpack.c.l.b16 %v4742
    %v5062 = vunpack.c.h.b16 %v4742
    %v5063 = vunpack.c.l.b16 %v4743
    %v5064 = vunpack.c.h.b16 %v4743
    %v5065 = vunpack.c.l.b16 %v4744
    %v5066 = vunpack.c.h.b16 %v4744
    %v5067 = vunpack.c.l.b16 %v4745
    %v5068 = vunpack.c.h.b16 %v4745
    %v5069 = vunpack.c.l.b16 %v4746
    %v5070 = vunpack.c.h.b16 %v4746
    %v5071 = vunpack.c.l.b16 %v4747
    %v5072 = vunpack.c.h.b16 %v4747
    %v5073 = vunpack.c.l.b16 %v4748
    %v5074 = vunpack.c.h.b16 %v4748
    %v5075 = vunpack.c.l.b16 %v4749
    %v5076 = vunpack.c.h.b16 %v4749
    %v5077 = vunpack.c.l.b16 %v4750
    %v5078 = vunpack.c.h.b16 %v4750
    %v5079 = vunpack.c.l.b16 %v4751
    %v5080 = vunpack.c.h.b16 %v4751
    %v5081 = vunpack.c.l.b16 %v4752
    %v5082 = vunpack.c.h.b16 %v4752
    %v5083 = vunpack.c.l.b16 %v4753
    %v5084 = vunpack.c.h.b16 %v4753
    %v5085 = vunpack.c.l.b16 %v4754
    %v5086 = vunpack.c.h.b16 %v4754
    %v5087 = vunpack.c.l.b16 %v4755
    %v5088 = vunpack.c.h.b16 %v4755
    %v5089 = vunpack.c.l.b16 %v4756
    %v5090 = vunpack.c.h.b16 %v4756
    %v5091 = vunpack.c.l.b16 %v4757
    %v5092 = vunpack.c.h.b16 %v4757
    %v5093 = vunpack.c.l.b16 %v4758
    %v5094 = vunpack.c.h.b16 %v4758
    %v5095 = vunpack.c.l.b16 %v4759
    %v5096 = vunpack.c.h.b16 %v4759
    %v5097 = vunpack.c.l.b16 %v4760
    %v5098 = vunpack.c.h.b16 %v4760
    %v5099 = vunpack.c.l.b16 %v4761
    %v5100 = vunpack.c.h.b16 %v4761
    %v5101 = vunpack.c.l.b16 %v4762
    %v5102 = vunpack.c.h.b16 %v4762
    %v5103 = vunpack.c.l.b16 %v4763
    %v5104 = vunpack.c.h.b16 %v4763
    %v5105 = vunpack.c.l.b16 %v4764
    %v5106 = vunpack.c.h.b16 %v4764
    %v5107 = vunpack.c.l.b16 %v4765
    %v5108 = vunpack.c.h.b16 %v4765
    %v5109 = vunpack.c.l.b16 %v4766
    %v5110 = vunpack.c.h.b16 %v4766
    %v5111 = vunpack.c.l.b16 %v4767
    %v5112 = vunpack.c.h.b16 %v4767
    %v5113 = vunpack.c.l.b16 %v4768
    %v5114 = vunpack.c.h.b16 %v4768
    %v5115 = vunpack.c.l.b16 %v4769
    %v5116 = vunpack.c.h.b16 %v4769
    %v5117 = vunpack.c.l.b16 %v4770
    %v5118 = vunpack.c.h.b16 %v4770
    %v5119 = vunpack.c.l.b16 %v4771
    %v5120 = vunpack.c.h.b16 %v4771
    %v5121 = vunpack.c.l.b16 %v4772
    %v5122 = vunpack.c.h.b16 %v4772
    %v5123 = vunpack.c.l.b16 %v4773
    %v5124 = vunpack.c.h.b16 %v4773
    %v5125 = vunpack.c.l.b16 %v4774
    %v5126 = vunpack.c.h.b16 %v4774
    %v5127 = vunpack.c.l.b16 %v4775
    %v5128 = vunpack.c.h.b16 %v4775
    %v5129 = vunpack.c.l.b16 %v4776
    %v5130 = vunpack.c.h.b16 %v4776
    %v5131 = vunpack.c.l.b16 %v4777
    %v5132 = vunpack.c.h.b16 %v4777
    %v5133 = vunpack.c.l.b16 %v4778
    %v5134 = vunpack.c.h.b16 %v4778
    %v5135 = vunpack.c.l.b16 %v4779
    %v5136 = vunpack.c.h.b16 %v4779
    %v5137 = vunpack.c.l.b16 %v4780
    %v5138 = vunpack.c.h.b16 %v4780
    %v5139 = vunpack.c.l.b16 %v4781
    %v5140 = vunpack.c.h.b16 %v4781
    %v5141 = vunpack.c.l.b16 %v4782
    %v5142 = vunpack.c.h.b16 %v4782
    %v5143 = vunpack.c.l.b16 %v4783
    %v5144 = vunpack.c.h.b16 %v4783
    %v5145 = vunpack.c.l.b16 %v4784
    %v5146 = vunpack.c.h.b16 %v4784
    %v5147 = vunpack.c.l.b16 %v4785
    %v5148 = vunpack.c.h.b16 %v4785
    %v5149 = vunpack.c.l.b16 %v4786
    %v5150 = vunpack.c.h.b16 %v4786
    %v5151 = vunpack.c.l.b16 %v4787
    %v5152 = vunpack.c.h.b16 %v4787
    %v5153 = vunpack.c.l.b16 %v4788
    %v5154 = vunpack.c.h.b16 %v4788
    %v5155 = vunpack.c.l.b16 %v4789
    %v5156 = vunpack.c.h.b16 %v4789
    %v5157 = vunpack.c.l.b16 %v4790
    %v5158 = vunpack.c.h.b16 %v4790
    %v5159 = vunpack.c.l.b16 %v4791
    %v5160 = vunpack.c.h.b16 %v4791
    %v5161 = vunpack.c.l.b16 %v4792
    %v5162 = vunpack.c.h.b16 %v4792
    %v5163 = vunpack.c.l.b16 %v4793
    %v5164 = vunpack.c.h.b16 %v4793
    %v5165 = vunpack.c.l.b16 %v4794
    %v5166 = vunpack.c.h.b16 %v4794
    %v5167 = vunpack.c.l.b16 %v4795
    %v5168 = vunpack.c.h.b16 %v4795
    %v5169 = vunpack.c.l.b16 %v4796
    %v5170 = vunpack.c.h.b16 %v4796
    %v5171 = vunpack.c.l.b16 %v4797
    %v5172 = vunpack.c.h.b16 %v4797
    %v5173 = vunpack.c.l.b16 %v4798
    %v5174 = vunpack.c.h.b16 %v4798
    %v5175 = vunpack.c.l.b16 %v4799
    %v5176 = vunpack.c.h.b16 %v4799
    %v5177 = vunpack.c.l.b16 %v4800
    %v5178 = vunpack.c.h.b16 %v4800
    %v5179 = vunpack.c.l.b16 %v4801
    %v5180 = vunpack.c.h.b16 %v4801
    %v5181 = vunpack.c.l.b16 %v4802
    %v5182 = vunpack.c.h.b16 %v4802
    %v5183 = vunpack.c.l.b16 %v4803
    %v5184 = vunpack.c.h.b16 %v4803
    %v5185 = vunpack.c.l.b16 %v4804
    %v5186 = vunpack.c.h.b16 %v4804
    %v5187 = vunpack.c.l.b16 %v4805
    %v5188 = vunpack.c.h.b16 %v4805
    %v5189 = vunpack.c.l.b16 %v4806
    %v5190 = vunpack.c.h.b16 %v4806
    %v5191 = vunpack.c.l.b16 %v4807
    %v5192 = vunpack.c.h.b16 %v4807
    %v5193 = vpack.c.b16 %v4941, %v4937
    %v5194 = vpack.c.b16 %v4942, %v4938
    %v5195 = vpack.c.b16 %v4943, %v4939
    %v5196 = vpack.c.b16 %v4944, %v4940
    %v5197 = vpack.c.b16 %v4949, %v4945
    %v5198 = vpack.c.b16 %v4950, %v4946
    %v5199 = vpack.c.b16 %v4951, %v4947
    %v5200 = vpack.c.b16 %v4952, %v4948
    %v5201 = vpack.c.b16 %v4957, %v4953
    %v5202 = vpack.c.b16 %v4958, %v4954
    %v5203 = vpack.c.b16 %v4959, %v4955
    %v5204 = vpack.c.b16 %v4960, %v4956
    %v5205 = vpack.c.b16 %v4965, %v4961
    %v5206 = vpack.c.b16 %v4966, %v4962
    %v5207 = vpack.c.b16 %v4967, %v4963
    %v5208 = vpack.c.b16 %v4968, %v4964
    %v5209 = vpack.c.b16 %v4973, %v4969
    %v5210 = vpack.c.b16 %v4974, %v4970
    %v5211 = vpack.c.b16 %v4975, %v4971
    %v5212 = vpack.c.b16 %v4976, %v4972
    %v5213 = vpack.c.b16 %v4981, %v4977
    %v5214 = vpack.c.b16 %v4982, %v4978
    %v5215 = vpack.c.b16 %v4983, %v4979
    %v5216 = vpack.c.b16 %v4984, %v4980
    %v5217 = vpack.c.b16 %v4989, %v4985
    %v5218 = vpack.c.b16 %v4990, %v4986
    %v5219 = vpack.c.b16 %v4991, %v4987
    %v5220 = vpack.c.b16 %v4992, %v4988
    %v5221 = vpack.c.b16 %v4997, %v4993
    %v5222 = vpack.c.b16 %v4998, %v4994
    %v5223 = vpack.c.b16 %v4999, %v4995
    %v5224 = vpack.c.b16 %v5000, %v4996
    %v5225 = vpack.c.b16 %v5005, %v5001
    %v5226 = vpack.c.b16 %v5006, %v5002
    %v5227 = vpack.c.b16 %v5007, %v5003
    %v5228 = vpack.c.b16 %v5008, %v5004
    %v5229 = vpack.c.b16 %v5013, %v5009
    %v5230 = vpack.c.b16 %v5014, %v5010
    %v5231 = vpack.c.b16 %v5015, %v5011
    %v5232 = vpack.c.b16 %v5016, %v5012
    %v5233 = vpack.c.b16 %v5021, %v5017
    %v5234 = vpack.c.b16 %v5022, %v5018
    %v5235 = vpack.c.b16 %v5023, %v5019
    %v5236 = vpack.c.b16 %v5024, %v5020
    %v5237 = vpack.c.b16 %v5029, %v5025
    %v5238 = vpack.c.b16 %v5030, %v5026
    %v5239 = vpack.c.b16 %v5031, %v5027
    %v5240 = vpack.c.b16 %v5032, %v5028
    %v5241 = vpack.c.b16 %v5037, %v5033
    %v5242 = vpack.c.b16 %v5038, %v5034
    %v5243 = vpack.c.b16 %v5039, %v5035
    %v5244 = vpack.c.b16 %v5040, %v5036
    %v5245 = vpack.c.b16 %v5045, %v5041
    %v5246 = vpack.c.b16 %v5046, %v5042
    %v5247 = vpack.c.b16 %v5047, %v5043
    %v5248 = vpack.c.b16 %v5048, %v5044
    %v5249 = vpack.c.b16 %v5053, %v5049
    %v5250 = vpack.c.b16 %v5054, %v5050
    %v5251 = vpack.c.b16 %v5055, %v5051
    %v5252 = vpack.c.b16 %v5056, %v5052
    %v5253 = vpack.c.b16 %v5061, %v5057
    %v5254 = vpack.c.b16 %v5062, %v5058
    %v5255 = vpack.c.b16 %v5063, %v5059
    %v5256 = vpack.c.b16 %v5064, %v5060
    %v5257 = vpack.c.b16 %v5069, %v5065
    %v5258 = vpack.c.b16 %v5070, %v5066
    %v5259 = vpack.c.b16 %v5071, %v5067
    %v5260 = vpack.c.b16 %v5072, %v5068
    %v5261 = vpack.c.b16 %v5077, %v5073
    %v5262 = vpack.c.b16 %v5078, %v5074
    %v5263 = vpack.c.b16 %v5079, %v5075
    %v5264 = vpack.c.b16 %v5080, %v5076
    %v5265 = vpack.c.b16 %v5085, %v5081
    %v5266 = vpack.c.b16 %v5086, %v5082
    %v5267 = vpack.c.b16 %v5087, %v5083
    %v5268 = vpack.c.b16 %v5088, %v5084
    %v5269 = vpack.c.b16 %v5093, %v5089
    %v5270 = vpack.c.b16 %v5094, %v5090
    %v5271 = vpack.c.b16 %v5095, %v5091
    %v5272 = vpack.c.b16 %v5096, %v5092
    %v5273 = vpack.c.b16 %v5101, %v5097
    %v5274 = vpack.c.b16 %v5102, %v5098
    %v5275 = vpack.c.b16 %v5103, %v5099
    %v5276 = vpack.c.b16 %v5104, %v5100
    %v5277 = vpack.c.b16 %v5109, %v5105
    %v5278 = vpack.c.b16 %v5110, %v5106
    %v5279 = vpack.c.b16 %v5111, %v5107
    %v5280 = vpack.c.b16 %v5112, %v5108
    %v5281 = vpack.c.b16 %v5117, %v5113
    %v5282 = vpack.c.b16 %v5118, %v5114
    %v5283 = vpack.c.b16 %v5119, %v5115
    %v5284 = vpack.c.b16 %v5120, %v5116
    %v5285 = vpack.c.b16 %v5125, %v5121
    %v5286 = vpack.c.b16 %v5126, %v5122
    %v5287 = vpack.c.b16 %v5127, %v5123
    %v5288 = vpack.c.b16 %v5128, %v5124
    %v5289 = vpack.c.b16 %v5133, %v5129
    %v5290 = vpack.c.b16 %v5134, %v5130
    %v5291 = vpack.c.b16 %v5135, %v5131
    %v5292 = vpack.c.b16 %v5136, %v5132
    %v5293 = vpack.c.b16 %v5141, %v5137
    %v5294 = vpack.c.b16 %v5142, %v5138
    %v5295 = vpack.c.b16 %v5143, %v5139
    %v5296 = vpack.c.b16 %v5144, %v5140
    %v5297 = vpack.c.b16 %v5149, %v5145
    %v5298 = vpack.c.b16 %v5150, %v5146
    %v5299 = vpack.c.b16 %v5151, %v5147
    %v5300 = vpack.c.b16 %v5152, %v5148
    %v5301 = vpack.c.b16 %v5157, %v5153
    %v5302 = vpack.c.b16 %v5158, %v5154
    %v5303 = vpack.c.b16 %v5159, %v5155
    %v5304 = vpack.c.b16 %v5160, %v5156
    %v5305 = vpack.c.b16 %v5165, %v5161
    %v5306 = vpack.c.b16 %v5166, %v5162
    %v5307 = vpack.c.b16 %v5167, %v5163
    %v5308 = vpack.c.b16 %v5168, %v5164
    %v5309 = vpack.c.b16 %v5173, %v5169
    %v5310 = vpack.c.b16 %v5174, %v5170
    %v5311 = vpack.c.b16 %v5175, %v5171
    %v5312 = vpack.c.b16 %v5176, %v5172
    %v5313 = vpack.c.b16 %v5181, %v5177
    %v5314 = vpack.c.b16 %v5182, %v5178
    %v5315 = vpack.c.b16 %v5183, %v5179
    %v5316 = vpack.c.b16 %v5184, %v5180
    %v5317 = vpack.c.b16 %v5189, %v5185
    %v5318 = vpack.c.b16 %v5190, %v5186
    %v5319 = vpack.c.b16 %v5191, %v5187
    %v5320 = vpack.c.b16 %v5192, %v5188
    %v5450 = vlaneseq
    %v5451 = vshrl.u32 %v5450, 7
    %v5452 = vsub.s32 0, %v5451
    %v5453 = vrot.slane %v4808, %v5452
    %v5454 = vlaneseq
    %v5455 = vshrl.u32 %v5454, 7
    %v5456 = vsub.s32 1, %v5455
    %v5457 = vrot.slane %v4808, %v5456
    %v5458 = vlaneseq
    %v5459 = vshrl.u32 %v5458, 7
    %v5460 = vsub.s32 2, %v5459
    %v5461 = vrot.slane %v4808, %v5460
    %v5462 = vlaneseq
    %v5463 = vshrl.u32 %v5462, 7
    %v5464 = vsub.s32 3, %v5463
    %v5465 = vrot.slane %v4808, %v5464
    %5470 = vmatprep.subr.bf16.mxu0 %v5194
    %5471 = vmatpush1.bf16.msra.mxu0 %v5193
    %5472 = vmatprep.subr.bf16.mxu0 %v5198
    %5473 = vmatpush1.bf16.msra.mxu0 %v5197
    %5474 = vmatprep.subr.bf16.mxu0 %v5202
    %5475 = vmatpush1.bf16.msra.mxu0 %v5201
    %5476 = vmatprep.subr.bf16.mxu0 %v5206
    %5477 = vmatpush1.bf16.msra.mxu0 %v5205
    %5478 = vmatprep.subr.bf16.mxu0 %v5210
    %5479 = vmatpush1.bf16.msra.mxu0 %v5209
    %5480 = vmatprep.subr.bf16.mxu0 %v5214
    %5481 = vmatpush1.bf16.msra.mxu0 %v5213
    %5482 = vmatprep.subr.bf16.mxu0 %v5218
    %5483 = vmatpush1.bf16.msra.mxu0 %v5217
    %5484 = vmatprep.subr.bf16.mxu0 %v5222
    %5485 = vmatpush1.bf16.msra.mxu0 %v5221
    %5486 = vmatprep.subr.bf16.mxu0 %v5226
    %5487 = vmatpush1.bf16.msra.mxu0 %v5225
    %5488 = vmatprep.subr.bf16.mxu0 %v5230
    %5489 = vmatpush1.bf16.msra.mxu0 %v5229
    %5490 = vmatprep.subr.bf16.mxu0 %v5234
    %5491 = vmatpush1.bf16.msra.mxu0 %v5233
    %5492 = vmatprep.subr.bf16.mxu0 %v5238
    %5493 = vmatpush1.bf16.msra.mxu0 %v5237
    %5494 = vmatprep.subr.bf16.mxu0 %v5242
    %5495 = vmatpush1.bf16.msra.mxu0 %v5241
    %5496 = vmatprep.subr.bf16.mxu0 %v5246
    %5497 = vmatpush1.bf16.msra.mxu0 %v5245
    %5498 = vmatprep.subr.bf16.mxu0 %v5250
    %5499 = vmatpush1.bf16.msra.mxu0 %v5249
    %5500 = vmatprep.subr.bf16.mxu0 %v5254
    %5501 = vmatpush1.bf16.msra.mxu0 %v5253
    %5502 = vmatprep.mubr.bf16.mxu0 %v4677
    %5503 = vmatmul.mubr.bf16.gmra.mrb[0].mxu0 %v4676
    %v5504 = vpop.f32.mrb[0].mxu0
    %v5505 = vadd.f32 %v5453, %v5504
    %v5506 = vpop.f32.mrb[0].mxu0
    %v5507 = vadd.f32 %v5457, %v5506
    %v5508 = vpop.f32.mrb[0].mxu0
    %v5509 = vpop.f32.mrb[0].mxu0
    %5510 = vdwg.mxu0
    %5511 = vmatprep.subr.bf16.mxu0 %v5258
    %5512 = vmatpush1.bf16.msra.mxu0 %v5257
    %5513 = vmatprep.subr.bf16.mxu0 %v5262
    %5514 = vmatpush1.bf16.msra.mxu0 %v5261
    %5515 = vmatprep.subr.bf16.mxu0 %v5266
    %5516 = vmatpush1.bf16.msra.mxu0 %v5265
    %5517 = vmatprep.subr.bf16.mxu0 %v5270
    %5518 = vmatpush1.bf16.msra.mxu0 %v5269
    %5519 = vmatprep.subr.bf16.mxu0 %v5274
    %5520 = vmatpush1.bf16.msra.mxu0 %v5273
    %5521 = vmatprep.subr.bf16.mxu0 %v5278
    %5522 = vmatpush1.bf16.msra.mxu0 %v5277
    %5523 = vmatprep.subr.bf16.mxu0 %v5282
    %5524 = vmatpush1.bf16.msra.mxu0 %v5281
    %5525 = vmatprep.subr.bf16.mxu0 %v5286
    %5526 = vmatpush1.bf16.msra.mxu0 %v5285
    %5527 = vmatprep.subr.bf16.mxu0 %v5290
    %5528 = vmatpush1.bf16.msra.mxu0 %v5289
    %5529 = vmatprep.subr.bf16.mxu0 %v5294
    %5530 = vmatpush1.bf16.msra.mxu0 %v5293
    %5531 = vmatprep.subr.bf16.mxu0 %v5298
    %5532 = vmatpush1.bf16.msra.mxu0 %v5297
    %5533 = vmatprep.subr.bf16.mxu0 %v5302
    %5534 = vmatpush1.bf16.msra.mxu0 %v5301
    %5535 = vmatprep.subr.bf16.mxu0 %v5306
    %5536 = vmatpush1.bf16.msra.mxu0 %v5305
    %5537 = vmatprep.subr.bf16.mxu0 %v5310
    %5538 = vmatpush1.bf16.msra.mxu0 %v5309
    %5539 = vmatprep.subr.bf16.mxu0 %v5314
    %5540 = vmatpush1.bf16.msra.mxu0 %v5313
    %5541 = vmatprep.subr.bf16.mxu0 %v5318
    %5542 = vmatpush1.bf16.msra.mxu0 %v5317
    %5543 = vmatprep.mubr.bf16.mxu0 %v4679
    %5544 = vmatmul.mubr.bf16.gmra.mrb[0].mxu0 %v4678
    %v5545 = vpop.f32.mrb[0].mxu0
    %v5546 = vadd.f32 %v5505, %v5545
    %v5547 = vpop.f32.mrb[0].mxu0
    %v5548 = vadd.f32 %v5507, %v5547
    %v5549 = vpop.f32.mrb[0].mxu0
    %v5550 = vpop.f32.mrb[0].mxu0
    %5551 = vdwg.mxu0
    %5552 = vmatprep.subr.bf16.mxu0 %v5196
    %5553 = vmatpush1.bf16.msra.mxu0 %v5195
    %5554 = vmatprep.subr.bf16.mxu0 %v5200
    %5555 = vmatpush1.bf16.msra.mxu0 %v5199
    %5556 = vmatprep.subr.bf16.mxu0 %v5204
    %5557 = vmatpush1.bf16.msra.mxu0 %v5203
    %5558 = vmatprep.subr.bf16.mxu0 %v5208
    %5559 = vmatpush1.bf16.msra.mxu0 %v5207
    %5560 = vmatprep.subr.bf16.mxu0 %v5212
    %5561 = vmatpush1.bf16.msra.mxu0 %v5211
    %5562 = vmatprep.subr.bf16.mxu0 %v5216
    %5563 = vmatpush1.bf16.msra.mxu0 %v5215
    %5564 = vmatprep.subr.bf16.mxu0 %v5220
    %5565 = vmatpush1.bf16.msra.mxu0 %v5219
    %5566 = vmatprep.subr.bf16.mxu0 %v5224
    %5567 = vmatpush1.bf16.msra.mxu0 %v5223
    %5568 = vmatprep.subr.bf16.mxu0 %v5228
    %5569 = vmatpush1.bf16.msra.mxu0 %v5227
    %5570 = vmatprep.subr.bf16.mxu0 %v5232
    %5571 = vmatpush1.bf16.msra.mxu0 %v5231
    %5572 = vmatprep.subr.bf16.mxu0 %v5236
    %5573 = vmatpush1.bf16.msra.mxu0 %v5235
    %5574 = vmatprep.subr.bf16.mxu0 %v5240
    %5575 = vmatpush1.bf16.msra.mxu0 %v5239
    %5576 = vmatprep.subr.bf16.mxu0 %v5244
    %5577 = vmatpush1.bf16.msra.mxu0 %v5243
    %5578 = vmatprep.subr.bf16.mxu0 %v5248
    %5579 = vmatpush1.bf16.msra.mxu0 %v5247
    %5580 = vmatprep.subr.bf16.mxu0 %v5252
    %5581 = vmatpush1.bf16.msra.mxu0 %v5251
    %5582 = vmatprep.subr.bf16.mxu0 %v5256
    %5583 = vmatpush1.bf16.msra.mxu0 %v5255
    %5584 = vmatprep.mubr.bf16.mxu0 %v4677
    %5585 = vmatmul.mubr.bf16.gmra.mrb[0].mxu0 %v4676
    %v5586 = vpop.f32.mrb[0].mxu0
    %v5587 = vadd.f32 %v5461, %v5586
    %v5588 = vpop.f32.mrb[0].mxu0
    %v5589 = vadd.f32 %v5465, %v5588
    %v5590 = vpop.f32.mrb[0].mxu0
    %v5591 = vpop.f32.mrb[0].mxu0
    %5592 = vdwg.mxu0
    %5593 = vmatprep.subr.bf16.mxu0 %v5260
    %5594 = vmatpush1.bf16.msra.mxu0 %v5259
    %5595 = vmatprep.subr.bf16.mxu0 %v5264
    %5596 = vmatpush1.bf16.msra.mxu0 %v5263
    %5597 = vmatprep.subr.bf16.mxu0 %v5268
    %5598 = vmatpush1.bf16.msra.mxu0 %v5267
    %5599 = vmatprep.subr.bf16.mxu0 %v5272
    %5600 = vmatpush1.bf16.msra.mxu0 %v5271
    %5601 = vmatprep.subr.bf16.mxu0 %v5276
    %5602 = vmatpush1.bf16.msra.mxu0 %v5275
    %5603 = vmatprep.subr.bf16.mxu0 %v5280
    %5604 = vmatpush1.bf16.msra.mxu0 %v5279
    %5605 = vmatprep.subr.bf16.mxu0 %v5284
    %5606 = vmatpush1.bf16.msra.mxu0 %v5283
    %5607 = vmatprep.subr.bf16.mxu0 %v5288
    %5608 = vmatpush1.bf16.msra.mxu0 %v5287
    %5609 = vmatprep.subr.bf16.mxu0 %v5292
    %5610 = vmatpush1.bf16.msra.mxu0 %v5291
    %5611 = vmatprep.subr.bf16.mxu0 %v5296
    %5612 = vmatpush1.bf16.msra.mxu0 %v5295
    %5613 = vmatprep.subr.bf16.mxu0 %v5300
    %5614 = vmatpush1.bf16.msra.mxu0 %v5299
    %5615 = vmatprep.subr.bf16.mxu0 %v5304
    %5616 = vmatpush1.bf16.msra.mxu0 %v5303
    %5617 = vmatprep.subr.bf16.mxu0 %v5308
    %5618 = vmatpush1.bf16.msra.mxu0 %v5307
    %5619 = vmatprep.subr.bf16.mxu0 %v5312
    %5620 = vmatpush1.bf16.msra.mxu0 %v5311
    %5621 = vmatprep.subr.bf16.mxu0 %v5316
    %5622 = vmatpush1.bf16.msra.mxu0 %v5315
    %5623 = vmatprep.subr.bf16.mxu0 %v5320
    %5624 = vmatpush1.bf16.msra.mxu0 %v5319
    %5625 = vmatprep.mubr.bf16.mxu0 %v4679
    %5626 = vmatmul.mubr.bf16.gmra.mrb[0].mxu0 %v4678
    %v5627 = vpop.f32.mrb[0].mxu0
    %v5628 = vadd.f32 %v5587, %v5627
    %v5629 = vpop.f32.mrb[0].mxu0
    %v5630 = vadd.f32 %v5589, %v5629
    %v5631 = vpop.f32.mrb[0].mxu0
    %v5632 = vpop.f32.mrb[0].mxu0
    %5633 = vdwg.mxu0
    %v5638 = vcombine.low %v5546, %v5548
    %v5639 = vcombine.low %v5628, %v5630
    %v5641 = vunpack.c.l.s4 1966171168
    %v5642 = vunpack.c.0.s8 %v5641
    %v5643 = vlaneseq
    %v5644 = vshrl.u32 %v5643, 7
    %v5645 = vsub.s32 %v5642, %v5644
    %v5646 = vrot.slane %v5638, %v5645
    %v5648 = vunpack.c.l.s4 1966171168
    %v5649 = vunpack.c.0.s8 %v5648
    %v5650 = vlaneseq
    %v5651 = vshrl.u32 %v5650, 7
    %v5652 = vsub.s32 %v5649, %v5651
    %v5653 = vrot.slane %v5639, %v5652
    %v5654 = vcombine.low %v5646, %v5653
    %v5656 = vunpack.c.l.s4 1966171168
    %v5657 = vunpack.c.0.s8 %v5656
    %v5658 = vlaneseq
    %v5659 = vshrl.u32 %v5658, 7
    %v5660 = vsub.s32 %v5657, %v5659
    %v5661 = vrot.slane %v5654, %v5660
    %v5663 = vlaneseq
    %vm5664 = vcmp.ge.s32.totalorder %v5663, 0
    %vm5665 = vcmp.lt.s32.totalorder %v5663, 512
    %vm5666 = vmand %vm5664, %vm5665
    %5667 = vst.msk [vmem:[#allocation22] sm:$0xf] %vm5666, %v5661
    // Predicated region
    $region110: #{tpu_custom_call.1} parent=1 // pred_check
      _
    $region111: #{tpu_custom_call.1} parent=1 // pred_check_branch
      %5669 = sbr.rel (0) target = $region113
    $region112: #{tpu_custom_call.1} parent=1 // pred_region
      %s5671 = ssub.s32 64, 64
      %5672 = vsyncadd [#allocation7], %s5671
      %s5674 = sshll.u32 [#allocation22], 4
      %s5675 = int_to_ptr.vmem [resolvable:$true] %s5674
      %5677 = dma.vmem_to_hbm [thread:$0]  %s5675, 64, %s19, [#allocation7]
    $region113: #{tpu_custom_call.1} parent=1 // pred_fallthru
      _
    // Predicated region
    $region114: #{tpu_custom_call.1} parent=1 // pred_check
      _
    $region115: #{tpu_custom_call.1} parent=1 // pred_check_branch
      %5679 = sbr.rel (0) target = $region117
    $region116: #{tpu_custom_call.1} parent=1 // pred_region
      %5680 = dma.done [#allocation7], 64
    $region117: #{tpu_custom_call.1} parent=1 // pred_fallthru
      _
    %5681 = vsyncpa [#allocation6], 1
    %5682 = vsyncpa [#allocation9], 1
    %5683 = vsyncpa [#allocation12], 1
    %5684 = vsyncpa [#allocation15], 1
    %5685 = vsyncpa [#allocation18], 1
    %5686 = vsyncpa [#allocation21], 1
    %5687 = vsyncpa [#allocation7], 1

</llo_original>
